<compile_context>
chip_gen: v7x
topology: tpu7x:2x2x1
jax: 0.10.0
libtpu: 0.0.40
codegen_flags: <defaults>
</compile_context>

<pallas_src>
import jax
import jax.numpy as jnp
from jax.experimental import pallas as pl
from jax.experimental.pallas import tpu as pltpu

H1 = 4000                                   # fc1 output features (module spec)
H2 = 1000                                   # fc2 output features (module spec)
TK = 1024                                   # hidden-dim reduction tile
H1_PAD = ((H1 + TK - 1) // TK) * TK         # 4096
H2_PAD = ((H2 + 127) // 128) * 128          # 1024 (lane-dense fc2 width)


def _mlp_kernel(x_ref, w1_ref, b1_ref, w2_ref, b2_ref, w3_ref, b3_ref,
                o_ref, acc_ref):
    k = pl.program_id(0)

    @pl.when(k == 0)
    def _():
        acc_ref[...] = jnp.zeros_like(acc_ref)

    # fc1 tile (bf16 operands, f32 accumulation on the MXU) + bias + ReLU.
    h1 = jnp.dot(x_ref[...], w1_ref[...], preferred_element_type=jnp.float32)
    h1 = jnp.maximum(h1 + b1_ref[...], 0.0)

    # Partial fc2 into the resident (B, H2_PAD) f32 accumulator.
    acc_ref[...] += jnp.dot(h1.astype(jnp.bfloat16), w2_ref[...],
                            preferred_element_type=jnp.float32)

    @pl.when(k == pl.num_programs(0) - 1)
    def _():
        h2 = jnp.maximum(acc_ref[...] + b2_ref[...], 0.0)
        # fc3 has N=1: VPU multiply + cross-lane reduce instead of an MXU pass
        # that would use 1/128 of the array.  Padded cols are exactly zero.
        out = jnp.sum(h2 * w3_ref[...].astype(jnp.float32),
                      axis=-1, keepdims=True) + b3_ref[0]
        o_ref[...] = out.astype(o_ref.dtype)


def nn_forward(x_bf16, w1, b1, w2, b2, w3_row, b3):
    """Pallas forward pass (eval mode).

    x_bf16: (B, D_in)          bf16
    w1:     (D_in, H1_PAD)     bf16 (zero-padded cols 4000..4095)
    b1:     (1, H1_PAD)        f32  (zero-padded)
    w2:     (H1_PAD, H2_PAD)   bf16 (zero-padded rows and cols)
    b2:     (1, H2_PAD)        f32  (zero-padded)
    w3_row: (1, H2_PAD)        bf16 (transposed fc3 weight, zero-padded)
    b3:     (1,)               f32  (SMEM scalar)
    returns (B, 1) f32
    """
    B, D_in = x_bf16.shape
    n_k = H1_PAD // TK

    flops = 2 * B * (D_in * H1 + H1 * H2 + H2)
    bytes_accessed = (
        w1.size * w1.dtype.itemsize + w2.size * w2.dtype.itemsize
        + w3_row.size * w3_row.dtype.itemsize
        + b1.size * 4 + b2.size * 4 + b3.size * 4
        + x_bf16.size * x_bf16.dtype.itemsize + B * 4)

    grid_spec = pltpu.PrefetchScalarGridSpec(
        num_scalar_prefetch=0,
        grid=(n_k,),
        in_specs=[
            pl.BlockSpec((B, D_in), lambda k: (0, 0)),          # x (resident)
            pl.BlockSpec((D_in, TK), lambda k: (0, k)),         # w1 K-tile
            pl.BlockSpec((1, TK), lambda k: (0, k)),            # b1 K-tile
            pl.BlockSpec((TK, H2_PAD), lambda k: (k, 0)),       # w2 K-tile
            pl.BlockSpec((1, H2_PAD), lambda k: (0, 0)),        # b2 (resident)
            pl.BlockSpec((1, H2_PAD), lambda k: (0, 0)),        # w3 row (resident)
            pl.BlockSpec(memory_space=pltpu.MemorySpace.SMEM),  # b3 scalar
        ],
        out_specs=pl.BlockSpec((B, 1), lambda k: (0, 0)),
        scratch_shapes=[pltpu.VMEM((B, H2_PAD), jnp.float32)],
    )

    return pl.pallas_call(
        _mlp_kernel,
        out_shape=jax.ShapeDtypeStruct((B, 1), jnp.float32),
        grid_spec=grid_spec,
        compiler_params=pltpu.CompilerParams(
            dimension_semantics=("arbitrary",),   # K is a reduction axis
            vmem_limit_bytes=32 << 20,            # safe on v5e/v6e/v7x
        ),
        cost_estimate=pl.CostEstimate(
            flops=flops, transcendentals=0, bytes_accessed=bytes_accessed),
    )(x_bf16, w1, b1, w2, b2, w3_row, b3)


def init_params(key, input_size):
    """Deterministic init mimicking nn.Linear's U(-1/sqrt(fan_in), 1/sqrt(fan_in))."""
    ks = jax.random.split(key, 6)

    def linear(kw, kb, fan_in, fan_out):
        bound = 1.0 / (fan_in ** 0.5)
        w = jax.random.uniform(kw, (fan_in, fan_out), jnp.float32, -bound, bound)
        b = jax.random.uniform(kb, (1, fan_out), jnp.float32, -bound, bound)
        return w, b

    w1, b1 = linear(ks[0], ks[1], input_size, H1)
    w2, b2 = linear(ks[2], ks[3], H1, H2)
    w3, b3 = linear(ks[4], ks[5], H2, 1)
    return w1, b1, w2, b2, w3, b3


def prepare_params(params):
    """Pad 4000->4096 and 1000->1024 with zeros (zeros are exactly preserved
    through ReLU and contribute nothing to the reductions) and cast weights to
    bf16 for streaming.  Done once, outside the kernel call."""
    w1, b1, w2, b2, w3, b3 = params
    pad1 = H1_PAD - H1
    pad2 = H2_PAD - H2
    w1p = jnp.pad(w1, ((0, 0), (0, pad1))).astype(jnp.bfloat16)
    b1p = jnp.pad(b1, ((0, 0), (0, pad1)))                        # f32
    w2p = jnp.pad(w2, ((0, pad1), (0, pad2))).astype(jnp.bfloat16)
    b2p = jnp.pad(b2, ((0, 0), (0, pad2)))                        # f32
    w3_row = jnp.pad(w3.T, ((0, 0), (0, pad2))).astype(jnp.bfloat16)  # (1, H2_PAD)
    b3s = b3.reshape((1,))                                        # SMEM scalar
    return w1p, b1p, w2p, b2p, w3_row, b3s


def reference_forward(x, params):
    """Pure-JAX reference using the same bf16 weight/activation quantization as
    the kernel (so the check isolates tiling/fusion correctness)."""
    w1, b1, w2, b2, w3, b3 = params
    bf = jnp.bfloat16
    h1 = jnp.maximum(
        jnp.dot(x.astype(bf), w1.astype(bf),
                preferred_element_type=jnp.float32) + b1, 0.0)
    h2 = jnp.maximum(
        jnp.dot(h1.astype(bf), w2.astype(bf),
                preferred_element_type=jnp.float32) + b2, 0.0)
    w3_row = w3.astype(bf).astype(jnp.float32).reshape(1, -1)
    return jnp.sum(h2 * w3_row, axis=-1, keepdims=True) + b3


if __name__ == "__main__":
    key = jax.random.PRNGKey(0)
    k_x, k_p = jax.random.split(key)

    batch = 8
    input_size = 64   # small synthetic feature size (real PLEC fingerprints are larger)
    x = jax.random.normal(k_x, (batch, input_size), dtype=jnp.float32)

    params = init_params(k_p, input_size)
    kparams = prepare_params(params)
    x_bf16 = x.astype(jnp.bfloat16)

    out = nn_forward(x_bf16, *kparams)
    out = jax.block_until_ready(out)

    ref = reference_forward(x, params)
    assert out.shape == (batch, 1), out.shape
    max_diff = jnp.max(jnp.abs(out - ref))
    assert jnp.allclose(out, ref, atol=2e-3, rtol=2e-3), f"max abs diff {max_diff}"
    print("KERNEL_OK")
</pallas_src>

<mosaic_0001>
module attributes {stable_mosaic.version = 11 : i64} {
  func.func @_mlp_kernel(%arg0: i32, %arg1: memref<8x64xbf16, #tpu.memory_space<vmem>>, %arg2: memref<64x1024xbf16, #tpu.memory_space<vmem>>, %arg3: memref<1x1024xf32, #tpu.memory_space<vmem>>, %arg4: memref<1024x1024xbf16, #tpu.memory_space<vmem>>, %arg5: memref<1x1024xf32, #tpu.memory_space<vmem>>, %arg6: memref<1x1024xbf16, #tpu.memory_space<vmem>>, %arg7: memref<1xf32, #tpu.memory_space<smem>>, %arg8: memref<8x1xf32, #tpu.memory_space<vmem>>, %arg9: memref<8x1024xf32, #tpu.memory_space<vmem>>) attributes {dimension_semantics = [#tpu.dimension_semantics<arbitrary>], iteration_bounds = array<i64: 4>, scalar_prefetch = 0 : i64, scratch_operands = 1 : i64, tpu.core_type = #tpu.core_type<tc>, window_params = [{pipeline_mode = #tpu.pipeline_mode<synchronous>, transform_indices = @transform_0, window_bounds = array<i64: 8, 64>}, {transform_indices = @transform_1, window_bounds = array<i64: 64, 1024>}, {transform_indices = @transform_2, window_bounds = array<i64: 1, 1024>}, {transform_indices = @transform_3, window_bounds = array<i64: 1024, 1024>}, {pipeline_mode = #tpu.pipeline_mode<synchronous>, transform_indices = @transform_4, window_bounds = array<i64: 1, 1024>}, {pipeline_mode = #tpu.pipeline_mode<synchronous>, transform_indices = @transform_5, window_bounds = array<i64: 1, 1024>}, {transform_indices = @transform_6, window_bounds = array<i64: 1>}, {pipeline_mode = #tpu.pipeline_mode<synchronous>, transform_indices = @transform_7, window_bounds = array<i64: 8, 1>}]} {
    %c0_i32 = arith.constant 0 : i32
    %0 = arith.cmpi eq, %arg0, %c0_i32 : i32
    %1 = arith.extui %0 : i1 to i32
    %c0_i32_0 = arith.constant 0 : i32
    %2 = arith.cmpi ne, %1, %c0_i32_0 : i32
    scf.if %2 {
      %cst_15 = arith.constant 0.000000e+00 : f32
      %20 = vector.broadcast %cst_15 : f32 to vector<8x1024xf32>
      %c0_16 = arith.constant 0 : index
      %c0_17 = arith.constant 0 : index
      %21 = vector.load %arg9[%c0_16, %c0_17] : memref<8x1024xf32, #tpu.memory_space<vmem>>, vector<8x1024xf32>
      tpu.vector_store %arg9[%c0_16, %c0_17], %20 {strides = array<i32>} : memref<8x1024xf32, #tpu.memory_space<vmem>>, vector<8x1024xf32>,
    } else {
    }
    %c0 = arith.constant 0 : index
    %c0_1 = arith.constant 0 : index
    %3 = vector.load %arg1[%c0, %c0_1] : memref<8x64xbf16, #tpu.memory_space<vmem>>, vector<8x64xbf16>
    %c0_2 = arith.constant 0 : index
    %c0_3 = arith.constant 0 : index
    %4 = vector.load %arg2[%c0_2, %c0_3] : memref<64x1024xbf16, #tpu.memory_space<vmem>>, vector<64x1024xbf16>
    %cst = arith.constant dense<0.000000e+00> : vector<8x1024xf32>
    %5 = tpu.matmul %3, %4, %cst {dimension_numbers = #tpu.dot_dimension_numbers<[1], [0], [0], [1], [0, 0, 1, 1], [], []>} : vector<8x64xbf16>, vector<64x1024xbf16>, vector<8x1024xf32> -> vector<8x1024xf32>
    %c0_4 = arith.constant 0 : index
    %c0_5 = arith.constant 0 : index
    %6 = vector.load %arg3[%c0_4, %c0_5] : memref<1x1024xf32, #tpu.memory_space<vmem>>, vector<1x1024xf32>
    %7 = vector.broadcast %6 : vector<1x1024xf32> to vector<8x1024xf32>
    %8 = arith.addf %5, %7 : vector<8x1024xf32>
    %cst_6 = arith.constant 0.000000e+00 : f32
    %9 = vector.broadcast %cst_6 : f32 to vector<8x1024xf32>
    %10 = arith.maximumf %8, %9 : vector<8x1024xf32>
    %c0_7 = arith.constant 0 : index
    %c0_8 = arith.constant 0 : index
    %11 = vector.load %arg9[%c0_7, %c0_8] : memref<8x1024xf32, #tpu.memory_space<vmem>>, vector<8x1024xf32>
    %12 = arith.truncf %10 : vector<8x1024xf32> to vector<8x1024xbf16>
    %c0_9 = arith.constant 0 : index
    %c0_10 = arith.constant 0 : index
    %13 = vector.load %arg4[%c0_9, %c0_10] : memref<1024x1024xbf16, #tpu.memory_space<vmem>>, vector<1024x1024xbf16>
    %cst_11 = arith.constant dense<0.000000e+00> : vector<8x1024xf32>
    %14 = tpu.matmul %12, %13, %cst_11 {dimension_numbers = #tpu.dot_dimension_numbers<[1], [0], [0], [1], [0, 0, 1, 1], [], []>} : vector<8x1024xbf16>, vector<1024x1024xbf16>, vector<8x1024xf32> -> vector<8x1024xf32>
    %15 = arith.addf %11, %14 : vector<8x1024xf32>
    %c0_12 = arith.constant 0 : index
    %c0_13 = arith.constant 0 : index
    %16 = vector.load %arg9[%c0_12, %c0_13] : memref<8x1024xf32, #tpu.memory_space<vmem>>, vector<8x1024xf32>
    tpu.vector_store %arg9[%c0_12, %c0_13], %15 {strides = array<i32>} : memref<8x1024xf32, #tpu.memory_space<vmem>>, vector<8x1024xf32>,
    %c3_i32 = arith.constant 3 : i32
    %17 = arith.cmpi eq, %arg0, %c3_i32 : i32
    %18 = arith.extui %17 : i1 to i32
    %c0_i32_14 = arith.constant 0 : i32
    %19 = arith.cmpi ne, %18, %c0_i32_14 : i32
    scf.if %19 {
      %c0_15 = arith.constant 0 : index
      %c0_16 = arith.constant 0 : index
      %20 = vector.load %arg9[%c0_15, %c0_16] : memref<8x1024xf32, #tpu.memory_space<vmem>>, vector<8x1024xf32>
      %c0_17 = arith.constant 0 : index
      %c0_18 = arith.constant 0 : index
      %21 = vector.load %arg5[%c0_17, %c0_18] : memref<1x1024xf32, #tpu.memory_space<vmem>>, vector<1x1024xf32>
      %22 = vector.broadcast %21 : vector<1x1024xf32> to vector<8x1024xf32>
      %23 = arith.addf %20, %22 : vector<8x1024xf32>
      %cst_19 = arith.constant 0.000000e+00 : f32
      %24 = vector.broadcast %cst_19 : f32 to vector<8x1024xf32>
      %25 = arith.maximumf %23, %24 : vector<8x1024xf32>
      %c0_20 = arith.constant 0 : index
      %c0_21 = arith.constant 0 : index
      %26 = vector.load %arg6[%c0_20, %c0_21] : memref<1x1024xbf16, #tpu.memory_space<vmem>>, vector<1x1024xbf16>
      %27 = arith.extf %26 : vector<1x1024xbf16> to vector<1x1024xf32>
      %28 = vector.broadcast %27 : vector<1x1024xf32> to vector<8x1024xf32>
      %29 = arith.mulf %25, %28 : vector<8x1024xf32>
      %cst_22 = arith.constant dense<0.000000e+00> : vector<8xf32>
      %30 = vector.multi_reduction <add>, %29, %cst_22 [1] : vector<8x1024xf32> to vector<8xf32>
      %31 = vector.shape_cast %30 : vector<8xf32> to vector<8x1xf32>
      %c0_23 = arith.constant 0 : index
      %32 = memref.load %arg7[%c0_23] : memref<1xf32, #tpu.memory_space<smem>>
      %33 = vector.broadcast %32 : f32 to vector<8x1xf32>
      %34 = arith.addf %31, %33 : vector<8x1xf32>
      %c0_24 = arith.constant 0 : index
      %c0_25 = arith.constant 0 : index
      %35 = vector.load %arg8[%c0_24, %c0_25] : memref<8x1xf32, #tpu.memory_space<vmem>>, vector<8x1xf32>
      tpu.vector_store %arg8[%c0_24, %c0_25], %34 {strides = array<i32>} : memref<8x1xf32, #tpu.memory_space<vmem>>, vector<8x1xf32>,
    } else {
    }
    return
  }
  func.func @transform_0(%arg0: i32) -> (i32, i32) {
    %c0_i32 = arith.constant 0 : i32
    %c0_i32_0 = arith.constant 0 : i32
    %c0_i32_1 = arith.constant 0 : i32
    return %c0_i32, %c0_i32_0 : i32, i32
  }
  func.func @transform_1(%arg0: i32) -> (i32, i32) {
    %c0_i32 = arith.constant 0 : i32
    %c0_i32_0 = arith.constant 0 : i32
    return %c0_i32, %arg0 : i32, i32
  }
  func.func @transform_2(%arg0: i32) -> (i32, i32) {
    %c0_i32 = arith.constant 0 : i32
    %c0_i32_0 = arith.constant 0 : i32
    return %c0_i32, %arg0 : i32, i32
  }
  func.func @transform_3(%arg0: i32) -> (i32, i32) {
    %c0_i32 = arith.constant 0 : i32
    %c0_i32_0 = arith.constant 0 : i32
    return %arg0, %c0_i32 : i32, i32
  }
  func.func @transform_4(%arg0: i32) -> (i32, i32) {
    %c0_i32 = arith.constant 0 : i32
    %c0_i32_0 = arith.constant 0 : i32
    %c0_i32_1 = arith.constant 0 : i32
    return %c0_i32, %c0_i32_0 : i32, i32
  }
  func.func @transform_5(%arg0: i32) -> (i32, i32) {
    %c0_i32 = arith.constant 0 : i32
    %c0_i32_0 = arith.constant 0 : i32
    %c0_i32_1 = arith.constant 0 : i32
    return %c0_i32, %c0_i32_0 : i32, i32
  }
  func.func @transform_6(%arg0: i32) -> i32 {
    %c0_i32 = arith.constant 0 : i32
    %c0_i32_0 = arith.constant 0 : i32
    return %c0_i32 : i32
  }
  func.func @transform_7(%arg0: i32) -> (i32, i32) {
    %c0_i32 = arith.constant 0 : i32
    %c0_i32_0 = arith.constant 0 : i32
    %c0_i32_1 = arith.constant 0 : i32
    return %c0_i32, %c0_i32_0 : i32, i32
  }
}

</mosaic_0001>

<llo_original>
// kernel: tpu_custom_call.1
$region0: #{tpu_custom_call.1}
  #allocation0 [shape = 'u32[]', space=smem, size = 0x4, offset = 0x4, fixed_abs, tag = 'smem constant byte address 0x4 - core index']
  #allocation1 [shape = 'u32[144,128]{1,0:T(1,128)}', space=vmem, size = 0x12000, scoped, tag = 'internal scratch']
  #allocation2 [shape = 'f32[8,1024]{1,0:T(8,128)}', space=vmem, size = 0x8000, scoped, tag = 'scratch operand']
  #allocation3 [shape = 'f32[1]{0:T(128)S(6)}', space=smem, size = 0x200, scoped, tag = 'scoped memory for tpu_custom_call.1']
  %s0 = inlined_call_operand.hbm [shape: bf16[8,64], index: 0, kind: input, shape index: {}]
  %s1 = inlined_call_operand.hbm [shape: bf16[64,4096], index: 1, kind: input, shape index: {}]
  %s2 = inlined_call_operand.hbm [shape: f32[1,4096], index: 2, kind: input, shape index: {}]
  %s3 = inlined_call_operand.hbm [shape: bf16[4096,1024], index: 3, kind: input, shape index: {}]
  %s4 = inlined_call_operand.hbm [shape: f32[1,1024], index: 4, kind: input, shape index: {}]
  %s5 = inlined_call_operand.hbm [shape: bf16[1,1024], index: 5, kind: input, shape index: {}]
  %s6 = inlined_call_operand.<no memory space> [shape: f32[1], index: 6, kind: input, shape index: {}]
  %s7 = inlined_call_operand.vmem [shape: f32[8,1], index: 7, kind: output, shape index: {}]
  %s8 = sld [smem:[#allocation0]]
  $region93: #{tpu_custom_call.1} parent=0
    _
  %s10 = ssub.s32 1, %s8
  %s11 = scalar_select 0, %s10, %s8
  %12 = sst [smem:[#allocation3]] %s6
  $region1: #{tpu_custom_call.1} parent=0
    #allocation4 [shape = 'u8[2048]{0}', space=vmem, size = 0x800, scoped, tag = 'input window, operand 0, single buffered']
    #allocation5 [shape = 's32[2]{0}', space=sflag, size = 0x8, scoped, tag = 'scoped memory for tpu_custom_call.1']
    #allocation6 [shape = 'u8[262144]{0}', space=vmem, size = 0x40000, scoped, tag = 'input window, operand 1']
    #allocation7 [shape = 's32[2]{0}', space=sflag, size = 0x8, scoped, tag = 'scoped memory for tpu_custom_call.1']
    #allocation8 [shape = 'u8[8192]{0}', space=vmem, size = 0x2000, scoped, tag = 'input window, operand 2']
    #allocation9 [shape = 'u8[4194304]{0}', space=vmem, size = 0x400000, scoped, tag = 'input window, operand 3']
    #allocation10 [shape = 's32[2]{0}', space=sflag, size = 0x8, scoped, tag = 'scoped memory for tpu_custom_call.1']
    #allocation11 [shape = 'u8[4096]{0}', space=vmem, size = 0x1000, scoped, tag = 'input window, operand 4, single buffered']
    #allocation12 [shape = 'u8[4096]{0}', space=vmem, size = 0x1000, scoped, tag = 'input window, operand 5, single buffered']
    #allocation13 [shape = 's32[1]{0}', space=sflag, size = 0x4, scoped, tag = 'scoped memory for tpu_custom_call.1']
    %13 = vsyncpa [#allocation5], 0
    %14 = vsyncpa [#allocation7], 0
    %s15 = scalar_lea.sflag [#allocation7], 1
    %16 = vsyncpa %s15, 0
    %17 = vsyncpa [#allocation10], 0
    %s18 = scalar_lea.sflag [#allocation10], 1
    %19 = vsyncpa %s18, 0
    %20 = vsyncpa [#allocation13], 0
    loop: start=0, step=1, limit=6
    $region2: #{tpu_custom_call.1} parent=1 // loop_pre_header
      _
    $region3: #{tpu_custom_call.1} parent=1 // loop_header
      %s22 = sphi 0, %s26
      %p23 = scmp.ge.s32.totalorder %s22, 6
      %s30 = sphi 0, %s30
      %s32 = sphi 0, %s30
      %s33 = sphi 0, %s32
      %s47 = sphi 0, %s33
      %s53 = sphi 0, %s55
      %s56 = sphi 0, %s53
      %s57 = sphi 0, %s56
      %s73 = sphi 0, %s57
      %s79 = sphi 0, %s81
      %s82 = sphi 0, %s79
      %s83 = sphi 0, %s82
      %s99 = sphi 0, %s83
      %s105 = sphi 0, %s107
      %s108 = sphi 0, %s105
      %s109 = sphi 0, %s108
      %s125 = sphi 0, %s109
      %s129 = sphi 0, %s129
      %s131 = sphi 0, %s129
      %s132 = sphi 0, %s131
      %s146 = sphi 0, %s132
      %s150 = sphi 0, %s150
      %s152 = sphi 0, %s150
      %s153 = sphi 0, %s152
      %s167 = sphi 0, %s153
      %s171 = sphi 0, %s171
      %s173 = sphi 0, %s171
      %s174 = sphi 0, %s173
      %s188 = sphi 0, %s174
      %s192 = sphi 0, %s192
      %s194 = sphi 0, %s192
      %s195 = sphi 0, %s194
      %s209 = sphi 0, %s195
    $region4: #{tpu_custom_call.1} parent=1 // loop_header_branch
      %25 = sbr.rel (%p23) target = $region8
    $region5: #{tpu_custom_call.1} parent=1 // loop_body
      %s27 = ssub.s32 %s22, 1
      %s28 = ssub.s32 %s22, 2
      %s29 = sadd.s32 %s22, 1
      %s31 = sadd.s32 %s30, 1
      %p34 = scmp.eq.s32.totalorder %s22, 3
      %p35 = scmp.ne.s32.totalorder %s30, %s32
      %p36 = scmp.eq.s32.totalorder %s22, 0
      %p37 = por %p35, %p36
      %p38 = scmp.ne.s32.totalorder %s30, %s32
      %p39 = scmp.eq.s32.totalorder %s27, 3
      %p40 = por %p38, %p39
      %p41 = scmp.ne.s32.totalorder %s32, %s33
      %p42 = scmp.eq.s32.totalorder %s27, 0
      %p43 = por %p41, %p42
      %p44 = scmp.ne.s32.totalorder %s32, %s33
      %p45 = scmp.eq.s32.totalorder %s28, 3
      %p46 = por %p44, %p45
      %p48 = scmp.ne.s32.totalorder %s33, %s47
      %p49 = scmp.eq.s32.totalorder %s28, 0
      %p50 = por %p48, %p49
      %s51 = ssub.s32 %s22, %s29
      %p52 = scmp.eq.s32.totalorder %s51, 0
      %s54 = sadd.s32 %s53, 1
      %s55 = scalar_select %p52, %s53, %s54
      %p58 = pneg %p52
      %p59 = scmp.eq.s32.totalorder %s22, 3
      %p60 = por %p58, %p59
      %p61 = scmp.ne.s32.totalorder %s53, %s56
      %p62 = scmp.eq.s32.totalorder %s22, 0
      %p63 = por %p61, %p62
      %p64 = scmp.ne.s32.totalorder %s53, %s56
      %p65 = scmp.eq.s32.totalorder %s27, 3
      %p66 = por %p64, %p65
      %p67 = scmp.ne.s32.totalorder %s56, %s57
      %p68 = scmp.eq.s32.totalorder %s27, 0
      %p69 = por %p67, %p68
      %p70 = scmp.ne.s32.totalorder %s56, %s57
      %p71 = scmp.eq.s32.totalorder %s28, 3
      %p72 = por %p70, %p71
      %p74 = scmp.ne.s32.totalorder %s57, %s73
      %p75 = scmp.eq.s32.totalorder %s28, 0
      %p76 = por %p74, %p75
      %s77 = ssub.s32 %s22, %s29
      %p78 = scmp.eq.s32.totalorder %s77, 0
      %s80 = sadd.s32 %s79, 1
      %s81 = scalar_select %p78, %s79, %s80
      %p84 = pneg %p78
      %p85 = scmp.eq.s32.totalorder %s22, 3
      %p86 = por %p84, %p85
      %p87 = scmp.ne.s32.totalorder %s79, %s82
      %p88 = scmp.eq.s32.totalorder %s22, 0
      %p89 = por %p87, %p88
      %p90 = scmp.ne.s32.totalorder %s79, %s82
      %p91 = scmp.eq.s32.totalorder %s27, 3
      %p92 = por %p90, %p91
      %p93 = scmp.ne.s32.totalorder %s82, %s83
      %p94 = scmp.eq.s32.totalorder %s27, 0
      %p95 = por %p93, %p94
      %p96 = scmp.ne.s32.totalorder %s82, %s83
      %p97 = scmp.eq.s32.totalorder %s28, 3
      %p98 = por %p96, %p97
      %p100 = scmp.ne.s32.totalorder %s83, %s99
      %p101 = scmp.eq.s32.totalorder %s28, 0
      %p102 = por %p100, %p101
      %s103 = ssub.s32 %s22, %s29
      %p104 = scmp.eq.s32.totalorder %s103, 0
      %s106 = sadd.s32 %s105, 1
      %s107 = scalar_select %p104, %s105, %s106
      %p110 = pneg %p104
      %p111 = scmp.eq.s32.totalorder %s22, 3
      %p112 = por %p110, %p111
      %p113 = scmp.ne.s32.totalorder %s105, %s108
      %p114 = scmp.eq.s32.totalorder %s22, 0
      %p115 = por %p113, %p114
      %p116 = scmp.ne.s32.totalorder %s105, %s108
      %p117 = scmp.eq.s32.totalorder %s27, 3
      %p118 = por %p116, %p117
      %p119 = scmp.ne.s32.totalorder %s108, %s109
      %p120 = scmp.eq.s32.totalorder %s27, 0
      %p121 = por %p119, %p120
      %p122 = scmp.ne.s32.totalorder %s108, %s109
      %p123 = scmp.eq.s32.totalorder %s28, 3
      %p124 = por %p122, %p123
      %p126 = scmp.ne.s32.totalorder %s109, %s125
      %p127 = scmp.eq.s32.totalorder %s28, 0
      %p128 = por %p126, %p127
      %s130 = sadd.s32 %s129, 1
      %p133 = scmp.eq.s32.totalorder %s22, 3
      %p134 = scmp.ne.s32.totalorder %s129, %s131
      %p135 = scmp.eq.s32.totalorder %s22, 0
      %p136 = por %p134, %p135
      %p137 = scmp.ne.s32.totalorder %s129, %s131
      %p138 = scmp.eq.s32.totalorder %s27, 3
      %p139 = por %p137, %p138
      %p140 = scmp.ne.s32.totalorder %s131, %s132
      %p141 = scmp.eq.s32.totalorder %s27, 0
      %p142 = por %p140, %p141
      %p143 = scmp.ne.s32.totalorder %s131, %s132
      %p144 = scmp.eq.s32.totalorder %s28, 3
      %p145 = por %p143, %p144
      %p147 = scmp.ne.s32.totalorder %s132, %s146
      %p148 = scmp.eq.s32.totalorder %s28, 0
      %p149 = por %p147, %p148
      %s151 = sadd.s32 %s150, 1
      %p154 = scmp.eq.s32.totalorder %s22, 3
      %p155 = scmp.ne.s32.totalorder %s150, %s152
      %p156 = scmp.eq.s32.totalorder %s22, 0
      %p157 = por %p155, %p156
      %p158 = scmp.ne.s32.totalorder %s150, %s152
      %p159 = scmp.eq.s32.totalorder %s27, 3
      %p160 = por %p158, %p159
      %p161 = scmp.ne.s32.totalorder %s152, %s153
      %p162 = scmp.eq.s32.totalorder %s27, 0
      %p163 = por %p161, %p162
      %p164 = scmp.ne.s32.totalorder %s152, %s153
      %p165 = scmp.eq.s32.totalorder %s28, 3
      %p166 = por %p164, %p165
      %p168 = scmp.ne.s32.totalorder %s153, %s167
      %p169 = scmp.eq.s32.totalorder %s28, 0
      %p170 = por %p168, %p169
      %s172 = sadd.s32 %s171, 1
      %p175 = scmp.eq.s32.totalorder %s22, 3
      %p176 = scmp.ne.s32.totalorder %s171, %s173
      %p177 = scmp.eq.s32.totalorder %s22, 0
      %p178 = por %p176, %p177
      %p179 = scmp.ne.s32.totalorder %s171, %s173
      %p180 = scmp.eq.s32.totalorder %s27, 3
      %p181 = por %p179, %p180
      %p182 = scmp.ne.s32.totalorder %s173, %s174
      %p183 = scmp.eq.s32.totalorder %s27, 0
      %p184 = por %p182, %p183
      %p185 = scmp.ne.s32.totalorder %s173, %s174
      %p186 = scmp.eq.s32.totalorder %s28, 3
      %p187 = por %p185, %p186
      %p189 = scmp.ne.s32.totalorder %s174, %s188
      %p190 = scmp.eq.s32.totalorder %s28, 0
      %p191 = por %p189, %p190
      %s193 = sadd.s32 %s192, 1
      %p196 = scmp.eq.s32.totalorder %s22, 3
      %p197 = scmp.ne.s32.totalorder %s192, %s194
      %p198 = scmp.eq.s32.totalorder %s22, 0
      %p199 = por %p197, %p198
      %p200 = scmp.ne.s32.totalorder %s192, %s194
      %p201 = scmp.eq.s32.totalorder %s27, 3
      %p202 = por %p200, %p201
      %p203 = scmp.ne.s32.totalorder %s194, %s195
      %p204 = scmp.eq.s32.totalorder %s27, 0
      %p205 = por %p203, %p204
      %p206 = scmp.ne.s32.totalorder %s194, %s195
      %p207 = scmp.eq.s32.totalorder %s28, 3
      %p208 = por %p206, %p207
      %p210 = scmp.ne.s32.totalorder %s195, %s209
      %p211 = scmp.eq.s32.totalorder %s28, 0
      %p212 = por %p210, %p211
      %p213 = scmp.le.s32.totalorder 1, %s22
      %p214 = scmp.lt.s32.totalorder %s22, 5
      %p215 = pnand %p213, %p214
      %p216 = pneg %p215
      // Predicated region
      $region9: #{tpu_custom_call.1} parent=5 // pred_check
        _
      $region10: #{tpu_custom_call.1} parent=5 // pred_check_branch
        %218 = sbr.rel (%p215) target = $region12
      $region11: #{tpu_custom_call.1} parent=5 // pred_region
        %s219 = ssub.s32 %s22, 1
        // Predicated region
        $region13: #{tpu_custom_call.1} parent=11 // pred_check
          %p220 = pneg %p43
        $region14: #{tpu_custom_call.1} parent=11 // pred_check_branch
          %222 = sbr.rel (%p220) target = $region16
        $region15: #{tpu_custom_call.1} parent=11 // pred_region
          %s224 = ssub.s32 64, 64
          %225 = vsyncadd [#allocation5], %s224
          %s227 = sshll.u32 [#allocation4], 4
          %s228 = int_to_ptr.vmem [resolvable:$true] %s227
          %230 = dma.hbm_to_vmem [thread:$0]  %s0, 64, %s228, [#allocation5]
        $region16: #{tpu_custom_call.1} parent=11 // pred_fallthru
          _
        // Predicated region
        $region17: #{tpu_custom_call.1} parent=11 // pred_check
          %p231 = pneg %p142
        $region18: #{tpu_custom_call.1} parent=11 // pred_check_branch
          %233 = sbr.rel (%p231) target = $region20
        $region19: #{tpu_custom_call.1} parent=11 // pred_region
          %s235 = ssub.s32 128, 128
          %236 = vsyncadd [#allocation10], %s235
          %s238 = sshll.u32 [#allocation11], 4
          %s239 = int_to_ptr.vmem [resolvable:$true] %s238
          %241 = dma.hbm_to_vmem [thread:$0]  %s4, 128, %s239, [#allocation10]
        $region20: #{tpu_custom_call.1} parent=11 // pred_fallthru
          _
        // Predicated region
        $region21: #{tpu_custom_call.1} parent=11 // pred_check
          %p242 = pneg %p163
        $region22: #{tpu_custom_call.1} parent=11 // pred_check_branch
          %244 = sbr.rel (%p242) target = $region24
        $region23: #{tpu_custom_call.1} parent=11 // pred_region
          %s246 = ssub.s32 128, 128
          %247 = vsyncadd [#allocation13], %s246
          %s249 = sshll.u32 [#allocation12], 4
          %s250 = int_to_ptr.vmem [resolvable:$true] %s249
          %252 = dma.hbm_to_vmem [thread:$0]  %s5, 128, %s250, [#allocation13]
        $region24: #{tpu_custom_call.1} parent=11 // pred_fallthru
          _
        // Predicated region
        $region25: #{tpu_custom_call.1} parent=11 // pred_check
          %p253 = pneg %p184
        $region26: #{tpu_custom_call.1} parent=11 // pred_check_branch
          %255 = sbr.rel (%p253) target = $region28
        $region27: #{tpu_custom_call.1} parent=11 // pred_region
          _
        $region28: #{tpu_custom_call.1} parent=11 // pred_fallthru
          _
      $region12: #{tpu_custom_call.1} parent=5 // pred_fallthru
        _
      %p256 = scmp.lt.s32.totalorder %s22, 4
      // Predicated region
      $region29: #{tpu_custom_call.1} parent=5 // pred_check
        %p257 = pneg %p256
      $region30: #{tpu_custom_call.1} parent=5 // pred_check_branch
        %259 = sbr.rel (%p257) target = $region32
      $region31: #{tpu_custom_call.1} parent=5 // pred_region
        // Predicated region
        $region33: #{tpu_custom_call.1} parent=31 // pred_check
          %p260 = pneg %p63
        $region34: #{tpu_custom_call.1} parent=31 // pred_check_branch
          %262 = sbr.rel (%p260) target = $region36
        $region35: #{tpu_custom_call.1} parent=31 // pred_region
          %s263 = sand.u32 %s22, 1
          %s264 = scalar_lea.sflag [#allocation7], %s263
          %s265 = sand.u32 %s53, 1
          %s266 = smul.addr %s265, 256
          %s267 = scalar_lea.vmem [#allocation6], %s266
          %s268 = smul.u32 8, %s22
          %s270 = ssub.s32 4096, 4096
          %271 = vsyncadd %s264, %s270
          %s272 = smul.addr %s268, 64
          %s273 = scalar_lea.hbm %s1, %s272
          %s274 = sshll.u32 %s267, 4
          %s275 = int_to_ptr.vmem [resolvable:$true] %s274
          %280 = dma.hbm_to_vmem [thread:$0]  %s273, 4096, %s275, %s264, 2048, 512, 32
        $region36: #{tpu_custom_call.1} parent=31 // pred_fallthru
          _
        // Predicated region
        $region37: #{tpu_custom_call.1} parent=31 // pred_check
          %p281 = pneg %p89
        $region38: #{tpu_custom_call.1} parent=31 // pred_check_branch
          %283 = sbr.rel (%p281) target = $region40
        $region39: #{tpu_custom_call.1} parent=31 // pred_region
          %s284 = sand.u32 %s22, 1
          %s285 = scalar_lea.sflag [#allocation7], %s284
          %s286 = sand.u32 %s79, 1
          %s287 = smul.addr %s286, 8
          %s288 = scalar_lea.vmem [#allocation8], %s287
          %s289 = smul.u32 8, %s22
          %s291 = ssub.s32 128, 128
          %292 = vsyncadd %s285, %s291
          %s293 = smul.addr %s289, 16
          %s294 = scalar_lea.hbm %s2, %s293
          %s296 = sshll.u32 %s288, 4
          %s297 = int_to_ptr.vmem [resolvable:$true] %s296
          %299 = dma.hbm_to_vmem [thread:$0]  %s294, 128, %s297, %s285
        $region40: #{tpu_custom_call.1} parent=31 // pred_fallthru
          _
        // Predicated region
        $region41: #{tpu_custom_call.1} parent=31 // pred_check
          %p300 = pneg %p115
        $region42: #{tpu_custom_call.1} parent=31 // pred_check_branch
          %302 = sbr.rel (%p300) target = $region44
        $region43: #{tpu_custom_call.1} parent=31 // pred_region
          %s303 = sand.u32 %s22, 1
          %s304 = scalar_lea.sflag [#allocation10], %s303
          %s305 = sand.u32 %s105, 1
          %s306 = smul.addr %s305, 4096
          %s307 = scalar_lea.vmem [#allocation9], %s306
          %s308 = smul.u32 128, %s22
          %s310 = ssub.s32 65536, 65536
          %311 = vsyncadd %s304, %s310
          %s312 = smul.addr %s308, 8
          %s313 = smul.addr %s312, 64
          %s314 = scalar_lea.hbm %s3, %s313
          %s315 = sshll.u32 %s307, 4
          %s316 = int_to_ptr.vmem [resolvable:$true] %s315
          %321 = dma.hbm_to_vmem [thread:$0]  %s314, 65536, %s316, %s304, 512, 512, 32
        $region44: #{tpu_custom_call.1} parent=31 // pred_fallthru
          _
      $region32: #{tpu_custom_call.1} parent=5 // pred_fallthru
        _
      %p322 = scmp.le.s32.totalorder 1, %s22
      %p323 = scmp.lt.s32.totalorder %s22, 5
      %p324 = pnand %p322, %p323
      %p325 = pneg %p324
      // Predicated region
      $region45: #{tpu_custom_call.1} parent=5 // pred_check
        _
      $region46: #{tpu_custom_call.1} parent=5 // pred_check_branch
        %327 = sbr.rel (%p324) target = $region48
      $region47: #{tpu_custom_call.1} parent=5 // pred_region
        %s328 = ssub.s32 %s22, 1
        // Predicated region
        $region49: #{tpu_custom_call.1} parent=47 // pred_check
          %p329 = pneg %p43
        $region50: #{tpu_custom_call.1} parent=47 // pred_check_branch
          %331 = sbr.rel (%p329) target = $region52
        $region51: #{tpu_custom_call.1} parent=47 // pred_region
          %332 = dma.done [#allocation5], 64
        $region52: #{tpu_custom_call.1} parent=47 // pred_fallthru
          _
        %s333 = sand.u32 %s27, 1
        %s334 = scalar_lea.sflag [#allocation7], %s333
        %s335 = sand.u32 %s56, 1
        %s336 = smul.addr %s335, 256
        %s337 = scalar_lea.vmem [#allocation6], %s336
        // Predicated region
        $region53: #{tpu_custom_call.1} parent=47 // pred_check
          %p338 = pneg %p69
        $region54: #{tpu_custom_call.1} parent=47 // pred_check_branch
          %340 = sbr.rel (%p338) target = $region56
        $region55: #{tpu_custom_call.1} parent=47 // pred_region
          %341 = dma.done %s334, 4096
        $region56: #{tpu_custom_call.1} parent=47 // pred_fallthru
          _
        %s342 = sand.u32 %s27, 1
        %s343 = scalar_lea.sflag [#allocation7], %s342
        %s344 = sand.u32 %s82, 1
        %s345 = smul.addr %s344, 8
        %s346 = scalar_lea.vmem [#allocation8], %s345
        // Predicated region
        $region57: #{tpu_custom_call.1} parent=47 // pred_check
          %p347 = pneg %p95
        $region58: #{tpu_custom_call.1} parent=47 // pred_check_branch
          %349 = sbr.rel (%p347) target = $region60
        $region59: #{tpu_custom_call.1} parent=47 // pred_region
          %350 = dma.done %s343, 128
        $region60: #{tpu_custom_call.1} parent=47 // pred_fallthru
          _
        %s351 = sand.u32 %s27, 1
        %s352 = scalar_lea.sflag [#allocation10], %s351
        %s353 = sand.u32 %s108, 1
        %s354 = smul.addr %s353, 4096
        %s355 = scalar_lea.vmem [#allocation9], %s354
        // Predicated region
        $region61: #{tpu_custom_call.1} parent=47 // pred_check
          %p356 = pneg %p121
        $region62: #{tpu_custom_call.1} parent=47 // pred_check_branch
          %358 = sbr.rel (%p356) target = $region64
        $region63: #{tpu_custom_call.1} parent=47 // pred_region
          %359 = dma.done %s352, 65536
        $region64: #{tpu_custom_call.1} parent=47 // pred_fallthru
          _
        // Predicated region
        $region65: #{tpu_custom_call.1} parent=47 // pred_check
          %p360 = pneg %p142
        $region66: #{tpu_custom_call.1} parent=47 // pred_check_branch
          %362 = sbr.rel (%p360) target = $region68
        $region67: #{tpu_custom_call.1} parent=47 // pred_region
          %363 = dma.done [#allocation10], 128
        $region68: #{tpu_custom_call.1} parent=47 // pred_fallthru
          _
        // Predicated region
        $region69: #{tpu_custom_call.1} parent=47 // pred_check
          %p364 = pneg %p163
        $region70: #{tpu_custom_call.1} parent=47 // pred_check_branch
          %366 = sbr.rel (%p364) target = $region72
        $region71: #{tpu_custom_call.1} parent=47 // pred_region
          %367 = dma.done [#allocation13], 128
        $region72: #{tpu_custom_call.1} parent=47 // pred_fallthru
          _
        %p368 = pneg %p43
        %p369 = pneg %p40
        %s370 = sand.u32 %s27, 1
        %s371 = scalar_lea.sflag [#allocation7], %s370
        %s372 = sand.u32 %s56, 1
        %s373 = smul.addr %s372, 256
        %s374 = scalar_lea.vmem [#allocation6], %s373
        %p375 = pneg %p69
        %p376 = pneg %p66
        %s377 = sand.u32 %s27, 1
        %s378 = scalar_lea.sflag [#allocation7], %s377
        %s379 = sand.u32 %s82, 1
        %s380 = smul.addr %s379, 8
        %s381 = scalar_lea.vmem [#allocation8], %s380
        %p382 = pneg %p95
        %p383 = pneg %p92
        %s384 = sand.u32 %s27, 1
        %s385 = scalar_lea.sflag [#allocation10], %s384
        %s386 = sand.u32 %s108, 1
        %s387 = smul.addr %s386, 4096
        %s388 = scalar_lea.vmem [#allocation9], %s387
        %p389 = pneg %p121
        %p390 = pneg %p118
        %p391 = pneg %p142
        %p392 = pneg %p139
        %p393 = pneg %p163
        %p394 = pneg %p160
        %p395 = pneg %p184
        %p396 = pneg %p181
        %p397 = pneg %p205
        %p398 = pneg %p202
        %s399 = smul.u32 8, %s27
        %s400 = smul.u32 8, %s27
        %s401 = smul.u32 128, %s27
        %p403 = scmp.eq.s32.totalorder %s27, 0
        // Predicated region
        $region73: #{tpu_custom_call.1} parent=47 // pred_check
          %p404 = pneg %p403
        $region74: #{tpu_custom_call.1} parent=47 // pred_check_branch
          %406 = sbr.rel (%p404) target = $region76
        $region75: #{tpu_custom_call.1} parent=47 // pred_region
          %407 = vst [vmem:[#allocation2] sm:$0xff] 0.0
          %408 = vst [vmem:[#allocation2 + $0x8] sm:$0xff] 0.0
          %409 = vst [vmem:[#allocation2 + $0x10] sm:$0xff] 0.0
          %410 = vst [vmem:[#allocation2 + $0x18] sm:$0xff] 0.0
          %411 = vst [vmem:[#allocation2 + $0x20] sm:$0xff] 0.0
          %412 = vst [vmem:[#allocation2 + $0x28] sm:$0xff] 0.0
          %413 = vst [vmem:[#allocation2 + $0x30] sm:$0xff] 0.0
          %414 = vst [vmem:[#allocation2 + $0x38] sm:$0xff] 0.0
        $region76: #{tpu_custom_call.1} parent=47 // pred_fallthru
          _
        %v415 = vld [vmem:[#allocation4] sm:$0xf]
        %v416 = vld [vmem:[%s337] sm:$0xff]
        %v417 = vld [vmem:[%s337 + $0x8] sm:$0xff]
        %v418 = vld [vmem:[%s337 + $0x10] sm:$0xff]
        %v419 = vld [vmem:[%s337 + $0x18] sm:$0xff]
        %v420 = vld [vmem:[%s337 + $0x20] sm:$0xff]
        %v421 = vld [vmem:[%s337 + $0x28] sm:$0xff]
        %v422 = vld [vmem:[%s337 + $0x30] sm:$0xff]
        %v423 = vld [vmem:[%s337 + $0x38] sm:$0xff]
        %v424 = vld [vmem:[%s337 + $0x40] sm:$0xff]
        %v425 = vld [vmem:[%s337 + $0x48] sm:$0xff]
        %v426 = vld [vmem:[%s337 + $0x50] sm:$0xff]
        %v427 = vld [vmem:[%s337 + $0x58] sm:$0xff]
        %v428 = vld [vmem:[%s337 + $0x60] sm:$0xff]
        %v429 = vld [vmem:[%s337 + $0x68] sm:$0xff]
        %v430 = vld [vmem:[%s337 + $0x70] sm:$0xff]
        %v431 = vld [vmem:[%s337 + $0x78] sm:$0xff]
        %v432 = vld [vmem:[%s337 + $0x80] sm:$0xff]
        %v433 = vld [vmem:[%s337 + $0x88] sm:$0xff]
        %v434 = vld [vmem:[%s337 + $0x90] sm:$0xff]
        %v435 = vld [vmem:[%s337 + $0x98] sm:$0xff]
        %v436 = vld [vmem:[%s337 + $0xa0] sm:$0xff]
        %v437 = vld [vmem:[%s337 + $0xa8] sm:$0xff]
        %v438 = vld [vmem:[%s337 + $0xb0] sm:$0xff]
        %v439 = vld [vmem:[%s337 + $0xb8] sm:$0xff]
        %v440 = vld [vmem:[%s337 + $0xc0] sm:$0xff]
        %v441 = vld [vmem:[%s337 + $0xc8] sm:$0xff]
        %v442 = vld [vmem:[%s337 + $0xd0] sm:$0xff]
        %v443 = vld [vmem:[%s337 + $0xd8] sm:$0xff]
        %v444 = vld [vmem:[%s337 + $0xe0] sm:$0xff]
        %v445 = vld [vmem:[%s337 + $0xe8] sm:$0xff]
        %v446 = vld [vmem:[%s337 + $0xf0] sm:$0xff]
        %v447 = vld [vmem:[%s337 + $0xf8] sm:$0xff]
        %v448 = vld [vmem:[%s346] sm:$0xff]
        %v450 = vlaneseq
        %v451 = vshrl.u32 %v450, 7
        %v452 = vsub.s32 0, %v451
        %v453 = vrot.slane %v448, %v452
        %v454 = vlaneseq
        %v455 = vshrl.u32 %v454, 7
        %v456 = vsub.s32 1, %v455
        %v457 = vrot.slane %v448, %v456
        %v458 = vlaneseq
        %v459 = vshrl.u32 %v458, 7
        %v460 = vsub.s32 2, %v459
        %v461 = vrot.slane %v448, %v460
        %v462 = vlaneseq
        %v463 = vshrl.u32 %v462, 7
        %v464 = vsub.s32 3, %v463
        %v465 = vrot.slane %v448, %v464
        %v466 = vlaneseq
        %v467 = vshrl.u32 %v466, 7
        %v468 = vsub.s32 4, %v467
        %v469 = vrot.slane %v448, %v468
        %v470 = vlaneseq
        %v471 = vshrl.u32 %v470, 7
        %v472 = vsub.s32 5, %v471
        %v473 = vrot.slane %v448, %v472
        %v474 = vlaneseq
        %v475 = vshrl.u32 %v474, 7
        %v476 = vsub.s32 6, %v475
        %v477 = vrot.slane %v448, %v476
        %v478 = vlaneseq
        %v479 = vshrl.u32 %v478, 7
        %v480 = vsub.s32 7, %v479
        %v481 = vrot.slane %v448, %v480
        %v522 = vunpack.c.l.b16 %v416
        %v523 = vunpack.c.h.b16 %v416
        %v524 = vunpack.c.l.b16 %v417
        %v525 = vunpack.c.h.b16 %v417
        %v526 = vunpack.c.l.b16 %v418
        %v527 = vunpack.c.h.b16 %v418
        %v528 = vunpack.c.l.b16 %v419
        %v529 = vunpack.c.h.b16 %v419
        %v530 = vunpack.c.l.b16 %v420
        %v531 = vunpack.c.h.b16 %v420
        %v532 = vunpack.c.l.b16 %v421
        %v533 = vunpack.c.h.b16 %v421
        %v534 = vunpack.c.l.b16 %v422
        %v535 = vunpack.c.h.b16 %v422
        %v536 = vunpack.c.l.b16 %v423
        %v537 = vunpack.c.h.b16 %v423
        %v538 = vunpack.c.l.b16 %v424
        %v539 = vunpack.c.h.b16 %v424
        %v540 = vunpack.c.l.b16 %v425
        %v541 = vunpack.c.h.b16 %v425
        %v542 = vunpack.c.l.b16 %v426
        %v543 = vunpack.c.h.b16 %v426
        %v544 = vunpack.c.l.b16 %v427
        %v545 = vunpack.c.h.b16 %v427
        %v546 = vunpack.c.l.b16 %v428
        %v547 = vunpack.c.h.b16 %v428
        %v548 = vunpack.c.l.b16 %v429
        %v549 = vunpack.c.h.b16 %v429
        %v550 = vunpack.c.l.b16 %v430
        %v551 = vunpack.c.h.b16 %v430
        %v552 = vunpack.c.l.b16 %v431
        %v553 = vunpack.c.h.b16 %v431
        %v554 = vunpack.c.l.b16 %v432
        %v555 = vunpack.c.h.b16 %v432
        %v556 = vunpack.c.l.b16 %v433
        %v557 = vunpack.c.h.b16 %v433
        %v558 = vunpack.c.l.b16 %v434
        %v559 = vunpack.c.h.b16 %v434
        %v560 = vunpack.c.l.b16 %v435
        %v561 = vunpack.c.h.b16 %v435
        %v562 = vunpack.c.l.b16 %v436
        %v563 = vunpack.c.h.b16 %v436
        %v564 = vunpack.c.l.b16 %v437
        %v565 = vunpack.c.h.b16 %v437
        %v566 = vunpack.c.l.b16 %v438
        %v567 = vunpack.c.h.b16 %v438
        %v568 = vunpack.c.l.b16 %v439
        %v569 = vunpack.c.h.b16 %v439
        %v570 = vunpack.c.l.b16 %v440
        %v571 = vunpack.c.h.b16 %v440
        %v572 = vunpack.c.l.b16 %v441
        %v573 = vunpack.c.h.b16 %v441
        %v574 = vunpack.c.l.b16 %v442
        %v575 = vunpack.c.h.b16 %v442
        %v576 = vunpack.c.l.b16 %v443
        %v577 = vunpack.c.h.b16 %v443
        %v578 = vunpack.c.l.b16 %v444
        %v579 = vunpack.c.h.b16 %v444
        %v580 = vunpack.c.l.b16 %v445
        %v581 = vunpack.c.h.b16 %v445
        %v582 = vunpack.c.l.b16 %v446
        %v583 = vunpack.c.h.b16 %v446
        %v584 = vunpack.c.l.b16 %v447
        %v585 = vunpack.c.h.b16 %v447
        %v586 = vpack.c.b16 %v530, %v522
        %v587 = vpack.c.b16 %v531, %v523
        %v588 = vpack.c.b16 %v532, %v524
        %v589 = vpack.c.b16 %v533, %v525
        %v590 = vpack.c.b16 %v534, %v526
        %v591 = vpack.c.b16 %v535, %v527
        %v592 = vpack.c.b16 %v536, %v528
        %v593 = vpack.c.b16 %v537, %v529
        %v594 = vpack.c.b16 %v546, %v538
        %v595 = vpack.c.b16 %v547, %v539
        %v596 = vpack.c.b16 %v548, %v540
        %v597 = vpack.c.b16 %v549, %v541
        %v598 = vpack.c.b16 %v550, %v542
        %v599 = vpack.c.b16 %v551, %v543
        %v600 = vpack.c.b16 %v552, %v544
        %v601 = vpack.c.b16 %v553, %v545
        %v602 = vpack.c.b16 %v562, %v554
        %v603 = vpack.c.b16 %v563, %v555
        %v604 = vpack.c.b16 %v564, %v556
        %v605 = vpack.c.b16 %v565, %v557
        %v606 = vpack.c.b16 %v566, %v558
        %v607 = vpack.c.b16 %v567, %v559
        %v608 = vpack.c.b16 %v568, %v560
        %v609 = vpack.c.b16 %v569, %v561
        %v610 = vpack.c.b16 %v578, %v570
        %v611 = vpack.c.b16 %v579, %v571
        %v612 = vpack.c.b16 %v580, %v572
        %v613 = vpack.c.b16 %v581, %v573
        %v614 = vpack.c.b16 %v582, %v574
        %v615 = vpack.c.b16 %v583, %v575
        %v616 = vpack.c.b16 %v584, %v576
        %v617 = vpack.c.b16 %v585, %v577
        %vm650 = vcmask 523264
        %v652 = vsel %vm650, %v415, 0
        %654 = vmatprep.subr.bf16.mxu0 %v587
        %655 = vmatpush1.bf16.msra.mxu0 %v586
        %656 = vmatprep.subr.bf16.mxu0 %v595
        %657 = vmatpush1.bf16.msra.mxu0 %v594
        %658 = vmatprep.subr.bf16.mxu0 %v603
        %659 = vmatpush1.bf16.msra.mxu0 %v602
        %660 = vmatprep.subr.bf16.mxu0 %v611
        %661 = vmatpush1.bf16.msra.mxu0 %v610
        %662 = vmatprep.subr.bf16.mxu0 0
        %663 = vmatpush1.bf16.msra.mxu0 0
        %664 = vmatprep.subr.bf16.mxu0 0
        %665 = vmatpush1.bf16.msra.mxu0 0
        %666 = vmatprep.subr.bf16.mxu0 0
        %667 = vmatpush1.bf16.msra.mxu0 0
        %668 = vmatprep.subr.bf16.mxu0 0
        %669 = vmatpush1.bf16.msra.mxu0 0
        %670 = vmatprep.subr.bf16.mxu0 0
        %671 = vmatpush1.bf16.msra.mxu0 0
        %672 = vmatprep.subr.bf16.mxu0 0
        %673 = vmatpush1.bf16.msra.mxu0 0
        %674 = vmatprep.subr.bf16.mxu0 0
        %675 = vmatpush1.bf16.msra.mxu0 0
        %676 = vmatprep.subr.bf16.mxu0 0
        %677 = vmatpush1.bf16.msra.mxu0 0
        %678 = vmatprep.subr.bf16.mxu0 0
        %679 = vmatpush1.bf16.msra.mxu0 0
        %680 = vmatprep.subr.bf16.mxu0 0
        %681 = vmatpush1.bf16.msra.mxu0 0
        %682 = vmatprep.subr.bf16.mxu0 0
        %683 = vmatpush1.bf16.msra.mxu0 0
        %684 = vmatprep.subr.bf16.mxu0 0
        %685 = vmatpush1.bf16.msra.mxu0 0
        %686 = vmatprep.mubr.bf16.mxu0 0
        %687 = vmatmul.mubr.bf16.gmra.mrb[0].mxu0 %v652
        %v688 = vpop.f32.mrb[0].mxu0
        %v689 = vadd.f32 %v453, %v688
        %v690 = vpop.f32.mrb[0].mxu0
        %v691 = vadd.f32 %v457, %v690
        %v692 = vpop.f32.mrb[0].mxu0
        %v693 = vpop.f32.mrb[0].mxu0
        %694 = vdwg.mxu0
        %695 = vmatprep.subr.bf16.mxu0 %v589
        %696 = vmatpush1.bf16.msra.mxu0 %v588
        %697 = vmatprep.subr.bf16.mxu0 %v597
        %698 = vmatpush1.bf16.msra.mxu0 %v596
        %699 = vmatprep.subr.bf16.mxu0 %v605
        %700 = vmatpush1.bf16.msra.mxu0 %v604
        %701 = vmatprep.subr.bf16.mxu0 %v613
        %702 = vmatpush1.bf16.msra.mxu0 %v612
        %703 = vmatprep.subr.bf16.mxu0 0
        %704 = vmatpush1.bf16.msra.mxu0 0
        %705 = vmatprep.subr.bf16.mxu0 0
        %706 = vmatpush1.bf16.msra.mxu0 0
        %707 = vmatprep.subr.bf16.mxu0 0
        %708 = vmatpush1.bf16.msra.mxu0 0
        %709 = vmatprep.subr.bf16.mxu0 0
        %710 = vmatpush1.bf16.msra.mxu0 0
        %711 = vmatprep.subr.bf16.mxu0 0
        %712 = vmatpush1.bf16.msra.mxu0 0
        %713 = vmatprep.subr.bf16.mxu0 0
        %714 = vmatpush1.bf16.msra.mxu0 0
        %715 = vmatprep.subr.bf16.mxu0 0
        %716 = vmatpush1.bf16.msra.mxu0 0
        %717 = vmatprep.subr.bf16.mxu0 0
        %718 = vmatpush1.bf16.msra.mxu0 0
        %719 = vmatprep.subr.bf16.mxu0 0
        %720 = vmatpush1.bf16.msra.mxu0 0
        %721 = vmatprep.subr.bf16.mxu0 0
        %722 = vmatpush1.bf16.msra.mxu0 0
        %723 = vmatprep.subr.bf16.mxu0 0
        %724 = vmatpush1.bf16.msra.mxu0 0
        %725 = vmatprep.subr.bf16.mxu0 0
        %726 = vmatpush1.bf16.msra.mxu0 0
        %727 = vmatprep.mubr.bf16.mxu0 0
        %728 = vmatmul.mubr.bf16.gmra.mrb[0].mxu0 %v652
        %v729 = vpop.f32.mrb[0].mxu0
        %v730 = vadd.f32 %v461, %v729
        %v731 = vpop.f32.mrb[0].mxu0
        %v732 = vadd.f32 %v465, %v731
        %v733 = vpop.f32.mrb[0].mxu0
        %v734 = vpop.f32.mrb[0].mxu0
        %735 = vdwg.mxu0
        %736 = vmatprep.subr.bf16.mxu0 %v591
        %737 = vmatpush1.bf16.msra.mxu0 %v590
        %738 = vmatprep.subr.bf16.mxu0 %v599
        %739 = vmatpush1.bf16.msra.mxu0 %v598
        %740 = vmatprep.subr.bf16.mxu0 %v607
        %741 = vmatpush1.bf16.msra.mxu0 %v606
        %742 = vmatprep.subr.bf16.mxu0 %v615
        %743 = vmatpush1.bf16.msra.mxu0 %v614
        %744 = vmatprep.subr.bf16.mxu0 0
        %745 = vmatpush1.bf16.msra.mxu0 0
        %746 = vmatprep.subr.bf16.mxu0 0
        %747 = vmatpush1.bf16.msra.mxu0 0
        %748 = vmatprep.subr.bf16.mxu0 0
        %749 = vmatpush1.bf16.msra.mxu0 0
        %750 = vmatprep.subr.bf16.mxu0 0
        %751 = vmatpush1.bf16.msra.mxu0 0
        %752 = vmatprep.subr.bf16.mxu0 0
        %753 = vmatpush1.bf16.msra.mxu0 0
        %754 = vmatprep.subr.bf16.mxu0 0
        %755 = vmatpush1.bf16.msra.mxu0 0
        %756 = vmatprep.subr.bf16.mxu0 0
        %757 = vmatpush1.bf16.msra.mxu0 0
        %758 = vmatprep.subr.bf16.mxu0 0
        %759 = vmatpush1.bf16.msra.mxu0 0
        %760 = vmatprep.subr.bf16.mxu0 0
        %761 = vmatpush1.bf16.msra.mxu0 0
        %762 = vmatprep.subr.bf16.mxu0 0
        %763 = vmatpush1.bf16.msra.mxu0 0
        %764 = vmatprep.subr.bf16.mxu0 0
        %765 = vmatpush1.bf16.msra.mxu0 0
        %766 = vmatprep.subr.bf16.mxu0 0
        %767 = vmatpush1.bf16.msra.mxu0 0
        %768 = vmatprep.mubr.bf16.mxu0 0
        %769 = vmatmul.mubr.bf16.gmra.mrb[0].mxu0 %v652
        %v770 = vpop.f32.mrb[0].mxu0
        %v771 = vadd.f32 %v469, %v770
        %v772 = vpop.f32.mrb[0].mxu0
        %v773 = vadd.f32 %v473, %v772
        %v774 = vpop.f32.mrb[0].mxu0
        %v775 = vpop.f32.mrb[0].mxu0
        %776 = vdwg.mxu0
        %777 = vmatprep.subr.bf16.mxu0 %v593
        %778 = vmatpush1.bf16.msra.mxu0 %v592
        %779 = vmatprep.subr.bf16.mxu0 %v601
        %780 = vmatpush1.bf16.msra.mxu0 %v600
        %781 = vmatprep.subr.bf16.mxu0 %v609
        %782 = vmatpush1.bf16.msra.mxu0 %v608
        %783 = vmatprep.subr.bf16.mxu0 %v617
        %784 = vmatpush1.bf16.msra.mxu0 %v616
        %785 = vmatprep.subr.bf16.mxu0 0
        %786 = vmatpush1.bf16.msra.mxu0 0
        %787 = vmatprep.subr.bf16.mxu0 0
        %788 = vmatpush1.bf16.msra.mxu0 0
        %789 = vmatprep.subr.bf16.mxu0 0
        %790 = vmatpush1.bf16.msra.mxu0 0
        %791 = vmatprep.subr.bf16.mxu0 0
        %792 = vmatpush1.bf16.msra.mxu0 0
        %793 = vmatprep.subr.bf16.mxu0 0
        %794 = vmatpush1.bf16.msra.mxu0 0
        %795 = vmatprep.subr.bf16.mxu0 0
        %796 = vmatpush1.bf16.msra.mxu0 0
        %797 = vmatprep.subr.bf16.mxu0 0
        %798 = vmatpush1.bf16.msra.mxu0 0
        %799 = vmatprep.subr.bf16.mxu0 0
        %800 = vmatpush1.bf16.msra.mxu0 0
        %801 = vmatprep.subr.bf16.mxu0 0
        %802 = vmatpush1.bf16.msra.mxu0 0
        %803 = vmatprep.subr.bf16.mxu0 0
        %804 = vmatpush1.bf16.msra.mxu0 0
        %805 = vmatprep.subr.bf16.mxu0 0
        %806 = vmatpush1.bf16.msra.mxu0 0
        %807 = vmatprep.subr.bf16.mxu0 0
        %808 = vmatpush1.bf16.msra.mxu0 0
        %809 = vmatprep.mubr.bf16.mxu0 0
        %810 = vmatmul.mubr.bf16.gmra.mrb[0].mxu0 %v652
        %v811 = vpop.f32.mrb[0].mxu0
        %v812 = vadd.f32 %v477, %v811
        %v813 = vpop.f32.mrb[0].mxu0
        %v814 = vadd.f32 %v481, %v813
        %v815 = vpop.f32.mrb[0].mxu0
        %v816 = vpop.f32.mrb[0].mxu0
        %817 = vdwg.mxu0
        %v818 = vmax.f32 %v689, 0.0
        %v819 = vmax.f32 %v691, 0.0
        %v820 = vmax.f32 %v730, 0.0
        %v821 = vmax.f32 %v732, 0.0
        %v822 = vmax.f32 %v771, 0.0
        %v823 = vmax.f32 %v773, 0.0
        %v824 = vmax.f32 %v812, 0.0
        %v825 = vmax.f32 %v814, 0.0
        %v826 = vld [vmem:[#allocation2] sm:$0xff]
        %v827 = vld [vmem:[#allocation2 + $0x8] sm:$0xff]
        %v828 = vld [vmem:[#allocation2 + $0x10] sm:$0xff]
        %v829 = vld [vmem:[#allocation2 + $0x18] sm:$0xff]
        %v830 = vld [vmem:[#allocation2 + $0x20] sm:$0xff]
        %v831 = vld [vmem:[#allocation2 + $0x28] sm:$0xff]
        %v832 = vld [vmem:[#allocation2 + $0x30] sm:$0xff]
        %v833 = vld [vmem:[#allocation2 + $0x38] sm:$0xff]
        %v834 = vpack.c.bf16 %v818, %v818
        %v835 = vpack.c.bf16 %v819, %v819
        %v836 = vpack.c.bf16 %v820, %v820
        %v837 = vpack.c.bf16 %v821, %v821
        %v838 = vpack.c.bf16 %v822, %v822
        %v839 = vpack.c.bf16 %v823, %v823
        %v840 = vpack.c.bf16 %v824, %v824
        %v841 = vpack.c.bf16 %v825, %v825
        %v842 = vld [vmem:[%s355] sm:$0xff]
        %v843 = vld [vmem:[%s355 + $0x8] sm:$0xff]
        %v844 = vld [vmem:[%s355 + $0x10] sm:$0xff]
        %v845 = vld [vmem:[%s355 + $0x18] sm:$0xff]
        %v846 = vld [vmem:[%s355 + $0x20] sm:$0xff]
        %v847 = vld [vmem:[%s355 + $0x28] sm:$0xff]
        %v848 = vld [vmem:[%s355 + $0x30] sm:$0xff]
        %v849 = vld [vmem:[%s355 + $0x38] sm:$0xff]
        %v850 = vld [vmem:[%s355 + $0x40] sm:$0xff]
        %v851 = vld [vmem:[%s355 + $0x48] sm:$0xff]
        %v852 = vld [vmem:[%s355 + $0x50] sm:$0xff]
        %v853 = vld [vmem:[%s355 + $0x58] sm:$0xff]
        %v854 = vld [vmem:[%s355 + $0x60] sm:$0xff]
        %v855 = vld [vmem:[%s355 + $0x68] sm:$0xff]
        %v856 = vld [vmem:[%s355 + $0x70] sm:$0xff]
        %v857 = vld [vmem:[%s355 + $0x78] sm:$0xff]
        %v858 = vld [vmem:[%s355 + $0x80] sm:$0xff]
        %v859 = vld [vmem:[%s355 + $0x88] sm:$0xff]
        %v860 = vld [vmem:[%s355 + $0x90] sm:$0xff]
        %v861 = vld [vmem:[%s355 + $0x98] sm:$0xff]
        %v862 = vld [vmem:[%s355 + $0xa0] sm:$0xff]
        %v863 = vld [vmem:[%s355 + $0xa8] sm:$0xff]
        %v864 = vld [vmem:[%s355 + $0xb0] sm:$0xff]
        %v865 = vld [vmem:[%s355 + $0xb8] sm:$0xff]
        %v866 = vld [vmem:[%s355 + $0xc0] sm:$0xff]
        %v867 = vld [vmem:[%s355 + $0xc8] sm:$0xff]
        %v868 = vld [vmem:[%s355 + $0xd0] sm:$0xff]
        %v869 = vld [vmem:[%s355 + $0xd8] sm:$0xff]
        %v870 = vld [vmem:[%s355 + $0xe0] sm:$0xff]
        %v871 = vld [vmem:[%s355 + $0xe8] sm:$0xff]
        %v872 = vld [vmem:[%s355 + $0xf0] sm:$0xff]
        %v873 = vld [vmem:[%s355 + $0xf8] sm:$0xff]
        %v874 = vld [vmem:[%s355 + $0x100] sm:$0xff]
        %v875 = vld [vmem:[%s355 + $0x108] sm:$0xff]
        %v876 = vld [vmem:[%s355 + $0x110] sm:$0xff]
        %v877 = vld [vmem:[%s355 + $0x118] sm:$0xff]
        %v878 = vld [vmem:[%s355 + $0x120] sm:$0xff]
        %v879 = vld [vmem:[%s355 + $0x128] sm:$0xff]
        %v880 = vld [vmem:[%s355 + $0x130] sm:$0xff]
        %v881 = vld [vmem:[%s355 + $0x138] sm:$0xff]
        %v882 = vld [vmem:[%s355 + $0x140] sm:$0xff]
        %v883 = vld [vmem:[%s355 + $0x148] sm:$0xff]
        %v884 = vld [vmem:[%s355 + $0x150] sm:$0xff]
        %v885 = vld [vmem:[%s355 + $0x158] sm:$0xff]
        %v886 = vld [vmem:[%s355 + $0x160] sm:$0xff]
        %v887 = vld [vmem:[%s355 + $0x168] sm:$0xff]
        %v888 = vld [vmem:[%s355 + $0x170] sm:$0xff]
        %v889 = vld [vmem:[%s355 + $0x178] sm:$0xff]
        %v890 = vld [vmem:[%s355 + $0x180] sm:$0xff]
        %v891 = vld [vmem:[%s355 + $0x188] sm:$0xff]
        %v892 = vld [vmem:[%s355 + $0x190] sm:$0xff]
        %v893 = vld [vmem:[%s355 + $0x198] sm:$0xff]
        %v894 = vld [vmem:[%s355 + $0x1a0] sm:$0xff]
        %v895 = vld [vmem:[%s355 + $0x1a8] sm:$0xff]
        %v896 = vld [vmem:[%s355 + $0x1b0] sm:$0xff]
        %v897 = vld [vmem:[%s355 + $0x1b8] sm:$0xff]
        %v898 = vld [vmem:[%s355 + $0x1c0] sm:$0xff]
        %v899 = vld [vmem:[%s355 + $0x1c8] sm:$0xff]
        %v900 = vld [vmem:[%s355 + $0x1d0] sm:$0xff]
        %v901 = vld [vmem:[%s355 + $0x1d8] sm:$0xff]
        %v902 = vld [vmem:[%s355 + $0x1e0] sm:$0xff]
        %v903 = vld [vmem:[%s355 + $0x1e8] sm:$0xff]
        %v904 = vld [vmem:[%s355 + $0x1f0] sm:$0xff]
        %v905 = vld [vmem:[%s355 + $0x1f8] sm:$0xff]
        %v906 = vld [vmem:[%s355 + $0x200] sm:$0xff]
        %v907 = vld [vmem:[%s355 + $0x208] sm:$0xff]
        %v908 = vld [vmem:[%s355 + $0x210] sm:$0xff]
        %v909 = vld [vmem:[%s355 + $0x218] sm:$0xff]
        %v910 = vld [vmem:[%s355 + $0x220] sm:$0xff]
        %v911 = vld [vmem:[%s355 + $0x228] sm:$0xff]
        %v912 = vld [vmem:[%s355 + $0x230] sm:$0xff]
        %v913 = vld [vmem:[%s355 + $0x238] sm:$0xff]
        %v914 = vld [vmem:[%s355 + $0x240] sm:$0xff]
        %v915 = vld [vmem:[%s355 + $0x248] sm:$0xff]
        %v916 = vld [vmem:[%s355 + $0x250] sm:$0xff]
        %v917 = vld [vmem:[%s355 + $0x258] sm:$0xff]
        %v918 = vld [vmem:[%s355 + $0x260] sm:$0xff]
        %v919 = vld [vmem:[%s355 + $0x268] sm:$0xff]
        %v920 = vld [vmem:[%s355 + $0x270] sm:$0xff]
        %v921 = vld [vmem:[%s355 + $0x278] sm:$0xff]
        %v922 = vld [vmem:[%s355 + $0x280] sm:$0xff]
        %v923 = vld [vmem:[%s355 + $0x288] sm:$0xff]
        %v924 = vld [vmem:[%s355 + $0x290] sm:$0xff]
        %v925 = vld [vmem:[%s355 + $0x298] sm:$0xff]
        %v926 = vld [vmem:[%s355 + $0x2a0] sm:$0xff]
        %v927 = vld [vmem:[%s355 + $0x2a8] sm:$0xff]
        %v928 = vld [vmem:[%s355 + $0x2b0] sm:$0xff]
        %v929 = vld [vmem:[%s355 + $0x2b8] sm:$0xff]
        %v930 = vld [vmem:[%s355 + $0x2c0] sm:$0xff]
        %v931 = vld [vmem:[%s355 + $0x2c8] sm:$0xff]
        %v932 = vld [vmem:[%s355 + $0x2d0] sm:$0xff]
        %v933 = vld [vmem:[%s355 + $0x2d8] sm:$0xff]
        %v934 = vld [vmem:[%s355 + $0x2e0] sm:$0xff]
        %v935 = vld [vmem:[%s355 + $0x2e8] sm:$0xff]
        %v936 = vld [vmem:[%s355 + $0x2f0] sm:$0xff]
        %v937 = vld [vmem:[%s355 + $0x2f8] sm:$0xff]
        %v938 = vld [vmem:[%s355 + $0x300] sm:$0xff]
        %v939 = vld [vmem:[%s355 + $0x308] sm:$0xff]
        %v940 = vld [vmem:[%s355 + $0x310] sm:$0xff]
        %v941 = vld [vmem:[%s355 + $0x318] sm:$0xff]
        %v942 = vld [vmem:[%s355 + $0x320] sm:$0xff]
        %v943 = vld [vmem:[%s355 + $0x328] sm:$0xff]
        %v944 = vld [vmem:[%s355 + $0x330] sm:$0xff]
        %v945 = vld [vmem:[%s355 + $0x338] sm:$0xff]
        %v946 = vld [vmem:[%s355 + $0x340] sm:$0xff]
        %v947 = vld [vmem:[%s355 + $0x348] sm:$0xff]
        %v948 = vld [vmem:[%s355 + $0x350] sm:$0xff]
        %v949 = vld [vmem:[%s355 + $0x358] sm:$0xff]
        %v950 = vld [vmem:[%s355 + $0x360] sm:$0xff]
        %v951 = vld [vmem:[%s355 + $0x368] sm:$0xff]
        %v952 = vld [vmem:[%s355 + $0x370] sm:$0xff]
        %v953 = vld [vmem:[%s355 + $0x378] sm:$0xff]
        %v954 = vld [vmem:[%s355 + $0x380] sm:$0xff]
        %v955 = vld [vmem:[%s355 + $0x388] sm:$0xff]
        %v956 = vld [vmem:[%s355 + $0x390] sm:$0xff]
        %v957 = vld [vmem:[%s355 + $0x398] sm:$0xff]
        %v958 = vld [vmem:[%s355 + $0x3a0] sm:$0xff]
        %v959 = vld [vmem:[%s355 + $0x3a8] sm:$0xff]
        %v960 = vld [vmem:[%s355 + $0x3b0] sm:$0xff]
        %v961 = vld [vmem:[%s355 + $0x3b8] sm:$0xff]
        %v962 = vld [vmem:[%s355 + $0x3c0] sm:$0xff]
        %v963 = vld [vmem:[%s355 + $0x3c8] sm:$0xff]
        %v964 = vld [vmem:[%s355 + $0x3d0] sm:$0xff]
        %v965 = vld [vmem:[%s355 + $0x3d8] sm:$0xff]
        %v966 = vld [vmem:[%s355 + $0x3e0] sm:$0xff]
        %v967 = vld [vmem:[%s355 + $0x3e8] sm:$0xff]
        %v968 = vld [vmem:[%s355 + $0x3f0] sm:$0xff]
        %v969 = vld [vmem:[%s355 + $0x3f8] sm:$0xff]
        %v970 = vld [vmem:[%s355 + $0x400] sm:$0xff]
        %v971 = vld [vmem:[%s355 + $0x408] sm:$0xff]
        %v972 = vld [vmem:[%s355 + $0x410] sm:$0xff]
        %v973 = vld [vmem:[%s355 + $0x418] sm:$0xff]
        %v974 = vld [vmem:[%s355 + $0x420] sm:$0xff]
        %v975 = vld [vmem:[%s355 + $0x428] sm:$0xff]
        %v976 = vld [vmem:[%s355 + $0x430] sm:$0xff]
        %v977 = vld [vmem:[%s355 + $0x438] sm:$0xff]
        %v978 = vld [vmem:[%s355 + $0x440] sm:$0xff]
        %v979 = vld [vmem:[%s355 + $0x448] sm:$0xff]
        %v980 = vld [vmem:[%s355 + $0x450] sm:$0xff]
        %v981 = vld [vmem:[%s355 + $0x458] sm:$0xff]
        %v982 = vld [vmem:[%s355 + $0x460] sm:$0xff]
        %v983 = vld [vmem:[%s355 + $0x468] sm:$0xff]
        %v984 = vld [vmem:[%s355 + $0x470] sm:$0xff]
        %v985 = vld [vmem:[%s355 + $0x478] sm:$0xff]
        %v986 = vld [vmem:[%s355 + $0x480] sm:$0xff]
        %v987 = vld [vmem:[%s355 + $0x488] sm:$0xff]
        %v988 = vld [vmem:[%s355 + $0x490] sm:$0xff]
        %v989 = vld [vmem:[%s355 + $0x498] sm:$0xff]
        %v990 = vld [vmem:[%s355 + $0x4a0] sm:$0xff]
        %v991 = vld [vmem:[%s355 + $0x4a8] sm:$0xff]
        %v992 = vld [vmem:[%s355 + $0x4b0] sm:$0xff]
        %v993 = vld [vmem:[%s355 + $0x4b8] sm:$0xff]
        %v994 = vld [vmem:[%s355 + $0x4c0] sm:$0xff]
        %v995 = vld [vmem:[%s355 + $0x4c8] sm:$0xff]
        %v996 = vld [vmem:[%s355 + $0x4d0] sm:$0xff]
        %v997 = vld [vmem:[%s355 + $0x4d8] sm:$0xff]
        %v998 = vld [vmem:[%s355 + $0x4e0] sm:$0xff]
        %v999 = vld [vmem:[%s355 + $0x4e8] sm:$0xff]
        %v1000 = vld [vmem:[%s355 + $0x4f0] sm:$0xff]
        %v1001 = vld [vmem:[%s355 + $0x4f8] sm:$0xff]
        %v1002 = vld [vmem:[%s355 + $0x500] sm:$0xff]
        %v1003 = vld [vmem:[%s355 + $0x508] sm:$0xff]
        %v1004 = vld [vmem:[%s355 + $0x510] sm:$0xff]
        %v1005 = vld [vmem:[%s355 + $0x518] sm:$0xff]
        %v1006 = vld [vmem:[%s355 + $0x520] sm:$0xff]
        %v1007 = vld [vmem:[%s355 + $0x528] sm:$0xff]
        %v1008 = vld [vmem:[%s355 + $0x530] sm:$0xff]
        %v1009 = vld [vmem:[%s355 + $0x538] sm:$0xff]
        %v1010 = vld [vmem:[%s355 + $0x540] sm:$0xff]
        %v1011 = vld [vmem:[%s355 + $0x548] sm:$0xff]
        %v1012 = vld [vmem:[%s355 + $0x550] sm:$0xff]
        %v1013 = vld [vmem:[%s355 + $0x558] sm:$0xff]
        %v1014 = vld [vmem:[%s355 + $0x560] sm:$0xff]
        %v1015 = vld [vmem:[%s355 + $0x568] sm:$0xff]
        %v1016 = vld [vmem:[%s355 + $0x570] sm:$0xff]
        %v1017 = vld [vmem:[%s355 + $0x578] sm:$0xff]
        %v1018 = vld [vmem:[%s355 + $0x580] sm:$0xff]
        %v1019 = vld [vmem:[%s355 + $0x588] sm:$0xff]
        %v1020 = vld [vmem:[%s355 + $0x590] sm:$0xff]
        %v1021 = vld [vmem:[%s355 + $0x598] sm:$0xff]
        %v1022 = vld [vmem:[%s355 + $0x5a0] sm:$0xff]
        %v1023 = vld [vmem:[%s355 + $0x5a8] sm:$0xff]
        %v1024 = vld [vmem:[%s355 + $0x5b0] sm:$0xff]
        %v1025 = vld [vmem:[%s355 + $0x5b8] sm:$0xff]
        %v1026 = vld [vmem:[%s355 + $0x5c0] sm:$0xff]
        %v1027 = vld [vmem:[%s355 + $0x5c8] sm:$0xff]
        %v1028 = vld [vmem:[%s355 + $0x5d0] sm:$0xff]
        %v1029 = vld [vmem:[%s355 + $0x5d8] sm:$0xff]
        %v1030 = vld [vmem:[%s355 + $0x5e0] sm:$0xff]
        %v1031 = vld [vmem:[%s355 + $0x5e8] sm:$0xff]
        %v1032 = vld [vmem:[%s355 + $0x5f0] sm:$0xff]
        %v1033 = vld [vmem:[%s355 + $0x5f8] sm:$0xff]
        %v1034 = vld [vmem:[%s355 + $0x600] sm:$0xff]
        %v1035 = vld [vmem:[%s355 + $0x608] sm:$0xff]
        %v1036 = vld [vmem:[%s355 + $0x610] sm:$0xff]
        %v1037 = vld [vmem:[%s355 + $0x618] sm:$0xff]
        %v1038 = vld [vmem:[%s355 + $0x620] sm:$0xff]
        %v1039 = vld [vmem:[%s355 + $0x628] sm:$0xff]
        %v1040 = vld [vmem:[%s355 + $0x630] sm:$0xff]
        %v1041 = vld [vmem:[%s355 + $0x638] sm:$0xff]
        %v1042 = vld [vmem:[%s355 + $0x640] sm:$0xff]
        %v1043 = vld [vmem:[%s355 + $0x648] sm:$0xff]
        %v1044 = vld [vmem:[%s355 + $0x650] sm:$0xff]
        %v1045 = vld [vmem:[%s355 + $0x658] sm:$0xff]
        %v1046 = vld [vmem:[%s355 + $0x660] sm:$0xff]
        %v1047 = vld [vmem:[%s355 + $0x668] sm:$0xff]
        %v1048 = vld [vmem:[%s355 + $0x670] sm:$0xff]
        %v1049 = vld [vmem:[%s355 + $0x678] sm:$0xff]
        %v1050 = vld [vmem:[%s355 + $0x680] sm:$0xff]
        %v1051 = vld [vmem:[%s355 + $0x688] sm:$0xff]
        %v1052 = vld [vmem:[%s355 + $0x690] sm:$0xff]
        %v1053 = vld [vmem:[%s355 + $0x698] sm:$0xff]
        %v1054 = vld [vmem:[%s355 + $0x6a0] sm:$0xff]
        %v1055 = vld [vmem:[%s355 + $0x6a8] sm:$0xff]
        %v1056 = vld [vmem:[%s355 + $0x6b0] sm:$0xff]
        %v1057 = vld [vmem:[%s355 + $0x6b8] sm:$0xff]
        %v1058 = vld [vmem:[%s355 + $0x6c0] sm:$0xff]
        %v1059 = vld [vmem:[%s355 + $0x6c8] sm:$0xff]
        %v1060 = vld [vmem:[%s355 + $0x6d0] sm:$0xff]
        %v1061 = vld [vmem:[%s355 + $0x6d8] sm:$0xff]
        %v1062 = vld [vmem:[%s355 + $0x6e0] sm:$0xff]
        %v1063 = vld [vmem:[%s355 + $0x6e8] sm:$0xff]
        %v1064 = vld [vmem:[%s355 + $0x6f0] sm:$0xff]
        %v1065 = vld [vmem:[%s355 + $0x6f8] sm:$0xff]
        %v1066 = vld [vmem:[%s355 + $0x700] sm:$0xff]
        %v1067 = vld [vmem:[%s355 + $0x708] sm:$0xff]
        %v1068 = vld [vmem:[%s355 + $0x710] sm:$0xff]
        %v1069 = vld [vmem:[%s355 + $0x718] sm:$0xff]
        %v1070 = vld [vmem:[%s355 + $0x720] sm:$0xff]
        %v1071 = vld [vmem:[%s355 + $0x728] sm:$0xff]
        %v1072 = vld [vmem:[%s355 + $0x730] sm:$0xff]
        %v1073 = vld [vmem:[%s355 + $0x738] sm:$0xff]
        %v1074 = vld [vmem:[%s355 + $0x740] sm:$0xff]
        %v1075 = vld [vmem:[%s355 + $0x748] sm:$0xff]
        %v1076 = vld [vmem:[%s355 + $0x750] sm:$0xff]
        %v1077 = vld [vmem:[%s355 + $0x758] sm:$0xff]
        %v1078 = vld [vmem:[%s355 + $0x760] sm:$0xff]
        %v1079 = vld [vmem:[%s355 + $0x768] sm:$0xff]
        %v1080 = vld [vmem:[%s355 + $0x770] sm:$0xff]
        %v1081 = vld [vmem:[%s355 + $0x778] sm:$0xff]
        %v1082 = vld [vmem:[%s355 + $0x780] sm:$0xff]
        %v1083 = vld [vmem:[%s355 + $0x788] sm:$0xff]
        %v1084 = vld [vmem:[%s355 + $0x790] sm:$0xff]
        %v1085 = vld [vmem:[%s355 + $0x798] sm:$0xff]
        %v1086 = vld [vmem:[%s355 + $0x7a0] sm:$0xff]
        %v1087 = vld [vmem:[%s355 + $0x7a8] sm:$0xff]
        %v1088 = vld [vmem:[%s355 + $0x7b0] sm:$0xff]
        %v1089 = vld [vmem:[%s355 + $0x7b8] sm:$0xff]
        %v1090 = vld [vmem:[%s355 + $0x7c0] sm:$0xff]
        %v1091 = vld [vmem:[%s355 + $0x7c8] sm:$0xff]
        %v1092 = vld [vmem:[%s355 + $0x7d0] sm:$0xff]
        %v1093 = vld [vmem:[%s355 + $0x7d8] sm:$0xff]
        %v1094 = vld [vmem:[%s355 + $0x7e0] sm:$0xff]
        %v1095 = vld [vmem:[%s355 + $0x7e8] sm:$0xff]
        %v1096 = vld [vmem:[%s355 + $0x7f0] sm:$0xff]
        %v1097 = vld [vmem:[%s355 + $0x7f8] sm:$0xff]
        %v1098 = vld [vmem:[%s355 + $0x800] sm:$0xff]
        %v1099 = vld [vmem:[%s355 + $0x808] sm:$0xff]
        %v1100 = vld [vmem:[%s355 + $0x810] sm:$0xff]
        %v1101 = vld [vmem:[%s355 + $0x818] sm:$0xff]
        %v1102 = vld [vmem:[%s355 + $0x820] sm:$0xff]
        %v1103 = vld [vmem:[%s355 + $0x828] sm:$0xff]
        %v1104 = vld [vmem:[%s355 + $0x830] sm:$0xff]
        %v1105 = vld [vmem:[%s355 + $0x838] sm:$0xff]
        %v1106 = vld [vmem:[%s355 + $0x840] sm:$0xff]
        %v1107 = vld [vmem:[%s355 + $0x848] sm:$0xff]
        %v1108 = vld [vmem:[%s355 + $0x850] sm:$0xff]
        %v1109 = vld [vmem:[%s355 + $0x858] sm:$0xff]
        %v1110 = vld [vmem:[%s355 + $0x860] sm:$0xff]
        %v1111 = vld [vmem:[%s355 + $0x868] sm:$0xff]
        %v1112 = vld [vmem:[%s355 + $0x870] sm:$0xff]
        %v1113 = vld [vmem:[%s355 + $0x878] sm:$0xff]
        %v1114 = vld [vmem:[%s355 + $0x880] sm:$0xff]
        %v1115 = vld [vmem:[%s355 + $0x888] sm:$0xff]
        %v1116 = vld [vmem:[%s355 + $0x890] sm:$0xff]
        %v1117 = vld [vmem:[%s355 + $0x898] sm:$0xff]
        %v1118 = vld [vmem:[%s355 + $0x8a0] sm:$0xff]
        %v1119 = vld [vmem:[%s355 + $0x8a8] sm:$0xff]
        %v1120 = vld [vmem:[%s355 + $0x8b0] sm:$0xff]
        %v1121 = vld [vmem:[%s355 + $0x8b8] sm:$0xff]
        %v1122 = vld [vmem:[%s355 + $0x8c0] sm:$0xff]
        %v1123 = vld [vmem:[%s355 + $0x8c8] sm:$0xff]
        %v1124 = vld [vmem:[%s355 + $0x8d0] sm:$0xff]
        %v1125 = vld [vmem:[%s355 + $0x8d8] sm:$0xff]
        %v1126 = vld [vmem:[%s355 + $0x8e0] sm:$0xff]
        %v1127 = vld [vmem:[%s355 + $0x8e8] sm:$0xff]
        %v1128 = vld [vmem:[%s355 + $0x8f0] sm:$0xff]
        %v1129 = vld [vmem:[%s355 + $0x8f8] sm:$0xff]
        %v1130 = vld [vmem:[%s355 + $0x900] sm:$0xff]
        %v1131 = vld [vmem:[%s355 + $0x908] sm:$0xff]
        %v1132 = vld [vmem:[%s355 + $0x910] sm:$0xff]
        %v1133 = vld [vmem:[%s355 + $0x918] sm:$0xff]
        %v1134 = vld [vmem:[%s355 + $0x920] sm:$0xff]
        %v1135 = vld [vmem:[%s355 + $0x928] sm:$0xff]
        %v1136 = vld [vmem:[%s355 + $0x930] sm:$0xff]
        %v1137 = vld [vmem:[%s355 + $0x938] sm:$0xff]
        %v1138 = vld [vmem:[%s355 + $0x940] sm:$0xff]
        %v1139 = vld [vmem:[%s355 + $0x948] sm:$0xff]
        %v1140 = vld [vmem:[%s355 + $0x950] sm:$0xff]
        %v1141 = vld [vmem:[%s355 + $0x958] sm:$0xff]
        %v1142 = vld [vmem:[%s355 + $0x960] sm:$0xff]
        %v1143 = vld [vmem:[%s355 + $0x968] sm:$0xff]
        %v1144 = vld [vmem:[%s355 + $0x970] sm:$0xff]
        %v1145 = vld [vmem:[%s355 + $0x978] sm:$0xff]
        %v1146 = vld [vmem:[%s355 + $0x980] sm:$0xff]
        %v1147 = vld [vmem:[%s355 + $0x988] sm:$0xff]
        %v1148 = vld [vmem:[%s355 + $0x990] sm:$0xff]
        %v1149 = vld [vmem:[%s355 + $0x998] sm:$0xff]
        %v1150 = vld [vmem:[%s355 + $0x9a0] sm:$0xff]
        %v1151 = vld [vmem:[%s355 + $0x9a8] sm:$0xff]
        %v1152 = vld [vmem:[%s355 + $0x9b0] sm:$0xff]
        %v1153 = vld [vmem:[%s355 + $0x9b8] sm:$0xff]
        %v1154 = vld [vmem:[%s355 + $0x9c0] sm:$0xff]
        %v1155 = vld [vmem:[%s355 + $0x9c8] sm:$0xff]
        %v1156 = vld [vmem:[%s355 + $0x9d0] sm:$0xff]
        %v1157 = vld [vmem:[%s355 + $0x9d8] sm:$0xff]
        %v1158 = vld [vmem:[%s355 + $0x9e0] sm:$0xff]
        %v1159 = vld [vmem:[%s355 + $0x9e8] sm:$0xff]
        %v1160 = vld [vmem:[%s355 + $0x9f0] sm:$0xff]
        %v1161 = vld [vmem:[%s355 + $0x9f8] sm:$0xff]
        %v1162 = vld [vmem:[%s355 + $0xa00] sm:$0xff]
        %v1163 = vld [vmem:[%s355 + $0xa08] sm:$0xff]
        %v1164 = vld [vmem:[%s355 + $0xa10] sm:$0xff]
        %v1165 = vld [vmem:[%s355 + $0xa18] sm:$0xff]
        %v1166 = vld [vmem:[%s355 + $0xa20] sm:$0xff]
        %v1167 = vld [vmem:[%s355 + $0xa28] sm:$0xff]
        %v1168 = vld [vmem:[%s355 + $0xa30] sm:$0xff]
        %v1169 = vld [vmem:[%s355 + $0xa38] sm:$0xff]
        %v1170 = vld [vmem:[%s355 + $0xa40] sm:$0xff]
        %v1171 = vld [vmem:[%s355 + $0xa48] sm:$0xff]
        %v1172 = vld [vmem:[%s355 + $0xa50] sm:$0xff]
        %v1173 = vld [vmem:[%s355 + $0xa58] sm:$0xff]
        %v1174 = vld [vmem:[%s355 + $0xa60] sm:$0xff]
        %v1175 = vld [vmem:[%s355 + $0xa68] sm:$0xff]
        %v1176 = vld [vmem:[%s355 + $0xa70] sm:$0xff]
        %v1177 = vld [vmem:[%s355 + $0xa78] sm:$0xff]
        %v1178 = vld [vmem:[%s355 + $0xa80] sm:$0xff]
        %v1179 = vld [vmem:[%s355 + $0xa88] sm:$0xff]
        %v1180 = vld [vmem:[%s355 + $0xa90] sm:$0xff]
        %v1181 = vld [vmem:[%s355 + $0xa98] sm:$0xff]
        %v1182 = vld [vmem:[%s355 + $0xaa0] sm:$0xff]
        %v1183 = vld [vmem:[%s355 + $0xaa8] sm:$0xff]
        %v1184 = vld [vmem:[%s355 + $0xab0] sm:$0xff]
        %v1185 = vld [vmem:[%s355 + $0xab8] sm:$0xff]
        %v1186 = vld [vmem:[%s355 + $0xac0] sm:$0xff]
        %v1187 = vld [vmem:[%s355 + $0xac8] sm:$0xff]
        %v1188 = vld [vmem:[%s355 + $0xad0] sm:$0xff]
        %v1189 = vld [vmem:[%s355 + $0xad8] sm:$0xff]
        %v1190 = vld [vmem:[%s355 + $0xae0] sm:$0xff]
        %v1191 = vld [vmem:[%s355 + $0xae8] sm:$0xff]
        %v1192 = vld [vmem:[%s355 + $0xaf0] sm:$0xff]
        %v1193 = vld [vmem:[%s355 + $0xaf8] sm:$0xff]
        %v1194 = vld [vmem:[%s355 + $0xb00] sm:$0xff]
        %v1195 = vld [vmem:[%s355 + $0xb08] sm:$0xff]
        %v1196 = vld [vmem:[%s355 + $0xb10] sm:$0xff]
        %v1197 = vld [vmem:[%s355 + $0xb18] sm:$0xff]
        %v1198 = vld [vmem:[%s355 + $0xb20] sm:$0xff]
        %v1199 = vld [vmem:[%s355 + $0xb28] sm:$0xff]
        %v1200 = vld [vmem:[%s355 + $0xb30] sm:$0xff]
        %v1201 = vld [vmem:[%s355 + $0xb38] sm:$0xff]
        %v1202 = vld [vmem:[%s355 + $0xb40] sm:$0xff]
        %v1203 = vld [vmem:[%s355 + $0xb48] sm:$0xff]
        %v1204 = vld [vmem:[%s355 + $0xb50] sm:$0xff]
        %v1205 = vld [vmem:[%s355 + $0xb58] sm:$0xff]
        %v1206 = vld [vmem:[%s355 + $0xb60] sm:$0xff]
        %v1207 = vld [vmem:[%s355 + $0xb68] sm:$0xff]
        %v1208 = vld [vmem:[%s355 + $0xb70] sm:$0xff]
        %v1209 = vld [vmem:[%s355 + $0xb78] sm:$0xff]
        %v1210 = vld [vmem:[%s355 + $0xb80] sm:$0xff]
        %v1211 = vld [vmem:[%s355 + $0xb88] sm:$0xff]
        %v1212 = vld [vmem:[%s355 + $0xb90] sm:$0xff]
        %v1213 = vld [vmem:[%s355 + $0xb98] sm:$0xff]
        %v1214 = vld [vmem:[%s355 + $0xba0] sm:$0xff]
        %v1215 = vld [vmem:[%s355 + $0xba8] sm:$0xff]
        %v1216 = vld [vmem:[%s355 + $0xbb0] sm:$0xff]
        %v1217 = vld [vmem:[%s355 + $0xbb8] sm:$0xff]
        %v1218 = vld [vmem:[%s355 + $0xbc0] sm:$0xff]
        %v1219 = vld [vmem:[%s355 + $0xbc8] sm:$0xff]
        %v1220 = vld [vmem:[%s355 + $0xbd0] sm:$0xff]
        %v1221 = vld [vmem:[%s355 + $0xbd8] sm:$0xff]
        %v1222 = vld [vmem:[%s355 + $0xbe0] sm:$0xff]
        %v1223 = vld [vmem:[%s355 + $0xbe8] sm:$0xff]
        %v1224 = vld [vmem:[%s355 + $0xbf0] sm:$0xff]
        %v1225 = vld [vmem:[%s355 + $0xbf8] sm:$0xff]
        %v1226 = vld [vmem:[%s355 + $0xc00] sm:$0xff]
        %v1227 = vld [vmem:[%s355 + $0xc08] sm:$0xff]
        %v1228 = vld [vmem:[%s355 + $0xc10] sm:$0xff]
        %v1229 = vld [vmem:[%s355 + $0xc18] sm:$0xff]
        %v1230 = vld [vmem:[%s355 + $0xc20] sm:$0xff]
        %v1231 = vld [vmem:[%s355 + $0xc28] sm:$0xff]
        %v1232 = vld [vmem:[%s355 + $0xc30] sm:$0xff]
        %v1233 = vld [vmem:[%s355 + $0xc38] sm:$0xff]
        %v1234 = vld [vmem:[%s355 + $0xc40] sm:$0xff]
        %v1235 = vld [vmem:[%s355 + $0xc48] sm:$0xff]
        %v1236 = vld [vmem:[%s355 + $0xc50] sm:$0xff]
        %v1237 = vld [vmem:[%s355 + $0xc58] sm:$0xff]
        %v1238 = vld [vmem:[%s355 + $0xc60] sm:$0xff]
        %v1239 = vld [vmem:[%s355 + $0xc68] sm:$0xff]
        %v1240 = vld [vmem:[%s355 + $0xc70] sm:$0xff]
        %v1241 = vld [vmem:[%s355 + $0xc78] sm:$0xff]
        %v1242 = vld [vmem:[%s355 + $0xc80] sm:$0xff]
        %v1243 = vld [vmem:[%s355 + $0xc88] sm:$0xff]
        %v1244 = vld [vmem:[%s355 + $0xc90] sm:$0xff]
        %v1245 = vld [vmem:[%s355 + $0xc98] sm:$0xff]
        %v1246 = vld [vmem:[%s355 + $0xca0] sm:$0xff]
        %v1247 = vld [vmem:[%s355 + $0xca8] sm:$0xff]
        %v1248 = vld [vmem:[%s355 + $0xcb0] sm:$0xff]
        %v1249 = vld [vmem:[%s355 + $0xcb8] sm:$0xff]
        %v1250 = vld [vmem:[%s355 + $0xcc0] sm:$0xff]
        %v1251 = vld [vmem:[%s355 + $0xcc8] sm:$0xff]
        %v1252 = vld [vmem:[%s355 + $0xcd0] sm:$0xff]
        %v1253 = vld [vmem:[%s355 + $0xcd8] sm:$0xff]
        %v1254 = vld [vmem:[%s355 + $0xce0] sm:$0xff]
        %v1255 = vld [vmem:[%s355 + $0xce8] sm:$0xff]
        %v1256 = vld [vmem:[%s355 + $0xcf0] sm:$0xff]
        %v1257 = vld [vmem:[%s355 + $0xcf8] sm:$0xff]
        %v1258 = vld [vmem:[%s355 + $0xd00] sm:$0xff]
        %v1259 = vld [vmem:[%s355 + $0xd08] sm:$0xff]
        %v1260 = vld [vmem:[%s355 + $0xd10] sm:$0xff]
        %v1261 = vld [vmem:[%s355 + $0xd18] sm:$0xff]
        %v1262 = vld [vmem:[%s355 + $0xd20] sm:$0xff]
        %v1263 = vld [vmem:[%s355 + $0xd28] sm:$0xff]
        %v1264 = vld [vmem:[%s355 + $0xd30] sm:$0xff]
        %v1265 = vld [vmem:[%s355 + $0xd38] sm:$0xff]
        %v1266 = vld [vmem:[%s355 + $0xd40] sm:$0xff]
        %v1267 = vld [vmem:[%s355 + $0xd48] sm:$0xff]
        %v1268 = vld [vmem:[%s355 + $0xd50] sm:$0xff]
        %v1269 = vld [vmem:[%s355 + $0xd58] sm:$0xff]
        %v1270 = vld [vmem:[%s355 + $0xd60] sm:$0xff]
        %v1271 = vld [vmem:[%s355 + $0xd68] sm:$0xff]
        %v1272 = vld [vmem:[%s355 + $0xd70] sm:$0xff]
        %v1273 = vld [vmem:[%s355 + $0xd78] sm:$0xff]
        %v1274 = vld [vmem:[%s355 + $0xd80] sm:$0xff]
        %v1275 = vld [vmem:[%s355 + $0xd88] sm:$0xff]
        %v1276 = vld [vmem:[%s355 + $0xd90] sm:$0xff]
        %v1277 = vld [vmem:[%s355 + $0xd98] sm:$0xff]
        %v1278 = vld [vmem:[%s355 + $0xda0] sm:$0xff]
        %v1279 = vld [vmem:[%s355 + $0xda8] sm:$0xff]
        %v1280 = vld [vmem:[%s355 + $0xdb0] sm:$0xff]
        %v1281 = vld [vmem:[%s355 + $0xdb8] sm:$0xff]
        %v1282 = vld [vmem:[%s355 + $0xdc0] sm:$0xff]
        %v1283 = vld [vmem:[%s355 + $0xdc8] sm:$0xff]
        %v1284 = vld [vmem:[%s355 + $0xdd0] sm:$0xff]
        %v1285 = vld [vmem:[%s355 + $0xdd8] sm:$0xff]
        %v1286 = vld [vmem:[%s355 + $0xde0] sm:$0xff]
        %v1287 = vld [vmem:[%s355 + $0xde8] sm:$0xff]
        %v1288 = vld [vmem:[%s355 + $0xdf0] sm:$0xff]
        %v1289 = vld [vmem:[%s355 + $0xdf8] sm:$0xff]
        %v1290 = vld [vmem:[%s355 + $0xe00] sm:$0xff]
        %v1291 = vld [vmem:[%s355 + $0xe08] sm:$0xff]
        %v1292 = vld [vmem:[%s355 + $0xe10] sm:$0xff]
        %v1293 = vld [vmem:[%s355 + $0xe18] sm:$0xff]
        %v1294 = vld [vmem:[%s355 + $0xe20] sm:$0xff]
        %v1295 = vld [vmem:[%s355 + $0xe28] sm:$0xff]
        %v1296 = vld [vmem:[%s355 + $0xe30] sm:$0xff]
        %v1297 = vld [vmem:[%s355 + $0xe38] sm:$0xff]
        %v1298 = vld [vmem:[%s355 + $0xe40] sm:$0xff]
        %v1299 = vld [vmem:[%s355 + $0xe48] sm:$0xff]
        %v1300 = vld [vmem:[%s355 + $0xe50] sm:$0xff]
        %v1301 = vld [vmem:[%s355 + $0xe58] sm:$0xff]
        %v1302 = vld [vmem:[%s355 + $0xe60] sm:$0xff]
        %v1303 = vld [vmem:[%s355 + $0xe68] sm:$0xff]
        %v1304 = vld [vmem:[%s355 + $0xe70] sm:$0xff]
        %v1305 = vld [vmem:[%s355 + $0xe78] sm:$0xff]
        %v1306 = vld [vmem:[%s355 + $0xe80] sm:$0xff]
        %v1307 = vld [vmem:[%s355 + $0xe88] sm:$0xff]
        %v1308 = vld [vmem:[%s355 + $0xe90] sm:$0xff]
        %v1309 = vld [vmem:[%s355 + $0xe98] sm:$0xff]
        %v1310 = vld [vmem:[%s355 + $0xea0] sm:$0xff]
        %v1311 = vld [vmem:[%s355 + $0xea8] sm:$0xff]
        %v1312 = vld [vmem:[%s355 + $0xeb0] sm:$0xff]
        %v1313 = vld [vmem:[%s355 + $0xeb8] sm:$0xff]
        %v1314 = vld [vmem:[%s355 + $0xec0] sm:$0xff]
        %v1315 = vld [vmem:[%s355 + $0xec8] sm:$0xff]
        %v1316 = vld [vmem:[%s355 + $0xed0] sm:$0xff]
        %v1317 = vld [vmem:[%s355 + $0xed8] sm:$0xff]
        %v1318 = vld [vmem:[%s355 + $0xee0] sm:$0xff]
        %v1319 = vld [vmem:[%s355 + $0xee8] sm:$0xff]
        %v1320 = vld [vmem:[%s355 + $0xef0] sm:$0xff]
        %v1321 = vld [vmem:[%s355 + $0xef8] sm:$0xff]
        %v1322 = vld [vmem:[%s355 + $0xf00] sm:$0xff]
        %v1323 = vld [vmem:[%s355 + $0xf08] sm:$0xff]
        %v1324 = vld [vmem:[%s355 + $0xf10] sm:$0xff]
        %v1325 = vld [vmem:[%s355 + $0xf18] sm:$0xff]
        %v1326 = vld [vmem:[%s355 + $0xf20] sm:$0xff]
        %v1327 = vld [vmem:[%s355 + $0xf28] sm:$0xff]
        %v1328 = vld [vmem:[%s355 + $0xf30] sm:$0xff]
        %v1329 = vld [vmem:[%s355 + $0xf38] sm:$0xff]
        %v1330 = vld [vmem:[%s355 + $0xf40] sm:$0xff]
        %v1331 = vld [vmem:[%s355 + $0xf48] sm:$0xff]
        %v1332 = vld [vmem:[%s355 + $0xf50] sm:$0xff]
        %v1333 = vld [vmem:[%s355 + $0xf58] sm:$0xff]
        %v1334 = vld [vmem:[%s355 + $0xf60] sm:$0xff]
        %v1335 = vld [vmem:[%s355 + $0xf68] sm:$0xff]
        %v1336 = vld [vmem:[%s355 + $0xf70] sm:$0xff]
        %v1337 = vld [vmem:[%s355 + $0xf78] sm:$0xff]
        %v1338 = vld [vmem:[%s355 + $0xf80] sm:$0xff]
        %v1339 = vld [vmem:[%s355 + $0xf88] sm:$0xff]
        %v1340 = vld [vmem:[%s355 + $0xf90] sm:$0xff]
        %v1341 = vld [vmem:[%s355 + $0xf98] sm:$0xff]
        %v1342 = vld [vmem:[%s355 + $0xfa0] sm:$0xff]
        %v1343 = vld [vmem:[%s355 + $0xfa8] sm:$0xff]
        %v1344 = vld [vmem:[%s355 + $0xfb0] sm:$0xff]
        %v1345 = vld [vmem:[%s355 + $0xfb8] sm:$0xff]
        %v1346 = vld [vmem:[%s355 + $0xfc0] sm:$0xff]
        %v1347 = vld [vmem:[%s355 + $0xfc8] sm:$0xff]
        %v1348 = vld [vmem:[%s355 + $0xfd0] sm:$0xff]
        %v1349 = vld [vmem:[%s355 + $0xfd8] sm:$0xff]
        %v1350 = vld [vmem:[%s355 + $0xfe0] sm:$0xff]
        %v1351 = vld [vmem:[%s355 + $0xfe8] sm:$0xff]
        %v1352 = vld [vmem:[%s355 + $0xff0] sm:$0xff]
        %v1353 = vld [vmem:[%s355 + $0xff8] sm:$0xff]
        %v1866 = vunpack.c.l.b16 %v842
        %v1867 = vunpack.c.h.b16 %v842
        %v1868 = vunpack.c.l.b16 %v843
        %v1869 = vunpack.c.h.b16 %v843
        %v1870 = vunpack.c.l.b16 %v844
        %v1871 = vunpack.c.h.b16 %v844
        %v1872 = vunpack.c.l.b16 %v845
        %v1873 = vunpack.c.h.b16 %v845
        %v1874 = vunpack.c.l.b16 %v846
        %v1875 = vunpack.c.h.b16 %v846
        %v1876 = vunpack.c.l.b16 %v847
        %v1877 = vunpack.c.h.b16 %v847
        %v1878 = vunpack.c.l.b16 %v848
        %v1879 = vunpack.c.h.b16 %v848
        %v1880 = vunpack.c.l.b16 %v849
        %v1881 = vunpack.c.h.b16 %v849
        %v1882 = vunpack.c.l.b16 %v850
        %v1883 = vunpack.c.h.b16 %v850
        %v1884 = vunpack.c.l.b16 %v851
        %v1885 = vunpack.c.h.b16 %v851
        %v1886 = vunpack.c.l.b16 %v852
        %v1887 = vunpack.c.h.b16 %v852
        %v1888 = vunpack.c.l.b16 %v853
        %v1889 = vunpack.c.h.b16 %v853
        %v1890 = vunpack.c.l.b16 %v854
        %v1891 = vunpack.c.h.b16 %v854
        %v1892 = vunpack.c.l.b16 %v855
        %v1893 = vunpack.c.h.b16 %v855
        %v1894 = vunpack.c.l.b16 %v856
        %v1895 = vunpack.c.h.b16 %v856
        %v1896 = vunpack.c.l.b16 %v857
        %v1897 = vunpack.c.h.b16 %v857
        %v1898 = vunpack.c.l.b16 %v858
        %v1899 = vunpack.c.h.b16 %v858
        %v1900 = vunpack.c.l.b16 %v859
        %v1901 = vunpack.c.h.b16 %v859
        %v1902 = vunpack.c.l.b16 %v860
        %v1903 = vunpack.c.h.b16 %v860
        %v1904 = vunpack.c.l.b16 %v861
        %v1905 = vunpack.c.h.b16 %v861
        %v1906 = vunpack.c.l.b16 %v862
        %v1907 = vunpack.c.h.b16 %v862
        %v1908 = vunpack.c.l.b16 %v863
        %v1909 = vunpack.c.h.b16 %v863
        %v1910 = vunpack.c.l.b16 %v864
        %v1911 = vunpack.c.h.b16 %v864
        %v1912 = vunpack.c.l.b16 %v865
        %v1913 = vunpack.c.h.b16 %v865
        %v1914 = vunpack.c.l.b16 %v866
        %v1915 = vunpack.c.h.b16 %v866
        %v1916 = vunpack.c.l.b16 %v867
        %v1917 = vunpack.c.h.b16 %v867
        %v1918 = vunpack.c.l.b16 %v868
        %v1919 = vunpack.c.h.b16 %v868
        %v1920 = vunpack.c.l.b16 %v869
        %v1921 = vunpack.c.h.b16 %v869
        %v1922 = vunpack.c.l.b16 %v870
        %v1923 = vunpack.c.h.b16 %v870
        %v1924 = vunpack.c.l.b16 %v871
        %v1925 = vunpack.c.h.b16 %v871
        %v1926 = vunpack.c.l.b16 %v872
        %v1927 = vunpack.c.h.b16 %v872
        %v1928 = vunpack.c.l.b16 %v873
        %v1929 = vunpack.c.h.b16 %v873
        %v1930 = vunpack.c.l.b16 %v874
        %v1931 = vunpack.c.h.b16 %v874
        %v1932 = vunpack.c.l.b16 %v875
        %v1933 = vunpack.c.h.b16 %v875
        %v1934 = vunpack.c.l.b16 %v876
        %v1935 = vunpack.c.h.b16 %v876
        %v1936 = vunpack.c.l.b16 %v877
        %v1937 = vunpack.c.h.b16 %v877
        %v1938 = vunpack.c.l.b16 %v878
        %v1939 = vunpack.c.h.b16 %v878
        %v1940 = vunpack.c.l.b16 %v879
        %v1941 = vunpack.c.h.b16 %v879
        %v1942 = vunpack.c.l.b16 %v880
        %v1943 = vunpack.c.h.b16 %v880
        %v1944 = vunpack.c.l.b16 %v881
        %v1945 = vunpack.c.h.b16 %v881
        %v1946 = vunpack.c.l.b16 %v882
        %v1947 = vunpack.c.h.b16 %v882
        %v1948 = vunpack.c.l.b16 %v883
        %v1949 = vunpack.c.h.b16 %v883
        %v1950 = vunpack.c.l.b16 %v884
        %v1951 = vunpack.c.h.b16 %v884
        %v1952 = vunpack.c.l.b16 %v885
        %v1953 = vunpack.c.h.b16 %v885
        %v1954 = vunpack.c.l.b16 %v886
        %v1955 = vunpack.c.h.b16 %v886
        %v1956 = vunpack.c.l.b16 %v887
        %v1957 = vunpack.c.h.b16 %v887
        %v1958 = vunpack.c.l.b16 %v888
        %v1959 = vunpack.c.h.b16 %v888
        %v1960 = vunpack.c.l.b16 %v889
        %v1961 = vunpack.c.h.b16 %v889
        %v1962 = vunpack.c.l.b16 %v890
        %v1963 = vunpack.c.h.b16 %v890
        %v1964 = vunpack.c.l.b16 %v891
        %v1965 = vunpack.c.h.b16 %v891
        %v1966 = vunpack.c.l.b16 %v892
        %v1967 = vunpack.c.h.b16 %v892
        %v1968 = vunpack.c.l.b16 %v893
        %v1969 = vunpack.c.h.b16 %v893
        %v1970 = vunpack.c.l.b16 %v894
        %v1971 = vunpack.c.h.b16 %v894
        %v1972 = vunpack.c.l.b16 %v895
        %v1973 = vunpack.c.h.b16 %v895
        %v1974 = vunpack.c.l.b16 %v896
        %v1975 = vunpack.c.h.b16 %v896
        %v1976 = vunpack.c.l.b16 %v897
        %v1977 = vunpack.c.h.b16 %v897
        %v1978 = vunpack.c.l.b16 %v898
        %v1979 = vunpack.c.h.b16 %v898
        %v1980 = vunpack.c.l.b16 %v899
        %v1981 = vunpack.c.h.b16 %v899
        %v1982 = vunpack.c.l.b16 %v900
        %v1983 = vunpack.c.h.b16 %v900
        %v1984 = vunpack.c.l.b16 %v901
        %v1985 = vunpack.c.h.b16 %v901
        %v1986 = vunpack.c.l.b16 %v902
        %v1987 = vunpack.c.h.b16 %v902
        %v1988 = vunpack.c.l.b16 %v903
        %v1989 = vunpack.c.h.b16 %v903
        %v1990 = vunpack.c.l.b16 %v904
        %v1991 = vunpack.c.h.b16 %v904
        %v1992 = vunpack.c.l.b16 %v905
        %v1993 = vunpack.c.h.b16 %v905
        %v1994 = vunpack.c.l.b16 %v906
        %v1995 = vunpack.c.h.b16 %v906
        %v1996 = vunpack.c.l.b16 %v907
        %v1997 = vunpack.c.h.b16 %v907
        %v1998 = vunpack.c.l.b16 %v908
        %v1999 = vunpack.c.h.b16 %v908
        %v2000 = vunpack.c.l.b16 %v909
        %v2001 = vunpack.c.h.b16 %v909
        %v2002 = vunpack.c.l.b16 %v910
        %v2003 = vunpack.c.h.b16 %v910
        %v2004 = vunpack.c.l.b16 %v911
        %v2005 = vunpack.c.h.b16 %v911
        %v2006 = vunpack.c.l.b16 %v912
        %v2007 = vunpack.c.h.b16 %v912
        %v2008 = vunpack.c.l.b16 %v913
        %v2009 = vunpack.c.h.b16 %v913
        %v2010 = vunpack.c.l.b16 %v914
        %v2011 = vunpack.c.h.b16 %v914
        %v2012 = vunpack.c.l.b16 %v915
        %v2013 = vunpack.c.h.b16 %v915
        %v2014 = vunpack.c.l.b16 %v916
        %v2015 = vunpack.c.h.b16 %v916
        %v2016 = vunpack.c.l.b16 %v917
        %v2017 = vunpack.c.h.b16 %v917
        %v2018 = vunpack.c.l.b16 %v918
        %v2019 = vunpack.c.h.b16 %v918
        %v2020 = vunpack.c.l.b16 %v919
        %v2021 = vunpack.c.h.b16 %v919
        %v2022 = vunpack.c.l.b16 %v920
        %v2023 = vunpack.c.h.b16 %v920
        %v2024 = vunpack.c.l.b16 %v921
        %v2025 = vunpack.c.h.b16 %v921
        %v2026 = vunpack.c.l.b16 %v922
        %v2027 = vunpack.c.h.b16 %v922
        %v2028 = vunpack.c.l.b16 %v923
        %v2029 = vunpack.c.h.b16 %v923
        %v2030 = vunpack.c.l.b16 %v924
        %v2031 = vunpack.c.h.b16 %v924
        %v2032 = vunpack.c.l.b16 %v925
        %v2033 = vunpack.c.h.b16 %v925
        %v2034 = vunpack.c.l.b16 %v926
        %v2035 = vunpack.c.h.b16 %v926
        %v2036 = vunpack.c.l.b16 %v927
        %v2037 = vunpack.c.h.b16 %v927
        %v2038 = vunpack.c.l.b16 %v928
        %v2039 = vunpack.c.h.b16 %v928
        %v2040 = vunpack.c.l.b16 %v929
        %v2041 = vunpack.c.h.b16 %v929
        %v2042 = vunpack.c.l.b16 %v930
        %v2043 = vunpack.c.h.b16 %v930
        %v2044 = vunpack.c.l.b16 %v931
        %v2045 = vunpack.c.h.b16 %v931
        %v2046 = vunpack.c.l.b16 %v932
        %v2047 = vunpack.c.h.b16 %v932
        %v2048 = vunpack.c.l.b16 %v933
        %v2049 = vunpack.c.h.b16 %v933
        %v2050 = vunpack.c.l.b16 %v934
        %v2051 = vunpack.c.h.b16 %v934
        %v2052 = vunpack.c.l.b16 %v935
        %v2053 = vunpack.c.h.b16 %v935
        %v2054 = vunpack.c.l.b16 %v936
        %v2055 = vunpack.c.h.b16 %v936
        %v2056 = vunpack.c.l.b16 %v937
        %v2057 = vunpack.c.h.b16 %v937
        %v2058 = vunpack.c.l.b16 %v938
        %v2059 = vunpack.c.h.b16 %v938
        %v2060 = vunpack.c.l.b16 %v939
        %v2061 = vunpack.c.h.b16 %v939
        %v2062 = vunpack.c.l.b16 %v940
        %v2063 = vunpack.c.h.b16 %v940
        %v2064 = vunpack.c.l.b16 %v941
        %v2065 = vunpack.c.h.b16 %v941
        %v2066 = vunpack.c.l.b16 %v942
        %v2067 = vunpack.c.h.b16 %v942
        %v2068 = vunpack.c.l.b16 %v943
        %v2069 = vunpack.c.h.b16 %v943
        %v2070 = vunpack.c.l.b16 %v944
        %v2071 = vunpack.c.h.b16 %v944
        %v2072 = vunpack.c.l.b16 %v945
        %v2073 = vunpack.c.h.b16 %v945
        %v2074 = vunpack.c.l.b16 %v946
        %v2075 = vunpack.c.h.b16 %v946
        %v2076 = vunpack.c.l.b16 %v947
        %v2077 = vunpack.c.h.b16 %v947
        %v2078 = vunpack.c.l.b16 %v948
        %v2079 = vunpack.c.h.b16 %v948
        %v2080 = vunpack.c.l.b16 %v949
        %v2081 = vunpack.c.h.b16 %v949
        %v2082 = vunpack.c.l.b16 %v950
        %v2083 = vunpack.c.h.b16 %v950
        %v2084 = vunpack.c.l.b16 %v951
        %v2085 = vunpack.c.h.b16 %v951
        %v2086 = vunpack.c.l.b16 %v952
        %v2087 = vunpack.c.h.b16 %v952
        %v2088 = vunpack.c.l.b16 %v953
        %v2089 = vunpack.c.h.b16 %v953
        %v2090 = vunpack.c.l.b16 %v954
        %v2091 = vunpack.c.h.b16 %v954
        %v2092 = vunpack.c.l.b16 %v955
        %v2093 = vunpack.c.h.b16 %v955
        %v2094 = vunpack.c.l.b16 %v956
        %v2095 = vunpack.c.h.b16 %v956
        %v2096 = vunpack.c.l.b16 %v957
        %v2097 = vunpack.c.h.b16 %v957
        %v2098 = vunpack.c.l.b16 %v958
        %v2099 = vunpack.c.h.b16 %v958
        %v2100 = vunpack.c.l.b16 %v959
        %v2101 = vunpack.c.h.b16 %v959
        %v2102 = vunpack.c.l.b16 %v960
        %v2103 = vunpack.c.h.b16 %v960
        %v2104 = vunpack.c.l.b16 %v961
        %v2105 = vunpack.c.h.b16 %v961
        %v2106 = vunpack.c.l.b16 %v962
        %v2107 = vunpack.c.h.b16 %v962
        %v2108 = vunpack.c.l.b16 %v963
        %v2109 = vunpack.c.h.b16 %v963
        %v2110 = vunpack.c.l.b16 %v964
        %v2111 = vunpack.c.h.b16 %v964
        %v2112 = vunpack.c.l.b16 %v965
        %v2113 = vunpack.c.h.b16 %v965
        %v2114 = vunpack.c.l.b16 %v966
        %v2115 = vunpack.c.h.b16 %v966
        %v2116 = vunpack.c.l.b16 %v967
        %v2117 = vunpack.c.h.b16 %v967
        %v2118 = vunpack.c.l.b16 %v968
        %v2119 = vunpack.c.h.b16 %v968
        %v2120 = vunpack.c.l.b16 %v969
        %v2121 = vunpack.c.h.b16 %v969
        %v2122 = vunpack.c.l.b16 %v970
        %v2123 = vunpack.c.h.b16 %v970
        %v2124 = vunpack.c.l.b16 %v971
        %v2125 = vunpack.c.h.b16 %v971
        %v2126 = vunpack.c.l.b16 %v972
        %v2127 = vunpack.c.h.b16 %v972
        %v2128 = vunpack.c.l.b16 %v973
        %v2129 = vunpack.c.h.b16 %v973
        %v2130 = vunpack.c.l.b16 %v974
        %v2131 = vunpack.c.h.b16 %v974
        %v2132 = vunpack.c.l.b16 %v975
        %v2133 = vunpack.c.h.b16 %v975
        %v2134 = vunpack.c.l.b16 %v976
        %v2135 = vunpack.c.h.b16 %v976
        %v2136 = vunpack.c.l.b16 %v977
        %v2137 = vunpack.c.h.b16 %v977
        %v2138 = vunpack.c.l.b16 %v978
        %v2139 = vunpack.c.h.b16 %v978
        %v2140 = vunpack.c.l.b16 %v979
        %v2141 = vunpack.c.h.b16 %v979
        %v2142 = vunpack.c.l.b16 %v980
        %v2143 = vunpack.c.h.b16 %v980
        %v2144 = vunpack.c.l.b16 %v981
        %v2145 = vunpack.c.h.b16 %v981
        %v2146 = vunpack.c.l.b16 %v982
        %v2147 = vunpack.c.h.b16 %v982
        %v2148 = vunpack.c.l.b16 %v983
        %v2149 = vunpack.c.h.b16 %v983
        %v2150 = vunpack.c.l.b16 %v984
        %v2151 = vunpack.c.h.b16 %v984
        %v2152 = vunpack.c.l.b16 %v985
        %v2153 = vunpack.c.h.b16 %v985
        %v2154 = vunpack.c.l.b16 %v986
        %v2155 = vunpack.c.h.b16 %v986
        %v2156 = vunpack.c.l.b16 %v987
        %v2157 = vunpack.c.h.b16 %v987
        %v2158 = vunpack.c.l.b16 %v988
        %v2159 = vunpack.c.h.b16 %v988
        %v2160 = vunpack.c.l.b16 %v989
        %v2161 = vunpack.c.h.b16 %v989
        %v2162 = vunpack.c.l.b16 %v990
        %v2163 = vunpack.c.h.b16 %v990
        %v2164 = vunpack.c.l.b16 %v991
        %v2165 = vunpack.c.h.b16 %v991
        %v2166 = vunpack.c.l.b16 %v992
        %v2167 = vunpack.c.h.b16 %v992
        %v2168 = vunpack.c.l.b16 %v993
        %v2169 = vunpack.c.h.b16 %v993
        %v2170 = vunpack.c.l.b16 %v994
        %v2171 = vunpack.c.h.b16 %v994
        %v2172 = vunpack.c.l.b16 %v995
        %v2173 = vunpack.c.h.b16 %v995
        %v2174 = vunpack.c.l.b16 %v996
        %v2175 = vunpack.c.h.b16 %v996
        %v2176 = vunpack.c.l.b16 %v997
        %v2177 = vunpack.c.h.b16 %v997
        %v2178 = vunpack.c.l.b16 %v998
        %v2179 = vunpack.c.h.b16 %v998
        %v2180 = vunpack.c.l.b16 %v999
        %v2181 = vunpack.c.h.b16 %v999
        %v2182 = vunpack.c.l.b16 %v1000
        %v2183 = vunpack.c.h.b16 %v1000
        %v2184 = vunpack.c.l.b16 %v1001
        %v2185 = vunpack.c.h.b16 %v1001
        %v2186 = vunpack.c.l.b16 %v1002
        %v2187 = vunpack.c.h.b16 %v1002
        %v2188 = vunpack.c.l.b16 %v1003
        %v2189 = vunpack.c.h.b16 %v1003
        %v2190 = vunpack.c.l.b16 %v1004
        %v2191 = vunpack.c.h.b16 %v1004
        %v2192 = vunpack.c.l.b16 %v1005
        %v2193 = vunpack.c.h.b16 %v1005
        %v2194 = vunpack.c.l.b16 %v1006
        %v2195 = vunpack.c.h.b16 %v1006
        %v2196 = vunpack.c.l.b16 %v1007
        %v2197 = vunpack.c.h.b16 %v1007
        %v2198 = vunpack.c.l.b16 %v1008
        %v2199 = vunpack.c.h.b16 %v1008
        %v2200 = vunpack.c.l.b16 %v1009
        %v2201 = vunpack.c.h.b16 %v1009
        %v2202 = vunpack.c.l.b16 %v1010
        %v2203 = vunpack.c.h.b16 %v1010
        %v2204 = vunpack.c.l.b16 %v1011
        %v2205 = vunpack.c.h.b16 %v1011
        %v2206 = vunpack.c.l.b16 %v1012
        %v2207 = vunpack.c.h.b16 %v1012
        %v2208 = vunpack.c.l.b16 %v1013
        %v2209 = vunpack.c.h.b16 %v1013
        %v2210 = vunpack.c.l.b16 %v1014
        %v2211 = vunpack.c.h.b16 %v1014
        %v2212 = vunpack.c.l.b16 %v1015
        %v2213 = vunpack.c.h.b16 %v1015
        %v2214 = vunpack.c.l.b16 %v1016
        %v2215 = vunpack.c.h.b16 %v1016
        %v2216 = vunpack.c.l.b16 %v1017
        %v2217 = vunpack.c.h.b16 %v1017
        %v2218 = vunpack.c.l.b16 %v1018
        %v2219 = vunpack.c.h.b16 %v1018
        %v2220 = vunpack.c.l.b16 %v1019
        %v2221 = vunpack.c.h.b16 %v1019
        %v2222 = vunpack.c.l.b16 %v1020
        %v2223 = vunpack.c.h.b16 %v1020
        %v2224 = vunpack.c.l.b16 %v1021
        %v2225 = vunpack.c.h.b16 %v1021
        %v2226 = vunpack.c.l.b16 %v1022
        %v2227 = vunpack.c.h.b16 %v1022
        %v2228 = vunpack.c.l.b16 %v1023
        %v2229 = vunpack.c.h.b16 %v1023
        %v2230 = vunpack.c.l.b16 %v1024
        %v2231 = vunpack.c.h.b16 %v1024
        %v2232 = vunpack.c.l.b16 %v1025
        %v2233 = vunpack.c.h.b16 %v1025
        %v2234 = vunpack.c.l.b16 %v1026
        %v2235 = vunpack.c.h.b16 %v1026
        %v2236 = vunpack.c.l.b16 %v1027
        %v2237 = vunpack.c.h.b16 %v1027
        %v2238 = vunpack.c.l.b16 %v1028
        %v2239 = vunpack.c.h.b16 %v1028
        %v2240 = vunpack.c.l.b16 %v1029
        %v2241 = vunpack.c.h.b16 %v1029
        %v2242 = vunpack.c.l.b16 %v1030
        %v2243 = vunpack.c.h.b16 %v1030
        %v2244 = vunpack.c.l.b16 %v1031
        %v2245 = vunpack.c.h.b16 %v1031
        %v2246 = vunpack.c.l.b16 %v1032
        %v2247 = vunpack.c.h.b16 %v1032
        %v2248 = vunpack.c.l.b16 %v1033
        %v2249 = vunpack.c.h.b16 %v1033
        %v2250 = vunpack.c.l.b16 %v1034
        %v2251 = vunpack.c.h.b16 %v1034
        %v2252 = vunpack.c.l.b16 %v1035
        %v2253 = vunpack.c.h.b16 %v1035
        %v2254 = vunpack.c.l.b16 %v1036
        %v2255 = vunpack.c.h.b16 %v1036
        %v2256 = vunpack.c.l.b16 %v1037
        %v2257 = vunpack.c.h.b16 %v1037
        %v2258 = vunpack.c.l.b16 %v1038
        %v2259 = vunpack.c.h.b16 %v1038
        %v2260 = vunpack.c.l.b16 %v1039
        %v2261 = vunpack.c.h.b16 %v1039
        %v2262 = vunpack.c.l.b16 %v1040
        %v2263 = vunpack.c.h.b16 %v1040
        %v2264 = vunpack.c.l.b16 %v1041
        %v2265 = vunpack.c.h.b16 %v1041
        %v2266 = vunpack.c.l.b16 %v1042
        %v2267 = vunpack.c.h.b16 %v1042
        %v2268 = vunpack.c.l.b16 %v1043
        %v2269 = vunpack.c.h.b16 %v1043
        %v2270 = vunpack.c.l.b16 %v1044
        %v2271 = vunpack.c.h.b16 %v1044
        %v2272 = vunpack.c.l.b16 %v1045
        %v2273 = vunpack.c.h.b16 %v1045
        %v2274 = vunpack.c.l.b16 %v1046
        %v2275 = vunpack.c.h.b16 %v1046
        %v2276 = vunpack.c.l.b16 %v1047
        %v2277 = vunpack.c.h.b16 %v1047
        %v2278 = vunpack.c.l.b16 %v1048
        %v2279 = vunpack.c.h.b16 %v1048
        %v2280 = vunpack.c.l.b16 %v1049
        %v2281 = vunpack.c.h.b16 %v1049
        %v2282 = vunpack.c.l.b16 %v1050
        %v2283 = vunpack.c.h.b16 %v1050
        %v2284 = vunpack.c.l.b16 %v1051
        %v2285 = vunpack.c.h.b16 %v1051
        %v2286 = vunpack.c.l.b16 %v1052
        %v2287 = vunpack.c.h.b16 %v1052
        %v2288 = vunpack.c.l.b16 %v1053
        %v2289 = vunpack.c.h.b16 %v1053
        %v2290 = vunpack.c.l.b16 %v1054
        %v2291 = vunpack.c.h.b16 %v1054
        %v2292 = vunpack.c.l.b16 %v1055
        %v2293 = vunpack.c.h.b16 %v1055
        %v2294 = vunpack.c.l.b16 %v1056
        %v2295 = vunpack.c.h.b16 %v1056
        %v2296 = vunpack.c.l.b16 %v1057
        %v2297 = vunpack.c.h.b16 %v1057
        %v2298 = vunpack.c.l.b16 %v1058
        %v2299 = vunpack.c.h.b16 %v1058
        %v2300 = vunpack.c.l.b16 %v1059
        %v2301 = vunpack.c.h.b16 %v1059
        %v2302 = vunpack.c.l.b16 %v1060
        %v2303 = vunpack.c.h.b16 %v1060
        %v2304 = vunpack.c.l.b16 %v1061
        %v2305 = vunpack.c.h.b16 %v1061
        %v2306 = vunpack.c.l.b16 %v1062
        %v2307 = vunpack.c.h.b16 %v1062
        %v2308 = vunpack.c.l.b16 %v1063
        %v2309 = vunpack.c.h.b16 %v1063
        %v2310 = vunpack.c.l.b16 %v1064
        %v2311 = vunpack.c.h.b16 %v1064
        %v2312 = vunpack.c.l.b16 %v1065
        %v2313 = vunpack.c.h.b16 %v1065
        %v2314 = vunpack.c.l.b16 %v1066
        %v2315 = vunpack.c.h.b16 %v1066
        %v2316 = vunpack.c.l.b16 %v1067
        %v2317 = vunpack.c.h.b16 %v1067
        %v2318 = vunpack.c.l.b16 %v1068
        %v2319 = vunpack.c.h.b16 %v1068
        %v2320 = vunpack.c.l.b16 %v1069
        %v2321 = vunpack.c.h.b16 %v1069
        %v2322 = vunpack.c.l.b16 %v1070
        %v2323 = vunpack.c.h.b16 %v1070
        %v2324 = vunpack.c.l.b16 %v1071
        %v2325 = vunpack.c.h.b16 %v1071
        %v2326 = vunpack.c.l.b16 %v1072
        %v2327 = vunpack.c.h.b16 %v1072
        %v2328 = vunpack.c.l.b16 %v1073
        %v2329 = vunpack.c.h.b16 %v1073
        %v2330 = vunpack.c.l.b16 %v1074
        %v2331 = vunpack.c.h.b16 %v1074
        %v2332 = vunpack.c.l.b16 %v1075
        %v2333 = vunpack.c.h.b16 %v1075
        %v2334 = vunpack.c.l.b16 %v1076
        %v2335 = vunpack.c.h.b16 %v1076
        %v2336 = vunpack.c.l.b16 %v1077
        %v2337 = vunpack.c.h.b16 %v1077
        %v2338 = vunpack.c.l.b16 %v1078
        %v2339 = vunpack.c.h.b16 %v1078
        %v2340 = vunpack.c.l.b16 %v1079
        %v2341 = vunpack.c.h.b16 %v1079
        %v2342 = vunpack.c.l.b16 %v1080
        %v2343 = vunpack.c.h.b16 %v1080
        %v2344 = vunpack.c.l.b16 %v1081
        %v2345 = vunpack.c.h.b16 %v1081
        %v2346 = vunpack.c.l.b16 %v1082
        %v2347 = vunpack.c.h.b16 %v1082
        %v2348 = vunpack.c.l.b16 %v1083
        %v2349 = vunpack.c.h.b16 %v1083
        %v2350 = vunpack.c.l.b16 %v1084
        %v2351 = vunpack.c.h.b16 %v1084
        %v2352 = vunpack.c.l.b16 %v1085
        %v2353 = vunpack.c.h.b16 %v1085
        %v2354 = vunpack.c.l.b16 %v1086
        %v2355 = vunpack.c.h.b16 %v1086
        %v2356 = vunpack.c.l.b16 %v1087
        %v2357 = vunpack.c.h.b16 %v1087
        %v2358 = vunpack.c.l.b16 %v1088
        %v2359 = vunpack.c.h.b16 %v1088
        %v2360 = vunpack.c.l.b16 %v1089
        %v2361 = vunpack.c.h.b16 %v1089
        %v2362 = vunpack.c.l.b16 %v1090
        %v2363 = vunpack.c.h.b16 %v1090
        %v2364 = vunpack.c.l.b16 %v1091
        %v2365 = vunpack.c.h.b16 %v1091
        %v2366 = vunpack.c.l.b16 %v1092
        %v2367 = vunpack.c.h.b16 %v1092
        %v2368 = vunpack.c.l.b16 %v1093
        %v2369 = vunpack.c.h.b16 %v1093
        %v2370 = vunpack.c.l.b16 %v1094
        %v2371 = vunpack.c.h.b16 %v1094
        %v2372 = vunpack.c.l.b16 %v1095
        %v2373 = vunpack.c.h.b16 %v1095
        %v2374 = vunpack.c.l.b16 %v1096
        %v2375 = vunpack.c.h.b16 %v1096
        %v2376 = vunpack.c.l.b16 %v1097
        %v2377 = vunpack.c.h.b16 %v1097
        %v2378 = vunpack.c.l.b16 %v1098
        %v2379 = vunpack.c.h.b16 %v1098
        %v2380 = vunpack.c.l.b16 %v1099
        %v2381 = vunpack.c.h.b16 %v1099
        %v2382 = vunpack.c.l.b16 %v1100
        %v2383 = vunpack.c.h.b16 %v1100
        %v2384 = vunpack.c.l.b16 %v1101
        %v2385 = vunpack.c.h.b16 %v1101
        %v2386 = vunpack.c.l.b16 %v1102
        %v2387 = vunpack.c.h.b16 %v1102
        %v2388 = vunpack.c.l.b16 %v1103
        %v2389 = vunpack.c.h.b16 %v1103
        %v2390 = vunpack.c.l.b16 %v1104
        %v2391 = vunpack.c.h.b16 %v1104
        %v2392 = vunpack.c.l.b16 %v1105
        %v2393 = vunpack.c.h.b16 %v1105
        %v2394 = vunpack.c.l.b16 %v1106
        %v2395 = vunpack.c.h.b16 %v1106
        %v2396 = vunpack.c.l.b16 %v1107
        %v2397 = vunpack.c.h.b16 %v1107
        %v2398 = vunpack.c.l.b16 %v1108
        %v2399 = vunpack.c.h.b16 %v1108
        %v2400 = vunpack.c.l.b16 %v1109
        %v2401 = vunpack.c.h.b16 %v1109
        %v2402 = vunpack.c.l.b16 %v1110
        %v2403 = vunpack.c.h.b16 %v1110
        %v2404 = vunpack.c.l.b16 %v1111
        %v2405 = vunpack.c.h.b16 %v1111
        %v2406 = vunpack.c.l.b16 %v1112
        %v2407 = vunpack.c.h.b16 %v1112
        %v2408 = vunpack.c.l.b16 %v1113
        %v2409 = vunpack.c.h.b16 %v1113
        %v2410 = vunpack.c.l.b16 %v1114
        %v2411 = vunpack.c.h.b16 %v1114
        %v2412 = vunpack.c.l.b16 %v1115
        %v2413 = vunpack.c.h.b16 %v1115
        %v2414 = vunpack.c.l.b16 %v1116
        %v2415 = vunpack.c.h.b16 %v1116
        %v2416 = vunpack.c.l.b16 %v1117
        %v2417 = vunpack.c.h.b16 %v1117
        %v2418 = vunpack.c.l.b16 %v1118
        %v2419 = vunpack.c.h.b16 %v1118
        %v2420 = vunpack.c.l.b16 %v1119
        %v2421 = vunpack.c.h.b16 %v1119
        %v2422 = vunpack.c.l.b16 %v1120
        %v2423 = vunpack.c.h.b16 %v1120
        %v2424 = vunpack.c.l.b16 %v1121
        %v2425 = vunpack.c.h.b16 %v1121
        %v2426 = vunpack.c.l.b16 %v1122
        %v2427 = vunpack.c.h.b16 %v1122
        %v2428 = vunpack.c.l.b16 %v1123
        %v2429 = vunpack.c.h.b16 %v1123
        %v2430 = vunpack.c.l.b16 %v1124
        %v2431 = vunpack.c.h.b16 %v1124
        %v2432 = vunpack.c.l.b16 %v1125
        %v2433 = vunpack.c.h.b16 %v1125
        %v2434 = vunpack.c.l.b16 %v1126
        %v2435 = vunpack.c.h.b16 %v1126
        %v2436 = vunpack.c.l.b16 %v1127
        %v2437 = vunpack.c.h.b16 %v1127
        %v2438 = vunpack.c.l.b16 %v1128
        %v2439 = vunpack.c.h.b16 %v1128
        %v2440 = vunpack.c.l.b16 %v1129
        %v2441 = vunpack.c.h.b16 %v1129
        %v2442 = vunpack.c.l.b16 %v1130
        %v2443 = vunpack.c.h.b16 %v1130
        %v2444 = vunpack.c.l.b16 %v1131
        %v2445 = vunpack.c.h.b16 %v1131
        %v2446 = vunpack.c.l.b16 %v1132
        %v2447 = vunpack.c.h.b16 %v1132
        %v2448 = vunpack.c.l.b16 %v1133
        %v2449 = vunpack.c.h.b16 %v1133
        %v2450 = vunpack.c.l.b16 %v1134
        %v2451 = vunpack.c.h.b16 %v1134
        %v2452 = vunpack.c.l.b16 %v1135
        %v2453 = vunpack.c.h.b16 %v1135
        %v2454 = vunpack.c.l.b16 %v1136
        %v2455 = vunpack.c.h.b16 %v1136
        %v2456 = vunpack.c.l.b16 %v1137
        %v2457 = vunpack.c.h.b16 %v1137
        %v2458 = vunpack.c.l.b16 %v1138
        %v2459 = vunpack.c.h.b16 %v1138
        %v2460 = vunpack.c.l.b16 %v1139
        %v2461 = vunpack.c.h.b16 %v1139
        %v2462 = vunpack.c.l.b16 %v1140
        %v2463 = vunpack.c.h.b16 %v1140
        %v2464 = vunpack.c.l.b16 %v1141
        %v2465 = vunpack.c.h.b16 %v1141
        %v2466 = vunpack.c.l.b16 %v1142
        %v2467 = vunpack.c.h.b16 %v1142
        %v2468 = vunpack.c.l.b16 %v1143
        %v2469 = vunpack.c.h.b16 %v1143
        %v2470 = vunpack.c.l.b16 %v1144
        %v2471 = vunpack.c.h.b16 %v1144
        %v2472 = vunpack.c.l.b16 %v1145
        %v2473 = vunpack.c.h.b16 %v1145
        %v2474 = vunpack.c.l.b16 %v1146
        %v2475 = vunpack.c.h.b16 %v1146
        %v2476 = vunpack.c.l.b16 %v1147
        %v2477 = vunpack.c.h.b16 %v1147
        %v2478 = vunpack.c.l.b16 %v1148
        %v2479 = vunpack.c.h.b16 %v1148
        %v2480 = vunpack.c.l.b16 %v1149
        %v2481 = vunpack.c.h.b16 %v1149
        %v2482 = vunpack.c.l.b16 %v1150
        %v2483 = vunpack.c.h.b16 %v1150
        %v2484 = vunpack.c.l.b16 %v1151
        %v2485 = vunpack.c.h.b16 %v1151
        %v2486 = vunpack.c.l.b16 %v1152
        %v2487 = vunpack.c.h.b16 %v1152
        %v2488 = vunpack.c.l.b16 %v1153
        %v2489 = vunpack.c.h.b16 %v1153
        %v2490 = vunpack.c.l.b16 %v1154
        %v2491 = vunpack.c.h.b16 %v1154
        %v2492 = vunpack.c.l.b16 %v1155
        %v2493 = vunpack.c.h.b16 %v1155
        %v2494 = vunpack.c.l.b16 %v1156
        %v2495 = vunpack.c.h.b16 %v1156
        %v2496 = vunpack.c.l.b16 %v1157
        %v2497 = vunpack.c.h.b16 %v1157
        %v2498 = vunpack.c.l.b16 %v1158
        %v2499 = vunpack.c.h.b16 %v1158
        %v2500 = vunpack.c.l.b16 %v1159
        %v2501 = vunpack.c.h.b16 %v1159
        %v2502 = vunpack.c.l.b16 %v1160
        %v2503 = vunpack.c.h.b16 %v1160
        %v2504 = vunpack.c.l.b16 %v1161
        %v2505 = vunpack.c.h.b16 %v1161
        %v2506 = vunpack.c.l.b16 %v1162
        %v2507 = vunpack.c.h.b16 %v1162
        %v2508 = vunpack.c.l.b16 %v1163
        %v2509 = vunpack.c.h.b16 %v1163
        %v2510 = vunpack.c.l.b16 %v1164
        %v2511 = vunpack.c.h.b16 %v1164
        %v2512 = vunpack.c.l.b16 %v1165
        %v2513 = vunpack.c.h.b16 %v1165
        %v2514 = vunpack.c.l.b16 %v1166
        %v2515 = vunpack.c.h.b16 %v1166
        %v2516 = vunpack.c.l.b16 %v1167
        %v2517 = vunpack.c.h.b16 %v1167
        %v2518 = vunpack.c.l.b16 %v1168
        %v2519 = vunpack.c.h.b16 %v1168
        %v2520 = vunpack.c.l.b16 %v1169
        %v2521 = vunpack.c.h.b16 %v1169
        %v2522 = vunpack.c.l.b16 %v1170
        %v2523 = vunpack.c.h.b16 %v1170
        %v2524 = vunpack.c.l.b16 %v1171
        %v2525 = vunpack.c.h.b16 %v1171
        %v2526 = vunpack.c.l.b16 %v1172
        %v2527 = vunpack.c.h.b16 %v1172
        %v2528 = vunpack.c.l.b16 %v1173
        %v2529 = vunpack.c.h.b16 %v1173
        %v2530 = vunpack.c.l.b16 %v1174
        %v2531 = vunpack.c.h.b16 %v1174
        %v2532 = vunpack.c.l.b16 %v1175
        %v2533 = vunpack.c.h.b16 %v1175
        %v2534 = vunpack.c.l.b16 %v1176
        %v2535 = vunpack.c.h.b16 %v1176
        %v2536 = vunpack.c.l.b16 %v1177
        %v2537 = vunpack.c.h.b16 %v1177
        %v2538 = vunpack.c.l.b16 %v1178
        %v2539 = vunpack.c.h.b16 %v1178
        %v2540 = vunpack.c.l.b16 %v1179
        %v2541 = vunpack.c.h.b16 %v1179
        %v2542 = vunpack.c.l.b16 %v1180
        %v2543 = vunpack.c.h.b16 %v1180
        %v2544 = vunpack.c.l.b16 %v1181
        %v2545 = vunpack.c.h.b16 %v1181
        %v2546 = vunpack.c.l.b16 %v1182
        %v2547 = vunpack.c.h.b16 %v1182
        %v2548 = vunpack.c.l.b16 %v1183
        %v2549 = vunpack.c.h.b16 %v1183
        %v2550 = vunpack.c.l.b16 %v1184
        %v2551 = vunpack.c.h.b16 %v1184
        %v2552 = vunpack.c.l.b16 %v1185
        %v2553 = vunpack.c.h.b16 %v1185
        %v2554 = vunpack.c.l.b16 %v1186
        %v2555 = vunpack.c.h.b16 %v1186
        %v2556 = vunpack.c.l.b16 %v1187
        %v2557 = vunpack.c.h.b16 %v1187
        %v2558 = vunpack.c.l.b16 %v1188
        %v2559 = vunpack.c.h.b16 %v1188
        %v2560 = vunpack.c.l.b16 %v1189
        %v2561 = vunpack.c.h.b16 %v1189
        %v2562 = vunpack.c.l.b16 %v1190
        %v2563 = vunpack.c.h.b16 %v1190
        %v2564 = vunpack.c.l.b16 %v1191
        %v2565 = vunpack.c.h.b16 %v1191
        %v2566 = vunpack.c.l.b16 %v1192
        %v2567 = vunpack.c.h.b16 %v1192
        %v2568 = vunpack.c.l.b16 %v1193
        %v2569 = vunpack.c.h.b16 %v1193
        %v2570 = vunpack.c.l.b16 %v1194
        %v2571 = vunpack.c.h.b16 %v1194
        %v2572 = vunpack.c.l.b16 %v1195
        %v2573 = vunpack.c.h.b16 %v1195
        %v2574 = vunpack.c.l.b16 %v1196
        %v2575 = vunpack.c.h.b16 %v1196
        %v2576 = vunpack.c.l.b16 %v1197
        %v2577 = vunpack.c.h.b16 %v1197
        %v2578 = vunpack.c.l.b16 %v1198
        %v2579 = vunpack.c.h.b16 %v1198
        %v2580 = vunpack.c.l.b16 %v1199
        %v2581 = vunpack.c.h.b16 %v1199
        %v2582 = vunpack.c.l.b16 %v1200
        %v2583 = vunpack.c.h.b16 %v1200
        %v2584 = vunpack.c.l.b16 %v1201
        %v2585 = vunpack.c.h.b16 %v1201
        %v2586 = vunpack.c.l.b16 %v1202
        %v2587 = vunpack.c.h.b16 %v1202
        %v2588 = vunpack.c.l.b16 %v1203
        %v2589 = vunpack.c.h.b16 %v1203
        %v2590 = vunpack.c.l.b16 %v1204
        %v2591 = vunpack.c.h.b16 %v1204
        %v2592 = vunpack.c.l.b16 %v1205
        %v2593 = vunpack.c.h.b16 %v1205
        %v2594 = vunpack.c.l.b16 %v1206
        %v2595 = vunpack.c.h.b16 %v1206
        %v2596 = vunpack.c.l.b16 %v1207
        %v2597 = vunpack.c.h.b16 %v1207
        %v2598 = vunpack.c.l.b16 %v1208
        %v2599 = vunpack.c.h.b16 %v1208
        %v2600 = vunpack.c.l.b16 %v1209
        %v2601 = vunpack.c.h.b16 %v1209
        %v2602 = vunpack.c.l.b16 %v1210
        %v2603 = vunpack.c.h.b16 %v1210
        %v2604 = vunpack.c.l.b16 %v1211
        %v2605 = vunpack.c.h.b16 %v1211
        %v2606 = vunpack.c.l.b16 %v1212
        %v2607 = vunpack.c.h.b16 %v1212
        %v2608 = vunpack.c.l.b16 %v1213
        %v2609 = vunpack.c.h.b16 %v1213
        %v2610 = vunpack.c.l.b16 %v1214
        %v2611 = vunpack.c.h.b16 %v1214
        %v2612 = vunpack.c.l.b16 %v1215
        %v2613 = vunpack.c.h.b16 %v1215
        %v2614 = vunpack.c.l.b16 %v1216
        %v2615 = vunpack.c.h.b16 %v1216
        %v2616 = vunpack.c.l.b16 %v1217
        %v2617 = vunpack.c.h.b16 %v1217
        %v2618 = vunpack.c.l.b16 %v1218
        %v2619 = vunpack.c.h.b16 %v1218
        %v2620 = vunpack.c.l.b16 %v1219
        %v2621 = vunpack.c.h.b16 %v1219
        %v2622 = vunpack.c.l.b16 %v1220
        %v2623 = vunpack.c.h.b16 %v1220
        %v2624 = vunpack.c.l.b16 %v1221
        %v2625 = vunpack.c.h.b16 %v1221
        %v2626 = vunpack.c.l.b16 %v1222
        %v2627 = vunpack.c.h.b16 %v1222
        %v2628 = vunpack.c.l.b16 %v1223
        %v2629 = vunpack.c.h.b16 %v1223
        %v2630 = vunpack.c.l.b16 %v1224
        %v2631 = vunpack.c.h.b16 %v1224
        %v2632 = vunpack.c.l.b16 %v1225
        %v2633 = vunpack.c.h.b16 %v1225
        %v2634 = vunpack.c.l.b16 %v1226
        %v2635 = vunpack.c.h.b16 %v1226
        %v2636 = vunpack.c.l.b16 %v1227
        %v2637 = vunpack.c.h.b16 %v1227
        %v2638 = vunpack.c.l.b16 %v1228
        %v2639 = vunpack.c.h.b16 %v1228
        %v2640 = vunpack.c.l.b16 %v1229
        %v2641 = vunpack.c.h.b16 %v1229
        %v2642 = vunpack.c.l.b16 %v1230
        %v2643 = vunpack.c.h.b16 %v1230
        %v2644 = vunpack.c.l.b16 %v1231
        %v2645 = vunpack.c.h.b16 %v1231
        %v2646 = vunpack.c.l.b16 %v1232
        %v2647 = vunpack.c.h.b16 %v1232
        %v2648 = vunpack.c.l.b16 %v1233
        %v2649 = vunpack.c.h.b16 %v1233
        %v2650 = vunpack.c.l.b16 %v1234
        %v2651 = vunpack.c.h.b16 %v1234
        %v2652 = vunpack.c.l.b16 %v1235
        %v2653 = vunpack.c.h.b16 %v1235
        %v2654 = vunpack.c.l.b16 %v1236
        %v2655 = vunpack.c.h.b16 %v1236
        %v2656 = vunpack.c.l.b16 %v1237
        %v2657 = vunpack.c.h.b16 %v1237
        %v2658 = vunpack.c.l.b16 %v1238
        %v2659 = vunpack.c.h.b16 %v1238
        %v2660 = vunpack.c.l.b16 %v1239
        %v2661 = vunpack.c.h.b16 %v1239
        %v2662 = vunpack.c.l.b16 %v1240
        %v2663 = vunpack.c.h.b16 %v1240
        %v2664 = vunpack.c.l.b16 %v1241
        %v2665 = vunpack.c.h.b16 %v1241
        %v2666 = vunpack.c.l.b16 %v1242
        %v2667 = vunpack.c.h.b16 %v1242
        %v2668 = vunpack.c.l.b16 %v1243
        %v2669 = vunpack.c.h.b16 %v1243
        %v2670 = vunpack.c.l.b16 %v1244
        %v2671 = vunpack.c.h.b16 %v1244
        %v2672 = vunpack.c.l.b16 %v1245
        %v2673 = vunpack.c.h.b16 %v1245
        %v2674 = vunpack.c.l.b16 %v1246
        %v2675 = vunpack.c.h.b16 %v1246
        %v2676 = vunpack.c.l.b16 %v1247
        %v2677 = vunpack.c.h.b16 %v1247
        %v2678 = vunpack.c.l.b16 %v1248
        %v2679 = vunpack.c.h.b16 %v1248
        %v2680 = vunpack.c.l.b16 %v1249
        %v2681 = vunpack.c.h.b16 %v1249
        %v2682 = vunpack.c.l.b16 %v1250
        %v2683 = vunpack.c.h.b16 %v1250
        %v2684 = vunpack.c.l.b16 %v1251
        %v2685 = vunpack.c.h.b16 %v1251
        %v2686 = vunpack.c.l.b16 %v1252
        %v2687 = vunpack.c.h.b16 %v1252
        %v2688 = vunpack.c.l.b16 %v1253
        %v2689 = vunpack.c.h.b16 %v1253
        %v2690 = vunpack.c.l.b16 %v1254
        %v2691 = vunpack.c.h.b16 %v1254
        %v2692 = vunpack.c.l.b16 %v1255
        %v2693 = vunpack.c.h.b16 %v1255
        %v2694 = vunpack.c.l.b16 %v1256
        %v2695 = vunpack.c.h.b16 %v1256
        %v2696 = vunpack.c.l.b16 %v1257
        %v2697 = vunpack.c.h.b16 %v1257
        %v2698 = vunpack.c.l.b16 %v1258
        %v2699 = vunpack.c.h.b16 %v1258
        %v2700 = vunpack.c.l.b16 %v1259
        %v2701 = vunpack.c.h.b16 %v1259
        %v2702 = vunpack.c.l.b16 %v1260
        %v2703 = vunpack.c.h.b16 %v1260
        %v2704 = vunpack.c.l.b16 %v1261
        %v2705 = vunpack.c.h.b16 %v1261
        %v2706 = vunpack.c.l.b16 %v1262
        %v2707 = vunpack.c.h.b16 %v1262
        %v2708 = vunpack.c.l.b16 %v1263
        %v2709 = vunpack.c.h.b16 %v1263
        %v2710 = vunpack.c.l.b16 %v1264
        %v2711 = vunpack.c.h.b16 %v1264
        %v2712 = vunpack.c.l.b16 %v1265
        %v2713 = vunpack.c.h.b16 %v1265
        %v2714 = vunpack.c.l.b16 %v1266
        %v2715 = vunpack.c.h.b16 %v1266
        %v2716 = vunpack.c.l.b16 %v1267
        %v2717 = vunpack.c.h.b16 %v1267
        %v2718 = vunpack.c.l.b16 %v1268
        %v2719 = vunpack.c.h.b16 %v1268
        %v2720 = vunpack.c.l.b16 %v1269
        %v2721 = vunpack.c.h.b16 %v1269
        %v2722 = vunpack.c.l.b16 %v1270
        %v2723 = vunpack.c.h.b16 %v1270
        %v2724 = vunpack.c.l.b16 %v1271
        %v2725 = vunpack.c.h.b16 %v1271
        %v2726 = vunpack.c.l.b16 %v1272
        %v2727 = vunpack.c.h.b16 %v1272
        %v2728 = vunpack.c.l.b16 %v1273
        %v2729 = vunpack.c.h.b16 %v1273
        %v2730 = vunpack.c.l.b16 %v1274
        %v2731 = vunpack.c.h.b16 %v1274
        %v2732 = vunpack.c.l.b16 %v1275
        %v2733 = vunpack.c.h.b16 %v1275
        %v2734 = vunpack.c.l.b16 %v1276
        %v2735 = vunpack.c.h.b16 %v1276
        %v2736 = vunpack.c.l.b16 %v1277
        %v2737 = vunpack.c.h.b16 %v1277
        %v2738 = vunpack.c.l.b16 %v1278
        %v2739 = vunpack.c.h.b16 %v1278
        %v2740 = vunpack.c.l.b16 %v1279
        %v2741 = vunpack.c.h.b16 %v1279
        %v2742 = vunpack.c.l.b16 %v1280
        %v2743 = vunpack.c.h.b16 %v1280
        %v2744 = vunpack.c.l.b16 %v1281
        %v2745 = vunpack.c.h.b16 %v1281
        %v2746 = vunpack.c.l.b16 %v1282
        %v2747 = vunpack.c.h.b16 %v1282
        %v2748 = vunpack.c.l.b16 %v1283
        %v2749 = vunpack.c.h.b16 %v1283
        %v2750 = vunpack.c.l.b16 %v1284
        %v2751 = vunpack.c.h.b16 %v1284
        %v2752 = vunpack.c.l.b16 %v1285
        %v2753 = vunpack.c.h.b16 %v1285
        %v2754 = vunpack.c.l.b16 %v1286
        %v2755 = vunpack.c.h.b16 %v1286
        %v2756 = vunpack.c.l.b16 %v1287
        %v2757 = vunpack.c.h.b16 %v1287
        %v2758 = vunpack.c.l.b16 %v1288
        %v2759 = vunpack.c.h.b16 %v1288
        %v2760 = vunpack.c.l.b16 %v1289
        %v2761 = vunpack.c.h.b16 %v1289
        %v2762 = vunpack.c.l.b16 %v1290
        %v2763 = vunpack.c.h.b16 %v1290
        %v2764 = vunpack.c.l.b16 %v1291
        %v2765 = vunpack.c.h.b16 %v1291
        %v2766 = vunpack.c.l.b16 %v1292
        %v2767 = vunpack.c.h.b16 %v1292
        %v2768 = vunpack.c.l.b16 %v1293
        %v2769 = vunpack.c.h.b16 %v1293
        %v2770 = vunpack.c.l.b16 %v1294
        %v2771 = vunpack.c.h.b16 %v1294
        %v2772 = vunpack.c.l.b16 %v1295
        %v2773 = vunpack.c.h.b16 %v1295
        %v2774 = vunpack.c.l.b16 %v1296
        %v2775 = vunpack.c.h.b16 %v1296
        %v2776 = vunpack.c.l.b16 %v1297
        %v2777 = vunpack.c.h.b16 %v1297
        %v2778 = vunpack.c.l.b16 %v1298
        %v2779 = vunpack.c.h.b16 %v1298
        %v2780 = vunpack.c.l.b16 %v1299
        %v2781 = vunpack.c.h.b16 %v1299
        %v2782 = vunpack.c.l.b16 %v1300
        %v2783 = vunpack.c.h.b16 %v1300
        %v2784 = vunpack.c.l.b16 %v1301
        %v2785 = vunpack.c.h.b16 %v1301
        %v2786 = vunpack.c.l.b16 %v1302
        %v2787 = vunpack.c.h.b16 %v1302
        %v2788 = vunpack.c.l.b16 %v1303
        %v2789 = vunpack.c.h.b16 %v1303
        %v2790 = vunpack.c.l.b16 %v1304
        %v2791 = vunpack.c.h.b16 %v1304
        %v2792 = vunpack.c.l.b16 %v1305
        %v2793 = vunpack.c.h.b16 %v1305
        %v2794 = vunpack.c.l.b16 %v1306
        %v2795 = vunpack.c.h.b16 %v1306
        %v2796 = vunpack.c.l.b16 %v1307
        %v2797 = vunpack.c.h.b16 %v1307
        %v2798 = vunpack.c.l.b16 %v1308
        %v2799 = vunpack.c.h.b16 %v1308
        %v2800 = vunpack.c.l.b16 %v1309
        %v2801 = vunpack.c.h.b16 %v1309
        %v2802 = vunpack.c.l.b16 %v1310
        %v2803 = vunpack.c.h.b16 %v1310
        %v2804 = vunpack.c.l.b16 %v1311
        %v2805 = vunpack.c.h.b16 %v1311
        %v2806 = vunpack.c.l.b16 %v1312
        %v2807 = vunpack.c.h.b16 %v1312
        %v2808 = vunpack.c.l.b16 %v1313
        %v2809 = vunpack.c.h.b16 %v1313
        %v2810 = vunpack.c.l.b16 %v1314
        %v2811 = vunpack.c.h.b16 %v1314
        %v2812 = vunpack.c.l.b16 %v1315
        %v2813 = vunpack.c.h.b16 %v1315
        %v2814 = vunpack.c.l.b16 %v1316
        %v2815 = vunpack.c.h.b16 %v1316
        %v2816 = vunpack.c.l.b16 %v1317
        %v2817 = vunpack.c.h.b16 %v1317
        %v2818 = vunpack.c.l.b16 %v1318
        %v2819 = vunpack.c.h.b16 %v1318
        %v2820 = vunpack.c.l.b16 %v1319
        %v2821 = vunpack.c.h.b16 %v1319
        %v2822 = vunpack.c.l.b16 %v1320
        %v2823 = vunpack.c.h.b16 %v1320
        %v2824 = vunpack.c.l.b16 %v1321
        %v2825 = vunpack.c.h.b16 %v1321
        %v2826 = vunpack.c.l.b16 %v1322
        %v2827 = vunpack.c.h.b16 %v1322
        %v2828 = vunpack.c.l.b16 %v1323
        %v2829 = vunpack.c.h.b16 %v1323
        %v2830 = vunpack.c.l.b16 %v1324
        %v2831 = vunpack.c.h.b16 %v1324
        %v2832 = vunpack.c.l.b16 %v1325
        %v2833 = vunpack.c.h.b16 %v1325
        %v2834 = vunpack.c.l.b16 %v1326
        %v2835 = vunpack.c.h.b16 %v1326
        %v2836 = vunpack.c.l.b16 %v1327
        %v2837 = vunpack.c.h.b16 %v1327
        %v2838 = vunpack.c.l.b16 %v1328
        %v2839 = vunpack.c.h.b16 %v1328
        %v2840 = vunpack.c.l.b16 %v1329
        %v2841 = vunpack.c.h.b16 %v1329
        %v2842 = vunpack.c.l.b16 %v1330
        %v2843 = vunpack.c.h.b16 %v1330
        %v2844 = vunpack.c.l.b16 %v1331
        %v2845 = vunpack.c.h.b16 %v1331
        %v2846 = vunpack.c.l.b16 %v1332
        %v2847 = vunpack.c.h.b16 %v1332
        %v2848 = vunpack.c.l.b16 %v1333
        %v2849 = vunpack.c.h.b16 %v1333
        %v2850 = vunpack.c.l.b16 %v1334
        %v2851 = vunpack.c.h.b16 %v1334
        %v2852 = vunpack.c.l.b16 %v1335
        %v2853 = vunpack.c.h.b16 %v1335
        %v2854 = vunpack.c.l.b16 %v1336
        %v2855 = vunpack.c.h.b16 %v1336
        %v2856 = vunpack.c.l.b16 %v1337
        %v2857 = vunpack.c.h.b16 %v1337
        %v2858 = vunpack.c.l.b16 %v1338
        %v2859 = vunpack.c.h.b16 %v1338
        %v2860 = vunpack.c.l.b16 %v1339
        %v2861 = vunpack.c.h.b16 %v1339
        %v2862 = vunpack.c.l.b16 %v1340
        %v2863 = vunpack.c.h.b16 %v1340
        %v2864 = vunpack.c.l.b16 %v1341
        %v2865 = vunpack.c.h.b16 %v1341
        %v2866 = vunpack.c.l.b16 %v1342
        %v2867 = vunpack.c.h.b16 %v1342
        %v2868 = vunpack.c.l.b16 %v1343
        %v2869 = vunpack.c.h.b16 %v1343
        %v2870 = vunpack.c.l.b16 %v1344
        %v2871 = vunpack.c.h.b16 %v1344
        %v2872 = vunpack.c.l.b16 %v1345
        %v2873 = vunpack.c.h.b16 %v1345
        %v2874 = vunpack.c.l.b16 %v1346
        %v2875 = vunpack.c.h.b16 %v1346
        %v2876 = vunpack.c.l.b16 %v1347
        %v2877 = vunpack.c.h.b16 %v1347
        %v2878 = vunpack.c.l.b16 %v1348
        %v2879 = vunpack.c.h.b16 %v1348
        %v2880 = vunpack.c.l.b16 %v1349
        %v2881 = vunpack.c.h.b16 %v1349
        %v2882 = vunpack.c.l.b16 %v1350
        %v2883 = vunpack.c.h.b16 %v1350
        %v2884 = vunpack.c.l.b16 %v1351
        %v2885 = vunpack.c.h.b16 %v1351
        %v2886 = vunpack.c.l.b16 %v1352
        %v2887 = vunpack.c.h.b16 %v1352
        %v2888 = vunpack.c.l.b16 %v1353
        %v2889 = vunpack.c.h.b16 %v1353
        %v2890 = vpack.c.b16 %v1874, %v1866
        %v2891 = vpack.c.b16 %v1875, %v1867
        %v2892 = vpack.c.b16 %v1876, %v1868
        %v2893 = vpack.c.b16 %v1877, %v1869
        %v2894 = vpack.c.b16 %v1878, %v1870
        %v2895 = vpack.c.b16 %v1879, %v1871
        %v2896 = vpack.c.b16 %v1880, %v1872
        %v2897 = vpack.c.b16 %v1881, %v1873
        %v2898 = vpack.c.b16 %v1890, %v1882
        %v2899 = vpack.c.b16 %v1891, %v1883
        %v2900 = vpack.c.b16 %v1892, %v1884
        %v2901 = vpack.c.b16 %v1893, %v1885
        %v2902 = vpack.c.b16 %v1894, %v1886
        %v2903 = vpack.c.b16 %v1895, %v1887
        %v2904 = vpack.c.b16 %v1896, %v1888
        %v2905 = vpack.c.b16 %v1897, %v1889
        %v2906 = vpack.c.b16 %v1906, %v1898
        %v2907 = vpack.c.b16 %v1907, %v1899
        %v2908 = vpack.c.b16 %v1908, %v1900
        %v2909 = vpack.c.b16 %v1909, %v1901
        %v2910 = vpack.c.b16 %v1910, %v1902
        %v2911 = vpack.c.b16 %v1911, %v1903
        %v2912 = vpack.c.b16 %v1912, %v1904
        %v2913 = vpack.c.b16 %v1913, %v1905
        %v2914 = vpack.c.b16 %v1922, %v1914
        %v2915 = vpack.c.b16 %v1923, %v1915
        %v2916 = vpack.c.b16 %v1924, %v1916
        %v2917 = vpack.c.b16 %v1925, %v1917
        %v2918 = vpack.c.b16 %v1926, %v1918
        %v2919 = vpack.c.b16 %v1927, %v1919
        %v2920 = vpack.c.b16 %v1928, %v1920
        %v2921 = vpack.c.b16 %v1929, %v1921
        %v2922 = vpack.c.b16 %v1938, %v1930
        %v2923 = vpack.c.b16 %v1939, %v1931
        %v2924 = vpack.c.b16 %v1940, %v1932
        %v2925 = vpack.c.b16 %v1941, %v1933
        %v2926 = vpack.c.b16 %v1942, %v1934
        %v2927 = vpack.c.b16 %v1943, %v1935
        %v2928 = vpack.c.b16 %v1944, %v1936
        %v2929 = vpack.c.b16 %v1945, %v1937
        %v2930 = vpack.c.b16 %v1954, %v1946
        %v2931 = vpack.c.b16 %v1955, %v1947
        %v2932 = vpack.c.b16 %v1956, %v1948
        %v2933 = vpack.c.b16 %v1957, %v1949
        %v2934 = vpack.c.b16 %v1958, %v1950
        %v2935 = vpack.c.b16 %v1959, %v1951
        %v2936 = vpack.c.b16 %v1960, %v1952
        %v2937 = vpack.c.b16 %v1961, %v1953
        %v2938 = vpack.c.b16 %v1970, %v1962
        %v2939 = vpack.c.b16 %v1971, %v1963
        %v2940 = vpack.c.b16 %v1972, %v1964
        %v2941 = vpack.c.b16 %v1973, %v1965
        %v2942 = vpack.c.b16 %v1974, %v1966
        %v2943 = vpack.c.b16 %v1975, %v1967
        %v2944 = vpack.c.b16 %v1976, %v1968
        %v2945 = vpack.c.b16 %v1977, %v1969
        %v2946 = vpack.c.b16 %v1986, %v1978
        %v2947 = vpack.c.b16 %v1987, %v1979
        %v2948 = vpack.c.b16 %v1988, %v1980
        %v2949 = vpack.c.b16 %v1989, %v1981
        %v2950 = vpack.c.b16 %v1990, %v1982
        %v2951 = vpack.c.b16 %v1991, %v1983
        %v2952 = vpack.c.b16 %v1992, %v1984
        %v2953 = vpack.c.b16 %v1993, %v1985
        %v2954 = vpack.c.b16 %v2002, %v1994
        %v2955 = vpack.c.b16 %v2003, %v1995
        %v2956 = vpack.c.b16 %v2004, %v1996
        %v2957 = vpack.c.b16 %v2005, %v1997
        %v2958 = vpack.c.b16 %v2006, %v1998
        %v2959 = vpack.c.b16 %v2007, %v1999
        %v2960 = vpack.c.b16 %v2008, %v2000
        %v2961 = vpack.c.b16 %v2009, %v2001
        %v2962 = vpack.c.b16 %v2018, %v2010
        %v2963 = vpack.c.b16 %v2019, %v2011
        %v2964 = vpack.c.b16 %v2020, %v2012
        %v2965 = vpack.c.b16 %v2021, %v2013
        %v2966 = vpack.c.b16 %v2022, %v2014
        %v2967 = vpack.c.b16 %v2023, %v2015
        %v2968 = vpack.c.b16 %v2024, %v2016
        %v2969 = vpack.c.b16 %v2025, %v2017
        %v2970 = vpack.c.b16 %v2034, %v2026
        %v2971 = vpack.c.b16 %v2035, %v2027
        %v2972 = vpack.c.b16 %v2036, %v2028
        %v2973 = vpack.c.b16 %v2037, %v2029
        %v2974 = vpack.c.b16 %v2038, %v2030
        %v2975 = vpack.c.b16 %v2039, %v2031
        %v2976 = vpack.c.b16 %v2040, %v2032
        %v2977 = vpack.c.b16 %v2041, %v2033
        %v2978 = vpack.c.b16 %v2050, %v2042
        %v2979 = vpack.c.b16 %v2051, %v2043
        %v2980 = vpack.c.b16 %v2052, %v2044
        %v2981 = vpack.c.b16 %v2053, %v2045
        %v2982 = vpack.c.b16 %v2054, %v2046
        %v2983 = vpack.c.b16 %v2055, %v2047
        %v2984 = vpack.c.b16 %v2056, %v2048
        %v2985 = vpack.c.b16 %v2057, %v2049
        %v2986 = vpack.c.b16 %v2066, %v2058
        %v2987 = vpack.c.b16 %v2067, %v2059
        %v2988 = vpack.c.b16 %v2068, %v2060
        %v2989 = vpack.c.b16 %v2069, %v2061
        %v2990 = vpack.c.b16 %v2070, %v2062
        %v2991 = vpack.c.b16 %v2071, %v2063
        %v2992 = vpack.c.b16 %v2072, %v2064
        %v2993 = vpack.c.b16 %v2073, %v2065
        %v2994 = vpack.c.b16 %v2082, %v2074
        %v2995 = vpack.c.b16 %v2083, %v2075
        %v2996 = vpack.c.b16 %v2084, %v2076
        %v2997 = vpack.c.b16 %v2085, %v2077
        %v2998 = vpack.c.b16 %v2086, %v2078
        %v2999 = vpack.c.b16 %v2087, %v2079
        %v3000 = vpack.c.b16 %v2088, %v2080
        %v3001 = vpack.c.b16 %v2089, %v2081
        %v3002 = vpack.c.b16 %v2098, %v2090
        %v3003 = vpack.c.b16 %v2099, %v2091
        %v3004 = vpack.c.b16 %v2100, %v2092
        %v3005 = vpack.c.b16 %v2101, %v2093
        %v3006 = vpack.c.b16 %v2102, %v2094
        %v3007 = vpack.c.b16 %v2103, %v2095
        %v3008 = vpack.c.b16 %v2104, %v2096
        %v3009 = vpack.c.b16 %v2105, %v2097
        %v3010 = vpack.c.b16 %v2114, %v2106
        %v3011 = vpack.c.b16 %v2115, %v2107
        %v3012 = vpack.c.b16 %v2116, %v2108
        %v3013 = vpack.c.b16 %v2117, %v2109
        %v3014 = vpack.c.b16 %v2118, %v2110
        %v3015 = vpack.c.b16 %v2119, %v2111
        %v3016 = vpack.c.b16 %v2120, %v2112
        %v3017 = vpack.c.b16 %v2121, %v2113
        %v3018 = vpack.c.b16 %v2130, %v2122
        %v3019 = vpack.c.b16 %v2131, %v2123
        %v3020 = vpack.c.b16 %v2132, %v2124
        %v3021 = vpack.c.b16 %v2133, %v2125
        %v3022 = vpack.c.b16 %v2134, %v2126
        %v3023 = vpack.c.b16 %v2135, %v2127
        %v3024 = vpack.c.b16 %v2136, %v2128
        %v3025 = vpack.c.b16 %v2137, %v2129
        %v3026 = vpack.c.b16 %v2146, %v2138
        %v3027 = vpack.c.b16 %v2147, %v2139
        %v3028 = vpack.c.b16 %v2148, %v2140
        %v3029 = vpack.c.b16 %v2149, %v2141
        %v3030 = vpack.c.b16 %v2150, %v2142
        %v3031 = vpack.c.b16 %v2151, %v2143
        %v3032 = vpack.c.b16 %v2152, %v2144
        %v3033 = vpack.c.b16 %v2153, %v2145
        %v3034 = vpack.c.b16 %v2162, %v2154
        %v3035 = vpack.c.b16 %v2163, %v2155
        %v3036 = vpack.c.b16 %v2164, %v2156
        %v3037 = vpack.c.b16 %v2165, %v2157
        %v3038 = vpack.c.b16 %v2166, %v2158
        %v3039 = vpack.c.b16 %v2167, %v2159
        %v3040 = vpack.c.b16 %v2168, %v2160
        %v3041 = vpack.c.b16 %v2169, %v2161
        %v3042 = vpack.c.b16 %v2178, %v2170
        %v3043 = vpack.c.b16 %v2179, %v2171
        %v3044 = vpack.c.b16 %v2180, %v2172
        %v3045 = vpack.c.b16 %v2181, %v2173
        %v3046 = vpack.c.b16 %v2182, %v2174
        %v3047 = vpack.c.b16 %v2183, %v2175
        %v3048 = vpack.c.b16 %v2184, %v2176
        %v3049 = vpack.c.b16 %v2185, %v2177
        %v3050 = vpack.c.b16 %v2194, %v2186
        %v3051 = vpack.c.b16 %v2195, %v2187
        %v3052 = vpack.c.b16 %v2196, %v2188
        %v3053 = vpack.c.b16 %v2197, %v2189
        %v3054 = vpack.c.b16 %v2198, %v2190
        %v3055 = vpack.c.b16 %v2199, %v2191
        %v3056 = vpack.c.b16 %v2200, %v2192
        %v3057 = vpack.c.b16 %v2201, %v2193
        %v3058 = vpack.c.b16 %v2210, %v2202
        %v3059 = vpack.c.b16 %v2211, %v2203
        %v3060 = vpack.c.b16 %v2212, %v2204
        %v3061 = vpack.c.b16 %v2213, %v2205
        %v3062 = vpack.c.b16 %v2214, %v2206
        %v3063 = vpack.c.b16 %v2215, %v2207
        %v3064 = vpack.c.b16 %v2216, %v2208
        %v3065 = vpack.c.b16 %v2217, %v2209
        %v3066 = vpack.c.b16 %v2226, %v2218
        %v3067 = vpack.c.b16 %v2227, %v2219
        %v3068 = vpack.c.b16 %v2228, %v2220
        %v3069 = vpack.c.b16 %v2229, %v2221
        %v3070 = vpack.c.b16 %v2230, %v2222
        %v3071 = vpack.c.b16 %v2231, %v2223
        %v3072 = vpack.c.b16 %v2232, %v2224
        %v3073 = vpack.c.b16 %v2233, %v2225
        %v3074 = vpack.c.b16 %v2242, %v2234
        %v3075 = vpack.c.b16 %v2243, %v2235
        %v3076 = vpack.c.b16 %v2244, %v2236
        %v3077 = vpack.c.b16 %v2245, %v2237
        %v3078 = vpack.c.b16 %v2246, %v2238
        %v3079 = vpack.c.b16 %v2247, %v2239
        %v3080 = vpack.c.b16 %v2248, %v2240
        %v3081 = vpack.c.b16 %v2249, %v2241
        %v3082 = vpack.c.b16 %v2258, %v2250
        %v3083 = vpack.c.b16 %v2259, %v2251
        %v3084 = vpack.c.b16 %v2260, %v2252
        %v3085 = vpack.c.b16 %v2261, %v2253
        %v3086 = vpack.c.b16 %v2262, %v2254
        %v3087 = vpack.c.b16 %v2263, %v2255
        %v3088 = vpack.c.b16 %v2264, %v2256
        %v3089 = vpack.c.b16 %v2265, %v2257
        %v3090 = vpack.c.b16 %v2274, %v2266
        %v3091 = vpack.c.b16 %v2275, %v2267
        %v3092 = vpack.c.b16 %v2276, %v2268
        %v3093 = vpack.c.b16 %v2277, %v2269
        %v3094 = vpack.c.b16 %v2278, %v2270
        %v3095 = vpack.c.b16 %v2279, %v2271
        %v3096 = vpack.c.b16 %v2280, %v2272
        %v3097 = vpack.c.b16 %v2281, %v2273
        %v3098 = vpack.c.b16 %v2290, %v2282
        %v3099 = vpack.c.b16 %v2291, %v2283
        %v3100 = vpack.c.b16 %v2292, %v2284
        %v3101 = vpack.c.b16 %v2293, %v2285
        %v3102 = vpack.c.b16 %v2294, %v2286
        %v3103 = vpack.c.b16 %v2295, %v2287
        %v3104 = vpack.c.b16 %v2296, %v2288
        %v3105 = vpack.c.b16 %v2297, %v2289
        %v3106 = vpack.c.b16 %v2306, %v2298
        %v3107 = vpack.c.b16 %v2307, %v2299
        %v3108 = vpack.c.b16 %v2308, %v2300
        %v3109 = vpack.c.b16 %v2309, %v2301
        %v3110 = vpack.c.b16 %v2310, %v2302
        %v3111 = vpack.c.b16 %v2311, %v2303
        %v3112 = vpack.c.b16 %v2312, %v2304
        %v3113 = vpack.c.b16 %v2313, %v2305
        %v3114 = vpack.c.b16 %v2322, %v2314
        %v3115 = vpack.c.b16 %v2323, %v2315
        %v3116 = vpack.c.b16 %v2324, %v2316
        %v3117 = vpack.c.b16 %v2325, %v2317
        %v3118 = vpack.c.b16 %v2326, %v2318
        %v3119 = vpack.c.b16 %v2327, %v2319
        %v3120 = vpack.c.b16 %v2328, %v2320
        %v3121 = vpack.c.b16 %v2329, %v2321
        %v3122 = vpack.c.b16 %v2338, %v2330
        %v3123 = vpack.c.b16 %v2339, %v2331
        %v3124 = vpack.c.b16 %v2340, %v2332
        %v3125 = vpack.c.b16 %v2341, %v2333
        %v3126 = vpack.c.b16 %v2342, %v2334
        %v3127 = vpack.c.b16 %v2343, %v2335
        %v3128 = vpack.c.b16 %v2344, %v2336
        %v3129 = vpack.c.b16 %v2345, %v2337
        %v3130 = vpack.c.b16 %v2354, %v2346
        %v3131 = vpack.c.b16 %v2355, %v2347
        %v3132 = vpack.c.b16 %v2356, %v2348
        %v3133 = vpack.c.b16 %v2357, %v2349
        %v3134 = vpack.c.b16 %v2358, %v2350
        %v3135 = vpack.c.b16 %v2359, %v2351
        %v3136 = vpack.c.b16 %v2360, %v2352
        %v3137 = vpack.c.b16 %v2361, %v2353
        %v3138 = vpack.c.b16 %v2370, %v2362
        %v3139 = vpack.c.b16 %v2371, %v2363
        %v3140 = vpack.c.b16 %v2372, %v2364
        %v3141 = vpack.c.b16 %v2373, %v2365
        %v3142 = vpack.c.b16 %v2374, %v2366
        %v3143 = vpack.c.b16 %v2375, %v2367
        %v3144 = vpack.c.b16 %v2376, %v2368
        %v3145 = vpack.c.b16 %v2377, %v2369
        %v3146 = vpack.c.b16 %v2386, %v2378
        %v3147 = vpack.c.b16 %v2387, %v2379
        %v3148 = vpack.c.b16 %v2388, %v2380
        %v3149 = vpack.c.b16 %v2389, %v2381
        %v3150 = vpack.c.b16 %v2390, %v2382
        %v3151 = vpack.c.b16 %v2391, %v2383
        %v3152 = vpack.c.b16 %v2392, %v2384
        %v3153 = vpack.c.b16 %v2393, %v2385
        %v3154 = vpack.c.b16 %v2402, %v2394
        %v3155 = vpack.c.b16 %v2403, %v2395
        %v3156 = vpack.c.b16 %v2404, %v2396
        %v3157 = vpack.c.b16 %v2405, %v2397
        %v3158 = vpack.c.b16 %v2406, %v2398
        %v3159 = vpack.c.b16 %v2407, %v2399
        %v3160 = vpack.c.b16 %v2408, %v2400
        %v3161 = vpack.c.b16 %v2409, %v2401
        %v3162 = vpack.c.b16 %v2418, %v2410
        %v3163 = vpack.c.b16 %v2419, %v2411
        %v3164 = vpack.c.b16 %v2420, %v2412
        %v3165 = vpack.c.b16 %v2421, %v2413
        %v3166 = vpack.c.b16 %v2422, %v2414
        %v3167 = vpack.c.b16 %v2423, %v2415
        %v3168 = vpack.c.b16 %v2424, %v2416
        %v3169 = vpack.c.b16 %v2425, %v2417
        %v3170 = vpack.c.b16 %v2434, %v2426
        %v3171 = vpack.c.b16 %v2435, %v2427
        %v3172 = vpack.c.b16 %v2436, %v2428
        %v3173 = vpack.c.b16 %v2437, %v2429
        %v3174 = vpack.c.b16 %v2438, %v2430
        %v3175 = vpack.c.b16 %v2439, %v2431
        %v3176 = vpack.c.b16 %v2440, %v2432
        %v3177 = vpack.c.b16 %v2441, %v2433
        %v3178 = vpack.c.b16 %v2450, %v2442
        %v3179 = vpack.c.b16 %v2451, %v2443
        %v3180 = vpack.c.b16 %v2452, %v2444
        %v3181 = vpack.c.b16 %v2453, %v2445
        %v3182 = vpack.c.b16 %v2454, %v2446
        %v3183 = vpack.c.b16 %v2455, %v2447
        %v3184 = vpack.c.b16 %v2456, %v2448
        %v3185 = vpack.c.b16 %v2457, %v2449
        %v3186 = vpack.c.b16 %v2466, %v2458
        %v3187 = vpack.c.b16 %v2467, %v2459
        %v3188 = vpack.c.b16 %v2468, %v2460
        %v3189 = vpack.c.b16 %v2469, %v2461
        %v3190 = vpack.c.b16 %v2470, %v2462
        %v3191 = vpack.c.b16 %v2471, %v2463
        %v3192 = vpack.c.b16 %v2472, %v2464
        %v3193 = vpack.c.b16 %v2473, %v2465
        %v3194 = vpack.c.b16 %v2482, %v2474
        %v3195 = vpack.c.b16 %v2483, %v2475
        %v3196 = vpack.c.b16 %v2484, %v2476
        %v3197 = vpack.c.b16 %v2485, %v2477
        %v3198 = vpack.c.b16 %v2486, %v2478
        %v3199 = vpack.c.b16 %v2487, %v2479
        %v3200 = vpack.c.b16 %v2488, %v2480
        %v3201 = vpack.c.b16 %v2489, %v2481
        %v3202 = vpack.c.b16 %v2498, %v2490
        %v3203 = vpack.c.b16 %v2499, %v2491
        %v3204 = vpack.c.b16 %v2500, %v2492
        %v3205 = vpack.c.b16 %v2501, %v2493
        %v3206 = vpack.c.b16 %v2502, %v2494
        %v3207 = vpack.c.b16 %v2503, %v2495
        %v3208 = vpack.c.b16 %v2504, %v2496
        %v3209 = vpack.c.b16 %v2505, %v2497
        %v3210 = vpack.c.b16 %v2514, %v2506
        %v3211 = vpack.c.b16 %v2515, %v2507
        %v3212 = vpack.c.b16 %v2516, %v2508
        %v3213 = vpack.c.b16 %v2517, %v2509
        %v3214 = vpack.c.b16 %v2518, %v2510
        %v3215 = vpack.c.b16 %v2519, %v2511
        %v3216 = vpack.c.b16 %v2520, %v2512
        %v3217 = vpack.c.b16 %v2521, %v2513
        %v3218 = vpack.c.b16 %v2530, %v2522
        %v3219 = vpack.c.b16 %v2531, %v2523
        %v3220 = vpack.c.b16 %v2532, %v2524
        %v3221 = vpack.c.b16 %v2533, %v2525
        %v3222 = vpack.c.b16 %v2534, %v2526
        %v3223 = vpack.c.b16 %v2535, %v2527
        %v3224 = vpack.c.b16 %v2536, %v2528
        %v3225 = vpack.c.b16 %v2537, %v2529
        %v3226 = vpack.c.b16 %v2546, %v2538
        %v3227 = vpack.c.b16 %v2547, %v2539
        %v3228 = vpack.c.b16 %v2548, %v2540
        %v3229 = vpack.c.b16 %v2549, %v2541
        %v3230 = vpack.c.b16 %v2550, %v2542
        %v3231 = vpack.c.b16 %v2551, %v2543
        %v3232 = vpack.c.b16 %v2552, %v2544
        %v3233 = vpack.c.b16 %v2553, %v2545
        %v3234 = vpack.c.b16 %v2562, %v2554
        %v3235 = vpack.c.b16 %v2563, %v2555
        %v3236 = vpack.c.b16 %v2564, %v2556
        %v3237 = vpack.c.b16 %v2565, %v2557
        %v3238 = vpack.c.b16 %v2566, %v2558
        %v3239 = vpack.c.b16 %v2567, %v2559
        %v3240 = vpack.c.b16 %v2568, %v2560
        %v3241 = vpack.c.b16 %v2569, %v2561
        %v3242 = vpack.c.b16 %v2578, %v2570
        %v3243 = vpack.c.b16 %v2579, %v2571
        %v3244 = vpack.c.b16 %v2580, %v2572
        %v3245 = vpack.c.b16 %v2581, %v2573
        %v3246 = vpack.c.b16 %v2582, %v2574
        %v3247 = vpack.c.b16 %v2583, %v2575
        %v3248 = vpack.c.b16 %v2584, %v2576
        %v3249 = vpack.c.b16 %v2585, %v2577
        %v3250 = vpack.c.b16 %v2594, %v2586
        %v3251 = vpack.c.b16 %v2595, %v2587
        %v3252 = vpack.c.b16 %v2596, %v2588
        %v3253 = vpack.c.b16 %v2597, %v2589
        %v3254 = vpack.c.b16 %v2598, %v2590
        %v3255 = vpack.c.b16 %v2599, %v2591
        %v3256 = vpack.c.b16 %v2600, %v2592
        %v3257 = vpack.c.b16 %v2601, %v2593
        %v3258 = vpack.c.b16 %v2610, %v2602
        %v3259 = vpack.c.b16 %v2611, %v2603
        %v3260 = vpack.c.b16 %v2612, %v2604
        %v3261 = vpack.c.b16 %v2613, %v2605
        %v3262 = vpack.c.b16 %v2614, %v2606
        %v3263 = vpack.c.b16 %v2615, %v2607
        %v3264 = vpack.c.b16 %v2616, %v2608
        %v3265 = vpack.c.b16 %v2617, %v2609
        %v3266 = vpack.c.b16 %v2626, %v2618
        %v3267 = vpack.c.b16 %v2627, %v2619
        %v3268 = vpack.c.b16 %v2628, %v2620
        %v3269 = vpack.c.b16 %v2629, %v2621
        %v3270 = vpack.c.b16 %v2630, %v2622
        %v3271 = vpack.c.b16 %v2631, %v2623
        %v3272 = vpack.c.b16 %v2632, %v2624
        %v3273 = vpack.c.b16 %v2633, %v2625
        %v3274 = vpack.c.b16 %v2642, %v2634
        %v3275 = vpack.c.b16 %v2643, %v2635
        %v3276 = vpack.c.b16 %v2644, %v2636
        %v3277 = vpack.c.b16 %v2645, %v2637
        %v3278 = vpack.c.b16 %v2646, %v2638
        %v3279 = vpack.c.b16 %v2647, %v2639
        %v3280 = vpack.c.b16 %v2648, %v2640
        %v3281 = vpack.c.b16 %v2649, %v2641
        %v3282 = vpack.c.b16 %v2658, %v2650
        %v3283 = vpack.c.b16 %v2659, %v2651
        %v3284 = vpack.c.b16 %v2660, %v2652
        %v3285 = vpack.c.b16 %v2661, %v2653
        %v3286 = vpack.c.b16 %v2662, %v2654
        %v3287 = vpack.c.b16 %v2663, %v2655
        %v3288 = vpack.c.b16 %v2664, %v2656
        %v3289 = vpack.c.b16 %v2665, %v2657
        %v3290 = vpack.c.b16 %v2674, %v2666
        %v3291 = vpack.c.b16 %v2675, %v2667
        %v3292 = vpack.c.b16 %v2676, %v2668
        %v3293 = vpack.c.b16 %v2677, %v2669
        %v3294 = vpack.c.b16 %v2678, %v2670
        %v3295 = vpack.c.b16 %v2679, %v2671
        %v3296 = vpack.c.b16 %v2680, %v2672
        %v3297 = vpack.c.b16 %v2681, %v2673
        %v3298 = vpack.c.b16 %v2690, %v2682
        %v3299 = vpack.c.b16 %v2691, %v2683
        %v3300 = vpack.c.b16 %v2692, %v2684
        %v3301 = vpack.c.b16 %v2693, %v2685
        %v3302 = vpack.c.b16 %v2694, %v2686
        %v3303 = vpack.c.b16 %v2695, %v2687
        %v3304 = vpack.c.b16 %v2696, %v2688
        %v3305 = vpack.c.b16 %v2697, %v2689
        %v3306 = vpack.c.b16 %v2706, %v2698
        %v3307 = vpack.c.b16 %v2707, %v2699
        %v3308 = vpack.c.b16 %v2708, %v2700
        %v3309 = vpack.c.b16 %v2709, %v2701
        %v3310 = vpack.c.b16 %v2710, %v2702
        %v3311 = vpack.c.b16 %v2711, %v2703
        %v3312 = vpack.c.b16 %v2712, %v2704
        %v3313 = vpack.c.b16 %v2713, %v2705
        %v3314 = vpack.c.b16 %v2722, %v2714
        %v3315 = vpack.c.b16 %v2723, %v2715
        %v3316 = vpack.c.b16 %v2724, %v2716
        %v3317 = vpack.c.b16 %v2725, %v2717
        %v3318 = vpack.c.b16 %v2726, %v2718
        %v3319 = vpack.c.b16 %v2727, %v2719
        %v3320 = vpack.c.b16 %v2728, %v2720
        %v3321 = vpack.c.b16 %v2729, %v2721
        %v3322 = vpack.c.b16 %v2738, %v2730
        %v3323 = vpack.c.b16 %v2739, %v2731
        %v3324 = vpack.c.b16 %v2740, %v2732
        %v3325 = vpack.c.b16 %v2741, %v2733
        %v3326 = vpack.c.b16 %v2742, %v2734
        %v3327 = vpack.c.b16 %v2743, %v2735
        %v3328 = vpack.c.b16 %v2744, %v2736
        %v3329 = vpack.c.b16 %v2745, %v2737
        %v3330 = vpack.c.b16 %v2754, %v2746
        %v3331 = vpack.c.b16 %v2755, %v2747
        %v3332 = vpack.c.b16 %v2756, %v2748
        %v3333 = vpack.c.b16 %v2757, %v2749
        %v3334 = vpack.c.b16 %v2758, %v2750
        %v3335 = vpack.c.b16 %v2759, %v2751
        %v3336 = vpack.c.b16 %v2760, %v2752
        %v3337 = vpack.c.b16 %v2761, %v2753
        %v3338 = vpack.c.b16 %v2770, %v2762
        %v3339 = vpack.c.b16 %v2771, %v2763
        %v3340 = vpack.c.b16 %v2772, %v2764
        %v3341 = vpack.c.b16 %v2773, %v2765
        %v3342 = vpack.c.b16 %v2774, %v2766
        %v3343 = vpack.c.b16 %v2775, %v2767
        %v3344 = vpack.c.b16 %v2776, %v2768
        %v3345 = vpack.c.b16 %v2777, %v2769
        %v3346 = vpack.c.b16 %v2786, %v2778
        %v3347 = vpack.c.b16 %v2787, %v2779
        %v3348 = vpack.c.b16 %v2788, %v2780
        %v3349 = vpack.c.b16 %v2789, %v2781
        %v3350 = vpack.c.b16 %v2790, %v2782
        %v3351 = vpack.c.b16 %v2791, %v2783
        %v3352 = vpack.c.b16 %v2792, %v2784
        %v3353 = vpack.c.b16 %v2793, %v2785
        %v3354 = vpack.c.b16 %v2802, %v2794
        %v3355 = vpack.c.b16 %v2803, %v2795
        %v3356 = vpack.c.b16 %v2804, %v2796
        %v3357 = vpack.c.b16 %v2805, %v2797
        %v3358 = vpack.c.b16 %v2806, %v2798
        %v3359 = vpack.c.b16 %v2807, %v2799
        %v3360 = vpack.c.b16 %v2808, %v2800
        %v3361 = vpack.c.b16 %v2809, %v2801
        %v3362 = vpack.c.b16 %v2818, %v2810
        %v3363 = vpack.c.b16 %v2819, %v2811
        %v3364 = vpack.c.b16 %v2820, %v2812
        %v3365 = vpack.c.b16 %v2821, %v2813
        %v3366 = vpack.c.b16 %v2822, %v2814
        %v3367 = vpack.c.b16 %v2823, %v2815
        %v3368 = vpack.c.b16 %v2824, %v2816
        %v3369 = vpack.c.b16 %v2825, %v2817
        %v3370 = vpack.c.b16 %v2834, %v2826
        %v3371 = vpack.c.b16 %v2835, %v2827
        %v3372 = vpack.c.b16 %v2836, %v2828
        %v3373 = vpack.c.b16 %v2837, %v2829
        %v3374 = vpack.c.b16 %v2838, %v2830
        %v3375 = vpack.c.b16 %v2839, %v2831
        %v3376 = vpack.c.b16 %v2840, %v2832
        %v3377 = vpack.c.b16 %v2841, %v2833
        %v3378 = vpack.c.b16 %v2850, %v2842
        %v3379 = vpack.c.b16 %v2851, %v2843
        %v3380 = vpack.c.b16 %v2852, %v2844
        %v3381 = vpack.c.b16 %v2853, %v2845
        %v3382 = vpack.c.b16 %v2854, %v2846
        %v3383 = vpack.c.b16 %v2855, %v2847
        %v3384 = vpack.c.b16 %v2856, %v2848
        %v3385 = vpack.c.b16 %v2857, %v2849
        %v3386 = vpack.c.b16 %v2866, %v2858
        %v3387 = vpack.c.b16 %v2867, %v2859
        %v3388 = vpack.c.b16 %v2868, %v2860
        %v3389 = vpack.c.b16 %v2869, %v2861
        %v3390 = vpack.c.b16 %v2870, %v2862
        %v3391 = vpack.c.b16 %v2871, %v2863
        %v3392 = vpack.c.b16 %v2872, %v2864
        %v3393 = vpack.c.b16 %v2873, %v2865
        %v3394 = vpack.c.b16 %v2882, %v2874
        %v3395 = vpack.c.b16 %v2883, %v2875
        %v3396 = vpack.c.b16 %v2884, %v2876
        %v3397 = vpack.c.b16 %v2885, %v2877
        %v3398 = vpack.c.b16 %v2886, %v2878
        %v3399 = vpack.c.b16 %v2887, %v2879
        %v3400 = vpack.c.b16 %v2888, %v2880
        %v3401 = vpack.c.b16 %v2889, %v2881
        %3914 = vmatprep.subr.bf16.mxu0 %v2891
        %3915 = vmatpush1.bf16.msra.mxu0 %v2890
        %3916 = vmatprep.subr.bf16.mxu0 %v2899
        %3917 = vmatpush1.bf16.msra.mxu0 %v2898
        %3918 = vmatprep.subr.bf16.mxu0 %v2907
        %3919 = vmatpush1.bf16.msra.mxu0 %v2906
        %3920 = vmatprep.subr.bf16.mxu0 %v2915
        %3921 = vmatpush1.bf16.msra.mxu0 %v2914
        %3922 = vmatprep.subr.bf16.mxu0 %v2923
        %3923 = vmatpush1.bf16.msra.mxu0 %v2922
        %3924 = vmatprep.subr.bf16.mxu0 %v2931
        %3925 = vmatpush1.bf16.msra.mxu0 %v2930
        %3926 = vmatprep.subr.bf16.mxu0 %v2939
        %3927 = vmatpush1.bf16.msra.mxu0 %v2938
        %3928 = vmatprep.subr.bf16.mxu0 %v2947
        %3929 = vmatpush1.bf16.msra.mxu0 %v2946
        %3930 = vmatprep.subr.bf16.mxu0 %v2955
        %3931 = vmatpush1.bf16.msra.mxu0 %v2954
        %3932 = vmatprep.subr.bf16.mxu0 %v2963
        %3933 = vmatpush1.bf16.msra.mxu0 %v2962
        %3934 = vmatprep.subr.bf16.mxu0 %v2971
        %3935 = vmatpush1.bf16.msra.mxu0 %v2970
        %3936 = vmatprep.subr.bf16.mxu0 %v2979
        %3937 = vmatpush1.bf16.msra.mxu0 %v2978
        %3938 = vmatprep.subr.bf16.mxu0 %v2987
        %3939 = vmatpush1.bf16.msra.mxu0 %v2986
        %3940 = vmatprep.subr.bf16.mxu0 %v2995
        %3941 = vmatpush1.bf16.msra.mxu0 %v2994
        %3942 = vmatprep.subr.bf16.mxu0 %v3003
        %3943 = vmatpush1.bf16.msra.mxu0 %v3002
        %3944 = vmatprep.subr.bf16.mxu0 %v3011
        %3945 = vmatpush1.bf16.msra.mxu0 %v3010
        %3946 = vmatprep.mubr.bf16.mxu0 %v835
        %3947 = vmatmul.mubr.bf16.gmra.mrb[0].mxu0 %v834
        %v3948 = vpop.f32.mrb[0].mxu0
        %v3949 = vadd.f32 0.0, %v3948
        %v3950 = vpop.f32.mrb[0].mxu0
        %v3951 = vadd.f32 0.0, %v3950
        %v3952 = vpop.f32.mrb[0].mxu0
        %v3953 = vpop.f32.mrb[0].mxu0
        %3954 = vdwg.mxu0
        %3955 = vmatprep.subr.bf16.mxu0 %v3019
        %3956 = vmatpush1.bf16.msra.mxu0 %v3018
        %3957 = vmatprep.subr.bf16.mxu0 %v3027
        %3958 = vmatpush1.bf16.msra.mxu0 %v3026
        %3959 = vmatprep.subr.bf16.mxu0 %v3035
        %3960 = vmatpush1.bf16.msra.mxu0 %v3034
        %3961 = vmatprep.subr.bf16.mxu0 %v3043
        %3962 = vmatpush1.bf16.msra.mxu0 %v3042
        %3963 = vmatprep.subr.bf16.mxu0 %v3051
        %3964 = vmatpush1.bf16.msra.mxu0 %v3050
        %3965 = vmatprep.subr.bf16.mxu0 %v3059
        %3966 = vmatpush1.bf16.msra.mxu0 %v3058
        %3967 = vmatprep.subr.bf16.mxu0 %v3067
        %3968 = vmatpush1.bf16.msra.mxu0 %v3066
        %3969 = vmatprep.subr.bf16.mxu0 %v3075
        %3970 = vmatpush1.bf16.msra.mxu0 %v3074
        %3971 = vmatprep.subr.bf16.mxu0 %v3083
        %3972 = vmatpush1.bf16.msra.mxu0 %v3082
        %3973 = vmatprep.subr.bf16.mxu0 %v3091
        %3974 = vmatpush1.bf16.msra.mxu0 %v3090
        %3975 = vmatprep.subr.bf16.mxu0 %v3099
        %3976 = vmatpush1.bf16.msra.mxu0 %v3098
        %3977 = vmatprep.subr.bf16.mxu0 %v3107
        %3978 = vmatpush1.bf16.msra.mxu0 %v3106
        %3979 = vmatprep.subr.bf16.mxu0 %v3115
        %3980 = vmatpush1.bf16.msra.mxu0 %v3114
        %3981 = vmatprep.subr.bf16.mxu0 %v3123
        %3982 = vmatpush1.bf16.msra.mxu0 %v3122
        %3983 = vmatprep.subr.bf16.mxu0 %v3131
        %3984 = vmatpush1.bf16.msra.mxu0 %v3130
        %3985 = vmatprep.subr.bf16.mxu0 %v3139
        %3986 = vmatpush1.bf16.msra.mxu0 %v3138
        %3987 = vmatprep.mubr.bf16.mxu0 %v837
        %3988 = vmatmul.mubr.bf16.gmra.mrb[0].mxu0 %v836
        %v3989 = vpop.f32.mrb[0].mxu0
        %v3990 = vadd.f32 %v3949, %v3989
        %v3991 = vpop.f32.mrb[0].mxu0
        %v3992 = vadd.f32 %v3951, %v3991
        %v3993 = vpop.f32.mrb[0].mxu0
        %v3994 = vpop.f32.mrb[0].mxu0
        %3995 = vdwg.mxu0
        %3996 = vmatprep.subr.bf16.mxu0 %v3147
        %3997 = vmatpush1.bf16.msra.mxu0 %v3146
        %3998 = vmatprep.subr.bf16.mxu0 %v3155
        %3999 = vmatpush1.bf16.msra.mxu0 %v3154
        %4000 = vmatprep.subr.bf16.mxu0 %v3163
        %4001 = vmatpush1.bf16.msra.mxu0 %v3162
        %4002 = vmatprep.subr.bf16.mxu0 %v3171
        %4003 = vmatpush1.bf16.msra.mxu0 %v3170
        %4004 = vmatprep.subr.bf16.mxu0 %v3179
        %4005 = vmatpush1.bf16.msra.mxu0 %v3178
        %4006 = vmatprep.subr.bf16.mxu0 %v3187
        %4007 = vmatpush1.bf16.msra.mxu0 %v3186
        %4008 = vmatprep.subr.bf16.mxu0 %v3195
        %4009 = vmatpush1.bf16.msra.mxu0 %v3194
        %4010 = vmatprep.subr.bf16.mxu0 %v3203
        %4011 = vmatpush1.bf16.msra.mxu0 %v3202
        %4012 = vmatprep.subr.bf16.mxu0 %v3211
        %4013 = vmatpush1.bf16.msra.mxu0 %v3210
        %4014 = vmatprep.subr.bf16.mxu0 %v3219
        %4015 = vmatpush1.bf16.msra.mxu0 %v3218
        %4016 = vmatprep.subr.bf16.mxu0 %v3227
        %4017 = vmatpush1.bf16.msra.mxu0 %v3226
        %4018 = vmatprep.subr.bf16.mxu0 %v3235
        %4019 = vmatpush1.bf16.msra.mxu0 %v3234
        %4020 = vmatprep.subr.bf16.mxu0 %v3243
        %4021 = vmatpush1.bf16.msra.mxu0 %v3242
        %4022 = vmatprep.subr.bf16.mxu0 %v3251
        %4023 = vmatpush1.bf16.msra.mxu0 %v3250
        %4024 = vmatprep.subr.bf16.mxu0 %v3259
        %4025 = vmatpush1.bf16.msra.mxu0 %v3258
        %4026 = vmatprep.subr.bf16.mxu0 %v3267
        %4027 = vmatpush1.bf16.msra.mxu0 %v3266
        %4028 = vmatprep.mubr.bf16.mxu0 %v839
        %4029 = vmatmul.mubr.bf16.gmra.mrb[0].mxu0 %v838
        %v4030 = vpop.f32.mrb[0].mxu0
        %v4031 = vadd.f32 %v3990, %v4030
        %v4032 = vpop.f32.mrb[0].mxu0
        %v4033 = vadd.f32 %v3992, %v4032
        %v4034 = vpop.f32.mrb[0].mxu0
        %v4035 = vpop.f32.mrb[0].mxu0
        %4036 = vdwg.mxu0
        %4037 = vmatprep.subr.bf16.mxu0 %v3275
        %4038 = vmatpush1.bf16.msra.mxu0 %v3274
        %4039 = vmatprep.subr.bf16.mxu0 %v3283
        %4040 = vmatpush1.bf16.msra.mxu0 %v3282
        %4041 = vmatprep.subr.bf16.mxu0 %v3291
        %4042 = vmatpush1.bf16.msra.mxu0 %v3290
        %4043 = vmatprep.subr.bf16.mxu0 %v3299
        %4044 = vmatpush1.bf16.msra.mxu0 %v3298
        %4045 = vmatprep.subr.bf16.mxu0 %v3307
        %4046 = vmatpush1.bf16.msra.mxu0 %v3306
        %4047 = vmatprep.subr.bf16.mxu0 %v3315
        %4048 = vmatpush1.bf16.msra.mxu0 %v3314
        %4049 = vmatprep.subr.bf16.mxu0 %v3323
        %4050 = vmatpush1.bf16.msra.mxu0 %v3322
        %4051 = vmatprep.subr.bf16.mxu0 %v3331
        %4052 = vmatpush1.bf16.msra.mxu0 %v3330
        %4053 = vmatprep.subr.bf16.mxu0 %v3339
        %4054 = vmatpush1.bf16.msra.mxu0 %v3338
        %4055 = vmatprep.subr.bf16.mxu0 %v3347
        %4056 = vmatpush1.bf16.msra.mxu0 %v3346
        %4057 = vmatprep.subr.bf16.mxu0 %v3355
        %4058 = vmatpush1.bf16.msra.mxu0 %v3354
        %4059 = vmatprep.subr.bf16.mxu0 %v3363
        %4060 = vmatpush1.bf16.msra.mxu0 %v3362
        %4061 = vmatprep.subr.bf16.mxu0 %v3371
        %4062 = vmatpush1.bf16.msra.mxu0 %v3370
        %4063 = vmatprep.subr.bf16.mxu0 %v3379
        %4064 = vmatpush1.bf16.msra.mxu0 %v3378
        %4065 = vmatprep.subr.bf16.mxu0 %v3387
        %4066 = vmatpush1.bf16.msra.mxu0 %v3386
        %4067 = vmatprep.subr.bf16.mxu0 %v3395
        %4068 = vmatpush1.bf16.msra.mxu0 %v3394
        %4069 = vmatprep.mubr.bf16.mxu0 %v841
        %4070 = vmatmul.mubr.bf16.gmra.mrb[0].mxu0 %v840
        %v4071 = vpop.f32.mrb[0].mxu0
        %v4072 = vadd.f32 %v4031, %v4071
        %v4073 = vpop.f32.mrb[0].mxu0
        %v4074 = vadd.f32 %v4033, %v4073
        %v4075 = vpop.f32.mrb[0].mxu0
        %v4076 = vpop.f32.mrb[0].mxu0
        %4077 = vdwg.mxu0
        %4078 = vmatprep.subr.bf16.mxu0 %v2893
        %4079 = vmatpush1.bf16.msra.mxu0 %v2892
        %4080 = vmatprep.subr.bf16.mxu0 %v2901
        %4081 = vmatpush1.bf16.msra.mxu0 %v2900
        %4082 = vmatprep.subr.bf16.mxu0 %v2909
        %4083 = vmatpush1.bf16.msra.mxu0 %v2908
        %4084 = vmatprep.subr.bf16.mxu0 %v2917
        %4085 = vmatpush1.bf16.msra.mxu0 %v2916
        %4086 = vmatprep.subr.bf16.mxu0 %v2925
        %4087 = vmatpush1.bf16.msra.mxu0 %v2924
        %4088 = vmatprep.subr.bf16.mxu0 %v2933
        %4089 = vmatpush1.bf16.msra.mxu0 %v2932
        %4090 = vmatprep.subr.bf16.mxu0 %v2941
        %4091 = vmatpush1.bf16.msra.mxu0 %v2940
        %4092 = vmatprep.subr.bf16.mxu0 %v2949
        %4093 = vmatpush1.bf16.msra.mxu0 %v2948
        %4094 = vmatprep.subr.bf16.mxu0 %v2957
        %4095 = vmatpush1.bf16.msra.mxu0 %v2956
        %4096 = vmatprep.subr.bf16.mxu0 %v2965
        %4097 = vmatpush1.bf16.msra.mxu0 %v2964
        %4098 = vmatprep.subr.bf16.mxu0 %v2973
        %4099 = vmatpush1.bf16.msra.mxu0 %v2972
        %4100 = vmatprep.subr.bf16.mxu0 %v2981
        %4101 = vmatpush1.bf16.msra.mxu0 %v2980
        %4102 = vmatprep.subr.bf16.mxu0 %v2989
        %4103 = vmatpush1.bf16.msra.mxu0 %v2988
        %4104 = vmatprep.subr.bf16.mxu0 %v2997
        %4105 = vmatpush1.bf16.msra.mxu0 %v2996
        %4106 = vmatprep.subr.bf16.mxu0 %v3005
        %4107 = vmatpush1.bf16.msra.mxu0 %v3004
        %4108 = vmatprep.subr.bf16.mxu0 %v3013
        %4109 = vmatpush1.bf16.msra.mxu0 %v3012
        %4110 = vmatprep.mubr.bf16.mxu0 %v835
        %4111 = vmatmul.mubr.bf16.gmra.mrb[0].mxu0 %v834
        %v4112 = vpop.f32.mrb[0].mxu0
        %v4113 = vadd.f32 0.0, %v4112
        %v4114 = vpop.f32.mrb[0].mxu0
        %v4115 = vadd.f32 0.0, %v4114
        %v4116 = vpop.f32.mrb[0].mxu0
        %v4117 = vpop.f32.mrb[0].mxu0
        %4118 = vdwg.mxu0
        %4119 = vmatprep.subr.bf16.mxu0 %v3021
        %4120 = vmatpush1.bf16.msra.mxu0 %v3020
        %4121 = vmatprep.subr.bf16.mxu0 %v3029
        %4122 = vmatpush1.bf16.msra.mxu0 %v3028
        %4123 = vmatprep.subr.bf16.mxu0 %v3037
        %4124 = vmatpush1.bf16.msra.mxu0 %v3036
        %4125 = vmatprep.subr.bf16.mxu0 %v3045
        %4126 = vmatpush1.bf16.msra.mxu0 %v3044
        %4127 = vmatprep.subr.bf16.mxu0 %v3053
        %4128 = vmatpush1.bf16.msra.mxu0 %v3052
        %4129 = vmatprep.subr.bf16.mxu0 %v3061
        %4130 = vmatpush1.bf16.msra.mxu0 %v3060
        %4131 = vmatprep.subr.bf16.mxu0 %v3069
        %4132 = vmatpush1.bf16.msra.mxu0 %v3068
        %4133 = vmatprep.subr.bf16.mxu0 %v3077
        %4134 = vmatpush1.bf16.msra.mxu0 %v3076
        %4135 = vmatprep.subr.bf16.mxu0 %v3085
        %4136 = vmatpush1.bf16.msra.mxu0 %v3084
        %4137 = vmatprep.subr.bf16.mxu0 %v3093
        %4138 = vmatpush1.bf16.msra.mxu0 %v3092
        %4139 = vmatprep.subr.bf16.mxu0 %v3101
        %4140 = vmatpush1.bf16.msra.mxu0 %v3100
        %4141 = vmatprep.subr.bf16.mxu0 %v3109
        %4142 = vmatpush1.bf16.msra.mxu0 %v3108
        %4143 = vmatprep.subr.bf16.mxu0 %v3117
        %4144 = vmatpush1.bf16.msra.mxu0 %v3116
        %4145 = vmatprep.subr.bf16.mxu0 %v3125
        %4146 = vmatpush1.bf16.msra.mxu0 %v3124
        %4147 = vmatprep.subr.bf16.mxu0 %v3133
        %4148 = vmatpush1.bf16.msra.mxu0 %v3132
        %4149 = vmatprep.subr.bf16.mxu0 %v3141
        %4150 = vmatpush1.bf16.msra.mxu0 %v3140
        %4151 = vmatprep.mubr.bf16.mxu0 %v837
        %4152 = vmatmul.mubr.bf16.gmra.mrb[0].mxu0 %v836
        %v4153 = vpop.f32.mrb[0].mxu0
        %v4154 = vadd.f32 %v4113, %v4153
        %v4155 = vpop.f32.mrb[0].mxu0
        %v4156 = vadd.f32 %v4115, %v4155
        %v4157 = vpop.f32.mrb[0].mxu0
        %v4158 = vpop.f32.mrb[0].mxu0
        %4159 = vdwg.mxu0
        %4160 = vmatprep.subr.bf16.mxu0 %v3149
        %4161 = vmatpush1.bf16.msra.mxu0 %v3148
        %4162 = vmatprep.subr.bf16.mxu0 %v3157
        %4163 = vmatpush1.bf16.msra.mxu0 %v3156
        %4164 = vmatprep.subr.bf16.mxu0 %v3165
        %4165 = vmatpush1.bf16.msra.mxu0 %v3164
        %4166 = vmatprep.subr.bf16.mxu0 %v3173
        %4167 = vmatpush1.bf16.msra.mxu0 %v3172
        %4168 = vmatprep.subr.bf16.mxu0 %v3181
        %4169 = vmatpush1.bf16.msra.mxu0 %v3180
        %4170 = vmatprep.subr.bf16.mxu0 %v3189
        %4171 = vmatpush1.bf16.msra.mxu0 %v3188
        %4172 = vmatprep.subr.bf16.mxu0 %v3197
        %4173 = vmatpush1.bf16.msra.mxu0 %v3196
        %4174 = vmatprep.subr.bf16.mxu0 %v3205
        %4175 = vmatpush1.bf16.msra.mxu0 %v3204
        %4176 = vmatprep.subr.bf16.mxu0 %v3213
        %4177 = vmatpush1.bf16.msra.mxu0 %v3212
        %4178 = vmatprep.subr.bf16.mxu0 %v3221
        %4179 = vmatpush1.bf16.msra.mxu0 %v3220
        %4180 = vmatprep.subr.bf16.mxu0 %v3229
        %4181 = vmatpush1.bf16.msra.mxu0 %v3228
        %4182 = vmatprep.subr.bf16.mxu0 %v3237
        %4183 = vmatpush1.bf16.msra.mxu0 %v3236
        %4184 = vmatprep.subr.bf16.mxu0 %v3245
        %4185 = vmatpush1.bf16.msra.mxu0 %v3244
        %4186 = vmatprep.subr.bf16.mxu0 %v3253
        %4187 = vmatpush1.bf16.msra.mxu0 %v3252
        %4188 = vmatprep.subr.bf16.mxu0 %v3261
        %4189 = vmatpush1.bf16.msra.mxu0 %v3260
        %4190 = vmatprep.subr.bf16.mxu0 %v3269
        %4191 = vmatpush1.bf16.msra.mxu0 %v3268
        %4192 = vmatprep.mubr.bf16.mxu0 %v839
        %4193 = vmatmul.mubr.bf16.gmra.mrb[0].mxu0 %v838
        %v4194 = vpop.f32.mrb[0].mxu0
        %v4195 = vadd.f32 %v4154, %v4194
        %v4196 = vpop.f32.mrb[0].mxu0
        %v4197 = vadd.f32 %v4156, %v4196
        %v4198 = vpop.f32.mrb[0].mxu0
        %v4199 = vpop.f32.mrb[0].mxu0
        %4200 = vdwg.mxu0
        %4201 = vmatprep.subr.bf16.mxu0 %v3277
        %4202 = vmatpush1.bf16.msra.mxu0 %v3276
        %4203 = vmatprep.subr.bf16.mxu0 %v3285
        %4204 = vmatpush1.bf16.msra.mxu0 %v3284
        %4205 = vmatprep.subr.bf16.mxu0 %v3293
        %4206 = vmatpush1.bf16.msra.mxu0 %v3292
        %4207 = vmatprep.subr.bf16.mxu0 %v3301
        %4208 = vmatpush1.bf16.msra.mxu0 %v3300
        %4209 = vmatprep.subr.bf16.mxu0 %v3309
        %4210 = vmatpush1.bf16.msra.mxu0 %v3308
        %4211 = vmatprep.subr.bf16.mxu0 %v3317
        %4212 = vmatpush1.bf16.msra.mxu0 %v3316
        %4213 = vmatprep.subr.bf16.mxu0 %v3325
        %4214 = vmatpush1.bf16.msra.mxu0 %v3324
        %4215 = vmatprep.subr.bf16.mxu0 %v3333
        %4216 = vmatpush1.bf16.msra.mxu0 %v3332
        %4217 = vmatprep.subr.bf16.mxu0 %v3341
        %4218 = vmatpush1.bf16.msra.mxu0 %v3340
        %4219 = vmatprep.subr.bf16.mxu0 %v3349
        %4220 = vmatpush1.bf16.msra.mxu0 %v3348
        %4221 = vmatprep.subr.bf16.mxu0 %v3357
        %4222 = vmatpush1.bf16.msra.mxu0 %v3356
        %4223 = vmatprep.subr.bf16.mxu0 %v3365
        %4224 = vmatpush1.bf16.msra.mxu0 %v3364
        %4225 = vmatprep.subr.bf16.mxu0 %v3373
        %4226 = vmatpush1.bf16.msra.mxu0 %v3372
        %4227 = vmatprep.subr.bf16.mxu0 %v3381
        %4228 = vmatpush1.bf16.msra.mxu0 %v3380
        %4229 = vmatprep.subr.bf16.mxu0 %v3389
        %4230 = vmatpush1.bf16.msra.mxu0 %v3388
        %4231 = vmatprep.subr.bf16.mxu0 %v3397
        %4232 = vmatpush1.bf16.msra.mxu0 %v3396
        %4233 = vmatprep.mubr.bf16.mxu0 %v841
        %4234 = vmatmul.mubr.bf16.gmra.mrb[0].mxu0 %v840
        %v4235 = vpop.f32.mrb[0].mxu0
        %v4236 = vadd.f32 %v4195, %v4235
        %v4237 = vpop.f32.mrb[0].mxu0
        %v4238 = vadd.f32 %v4197, %v4237
        %v4239 = vpop.f32.mrb[0].mxu0
        %v4240 = vpop.f32.mrb[0].mxu0
        %4241 = vdwg.mxu0
        %4242 = vmatprep.subr.bf16.mxu0 %v2895
        %4243 = vmatpush1.bf16.msra.mxu0 %v2894
        %4244 = vmatprep.subr.bf16.mxu0 %v2903
        %4245 = vmatpush1.bf16.msra.mxu0 %v2902
        %4246 = vmatprep.subr.bf16.mxu0 %v2911
        %4247 = vmatpush1.bf16.msra.mxu0 %v2910
        %4248 = vmatprep.subr.bf16.mxu0 %v2919
        %4249 = vmatpush1.bf16.msra.mxu0 %v2918
        %4250 = vmatprep.subr.bf16.mxu0 %v2927
        %4251 = vmatpush1.bf16.msra.mxu0 %v2926
        %4252 = vmatprep.subr.bf16.mxu0 %v2935
        %4253 = vmatpush1.bf16.msra.mxu0 %v2934
        %4254 = vmatprep.subr.bf16.mxu0 %v2943
        %4255 = vmatpush1.bf16.msra.mxu0 %v2942
        %4256 = vmatprep.subr.bf16.mxu0 %v2951
        %4257 = vmatpush1.bf16.msra.mxu0 %v2950
        %4258 = vmatprep.subr.bf16.mxu0 %v2959
        %4259 = vmatpush1.bf16.msra.mxu0 %v2958
        %4260 = vmatprep.subr.bf16.mxu0 %v2967
        %4261 = vmatpush1.bf16.msra.mxu0 %v2966
        %4262 = vmatprep.subr.bf16.mxu0 %v2975
        %4263 = vmatpush1.bf16.msra.mxu0 %v2974
        %4264 = vmatprep.subr.bf16.mxu0 %v2983
        %4265 = vmatpush1.bf16.msra.mxu0 %v2982
        %4266 = vmatprep.subr.bf16.mxu0 %v2991
        %4267 = vmatpush1.bf16.msra.mxu0 %v2990
        %4268 = vmatprep.subr.bf16.mxu0 %v2999
        %4269 = vmatpush1.bf16.msra.mxu0 %v2998
        %4270 = vmatprep.subr.bf16.mxu0 %v3007
        %4271 = vmatpush1.bf16.msra.mxu0 %v3006
        %4272 = vmatprep.subr.bf16.mxu0 %v3015
        %4273 = vmatpush1.bf16.msra.mxu0 %v3014
        %4274 = vmatprep.mubr.bf16.mxu0 %v835
        %4275 = vmatmul.mubr.bf16.gmra.mrb[0].mxu0 %v834
        %v4276 = vpop.f32.mrb[0].mxu0
        %v4277 = vadd.f32 0.0, %v4276
        %v4278 = vpop.f32.mrb[0].mxu0
        %v4279 = vadd.f32 0.0, %v4278
        %v4280 = vpop.f32.mrb[0].mxu0
        %v4281 = vpop.f32.mrb[0].mxu0
        %4282 = vdwg.mxu0
        %4283 = vmatprep.subr.bf16.mxu0 %v3023
        %4284 = vmatpush1.bf16.msra.mxu0 %v3022
        %4285 = vmatprep.subr.bf16.mxu0 %v3031
        %4286 = vmatpush1.bf16.msra.mxu0 %v3030
        %4287 = vmatprep.subr.bf16.mxu0 %v3039
        %4288 = vmatpush1.bf16.msra.mxu0 %v3038
        %4289 = vmatprep.subr.bf16.mxu0 %v3047
        %4290 = vmatpush1.bf16.msra.mxu0 %v3046
        %4291 = vmatprep.subr.bf16.mxu0 %v3055
        %4292 = vmatpush1.bf16.msra.mxu0 %v3054
        %4293 = vmatprep.subr.bf16.mxu0 %v3063
        %4294 = vmatpush1.bf16.msra.mxu0 %v3062
        %4295 = vmatprep.subr.bf16.mxu0 %v3071
        %4296 = vmatpush1.bf16.msra.mxu0 %v3070
        %4297 = vmatprep.subr.bf16.mxu0 %v3079
        %4298 = vmatpush1.bf16.msra.mxu0 %v3078
        %4299 = vmatprep.subr.bf16.mxu0 %v3087
        %4300 = vmatpush1.bf16.msra.mxu0 %v3086
        %4301 = vmatprep.subr.bf16.mxu0 %v3095
        %4302 = vmatpush1.bf16.msra.mxu0 %v3094
        %4303 = vmatprep.subr.bf16.mxu0 %v3103
        %4304 = vmatpush1.bf16.msra.mxu0 %v3102
        %4305 = vmatprep.subr.bf16.mxu0 %v3111
        %4306 = vmatpush1.bf16.msra.mxu0 %v3110
        %4307 = vmatprep.subr.bf16.mxu0 %v3119
        %4308 = vmatpush1.bf16.msra.mxu0 %v3118
        %4309 = vmatprep.subr.bf16.mxu0 %v3127
        %4310 = vmatpush1.bf16.msra.mxu0 %v3126
        %4311 = vmatprep.subr.bf16.mxu0 %v3135
        %4312 = vmatpush1.bf16.msra.mxu0 %v3134
        %4313 = vmatprep.subr.bf16.mxu0 %v3143
        %4314 = vmatpush1.bf16.msra.mxu0 %v3142
        %4315 = vmatprep.mubr.bf16.mxu0 %v837
        %4316 = vmatmul.mubr.bf16.gmra.mrb[0].mxu0 %v836
        %v4317 = vpop.f32.mrb[0].mxu0
        %v4318 = vadd.f32 %v4277, %v4317
        %v4319 = vpop.f32.mrb[0].mxu0
        %v4320 = vadd.f32 %v4279, %v4319
        %v4321 = vpop.f32.mrb[0].mxu0
        %v4322 = vpop.f32.mrb[0].mxu0
        %4323 = vdwg.mxu0
        %4324 = vmatprep.subr.bf16.mxu0 %v3151
        %4325 = vmatpush1.bf16.msra.mxu0 %v3150
        %4326 = vmatprep.subr.bf16.mxu0 %v3159
        %4327 = vmatpush1.bf16.msra.mxu0 %v3158
        %4328 = vmatprep.subr.bf16.mxu0 %v3167
        %4329 = vmatpush1.bf16.msra.mxu0 %v3166
        %4330 = vmatprep.subr.bf16.mxu0 %v3175
        %4331 = vmatpush1.bf16.msra.mxu0 %v3174
        %4332 = vmatprep.subr.bf16.mxu0 %v3183
        %4333 = vmatpush1.bf16.msra.mxu0 %v3182
        %4334 = vmatprep.subr.bf16.mxu0 %v3191
        %4335 = vmatpush1.bf16.msra.mxu0 %v3190
        %4336 = vmatprep.subr.bf16.mxu0 %v3199
        %4337 = vmatpush1.bf16.msra.mxu0 %v3198
        %4338 = vmatprep.subr.bf16.mxu0 %v3207
        %4339 = vmatpush1.bf16.msra.mxu0 %v3206
        %4340 = vmatprep.subr.bf16.mxu0 %v3215
        %4341 = vmatpush1.bf16.msra.mxu0 %v3214
        %4342 = vmatprep.subr.bf16.mxu0 %v3223
        %4343 = vmatpush1.bf16.msra.mxu0 %v3222
        %4344 = vmatprep.subr.bf16.mxu0 %v3231
        %4345 = vmatpush1.bf16.msra.mxu0 %v3230
        %4346 = vmatprep.subr.bf16.mxu0 %v3239
        %4347 = vmatpush1.bf16.msra.mxu0 %v3238
        %4348 = vmatprep.subr.bf16.mxu0 %v3247
        %4349 = vmatpush1.bf16.msra.mxu0 %v3246
        %4350 = vmatprep.subr.bf16.mxu0 %v3255
        %4351 = vmatpush1.bf16.msra.mxu0 %v3254
        %4352 = vmatprep.subr.bf16.mxu0 %v3263
        %4353 = vmatpush1.bf16.msra.mxu0 %v3262
        %4354 = vmatprep.subr.bf16.mxu0 %v3271
        %4355 = vmatpush1.bf16.msra.mxu0 %v3270
        %4356 = vmatprep.mubr.bf16.mxu0 %v839
        %4357 = vmatmul.mubr.bf16.gmra.mrb[0].mxu0 %v838
        %v4358 = vpop.f32.mrb[0].mxu0
        %v4359 = vadd.f32 %v4318, %v4358
        %v4360 = vpop.f32.mrb[0].mxu0
        %v4361 = vadd.f32 %v4320, %v4360
        %v4362 = vpop.f32.mrb[0].mxu0
        %v4363 = vpop.f32.mrb[0].mxu0
        %4364 = vdwg.mxu0
        %4365 = vmatprep.subr.bf16.mxu0 %v3279
        %4366 = vmatpush1.bf16.msra.mxu0 %v3278
        %4367 = vmatprep.subr.bf16.mxu0 %v3287
        %4368 = vmatpush1.bf16.msra.mxu0 %v3286
        %4369 = vmatprep.subr.bf16.mxu0 %v3295
        %4370 = vmatpush1.bf16.msra.mxu0 %v3294
        %4371 = vmatprep.subr.bf16.mxu0 %v3303
        %4372 = vmatpush1.bf16.msra.mxu0 %v3302
        %4373 = vmatprep.subr.bf16.mxu0 %v3311
        %4374 = vmatpush1.bf16.msra.mxu0 %v3310
        %4375 = vmatprep.subr.bf16.mxu0 %v3319
        %4376 = vmatpush1.bf16.msra.mxu0 %v3318
        %4377 = vmatprep.subr.bf16.mxu0 %v3327
        %4378 = vmatpush1.bf16.msra.mxu0 %v3326
        %4379 = vmatprep.subr.bf16.mxu0 %v3335
        %4380 = vmatpush1.bf16.msra.mxu0 %v3334
        %4381 = vmatprep.subr.bf16.mxu0 %v3343
        %4382 = vmatpush1.bf16.msra.mxu0 %v3342
        %4383 = vmatprep.subr.bf16.mxu0 %v3351
        %4384 = vmatpush1.bf16.msra.mxu0 %v3350
        %4385 = vmatprep.subr.bf16.mxu0 %v3359
        %4386 = vmatpush1.bf16.msra.mxu0 %v3358
        %4387 = vmatprep.subr.bf16.mxu0 %v3367
        %4388 = vmatpush1.bf16.msra.mxu0 %v3366
        %4389 = vmatprep.subr.bf16.mxu0 %v3375
        %4390 = vmatpush1.bf16.msra.mxu0 %v3374
        %4391 = vmatprep.subr.bf16.mxu0 %v3383
        %4392 = vmatpush1.bf16.msra.mxu0 %v3382
        %4393 = vmatprep.subr.bf16.mxu0 %v3391
        %4394 = vmatpush1.bf16.msra.mxu0 %v3390
        %4395 = vmatprep.subr.bf16.mxu0 %v3399
        %4396 = vmatpush1.bf16.msra.mxu0 %v3398
        %4397 = vmatprep.mubr.bf16.mxu0 %v841
        %4398 = vmatmul.mubr.bf16.gmra.mrb[0].mxu0 %v840
        %v4399 = vpop.f32.mrb[0].mxu0
        %v4400 = vadd.f32 %v4359, %v4399
        %v4401 = vpop.f32.mrb[0].mxu0
        %v4402 = vadd.f32 %v4361, %v4401
        %v4403 = vpop.f32.mrb[0].mxu0
        %v4404 = vpop.f32.mrb[0].mxu0
        %4405 = vdwg.mxu0
        %4406 = vmatprep.subr.bf16.mxu0 %v2897
        %4407 = vmatpush1.bf16.msra.mxu0 %v2896
        %4408 = vmatprep.subr.bf16.mxu0 %v2905
        %4409 = vmatpush1.bf16.msra.mxu0 %v2904
        %4410 = vmatprep.subr.bf16.mxu0 %v2913
        %4411 = vmatpush1.bf16.msra.mxu0 %v2912
        %4412 = vmatprep.subr.bf16.mxu0 %v2921
        %4413 = vmatpush1.bf16.msra.mxu0 %v2920
        %4414 = vmatprep.subr.bf16.mxu0 %v2929
        %4415 = vmatpush1.bf16.msra.mxu0 %v2928
        %4416 = vmatprep.subr.bf16.mxu0 %v2937
        %4417 = vmatpush1.bf16.msra.mxu0 %v2936
        %4418 = vmatprep.subr.bf16.mxu0 %v2945
        %4419 = vmatpush1.bf16.msra.mxu0 %v2944
        %4420 = vmatprep.subr.bf16.mxu0 %v2953
        %4421 = vmatpush1.bf16.msra.mxu0 %v2952
        %4422 = vmatprep.subr.bf16.mxu0 %v2961
        %4423 = vmatpush1.bf16.msra.mxu0 %v2960
        %4424 = vmatprep.subr.bf16.mxu0 %v2969
        %4425 = vmatpush1.bf16.msra.mxu0 %v2968
        %4426 = vmatprep.subr.bf16.mxu0 %v2977
        %4427 = vmatpush1.bf16.msra.mxu0 %v2976
        %4428 = vmatprep.subr.bf16.mxu0 %v2985
        %4429 = vmatpush1.bf16.msra.mxu0 %v2984
        %4430 = vmatprep.subr.bf16.mxu0 %v2993
        %4431 = vmatpush1.bf16.msra.mxu0 %v2992
        %4432 = vmatprep.subr.bf16.mxu0 %v3001
        %4433 = vmatpush1.bf16.msra.mxu0 %v3000
        %4434 = vmatprep.subr.bf16.mxu0 %v3009
        %4435 = vmatpush1.bf16.msra.mxu0 %v3008
        %4436 = vmatprep.subr.bf16.mxu0 %v3017
        %4437 = vmatpush1.bf16.msra.mxu0 %v3016
        %4438 = vmatprep.mubr.bf16.mxu0 %v835
        %4439 = vmatmul.mubr.bf16.gmra.mrb[0].mxu0 %v834
        %v4440 = vpop.f32.mrb[0].mxu0
        %v4441 = vadd.f32 0.0, %v4440
        %v4442 = vpop.f32.mrb[0].mxu0
        %v4443 = vadd.f32 0.0, %v4442
        %v4444 = vpop.f32.mrb[0].mxu0
        %v4445 = vpop.f32.mrb[0].mxu0
        %4446 = vdwg.mxu0
        %4447 = vmatprep.subr.bf16.mxu0 %v3025
        %4448 = vmatpush1.bf16.msra.mxu0 %v3024
        %4449 = vmatprep.subr.bf16.mxu0 %v3033
        %4450 = vmatpush1.bf16.msra.mxu0 %v3032
        %4451 = vmatprep.subr.bf16.mxu0 %v3041
        %4452 = vmatpush1.bf16.msra.mxu0 %v3040
        %4453 = vmatprep.subr.bf16.mxu0 %v3049
        %4454 = vmatpush1.bf16.msra.mxu0 %v3048
        %4455 = vmatprep.subr.bf16.mxu0 %v3057
        %4456 = vmatpush1.bf16.msra.mxu0 %v3056
        %4457 = vmatprep.subr.bf16.mxu0 %v3065
        %4458 = vmatpush1.bf16.msra.mxu0 %v3064
        %4459 = vmatprep.subr.bf16.mxu0 %v3073
        %4460 = vmatpush1.bf16.msra.mxu0 %v3072
        %4461 = vmatprep.subr.bf16.mxu0 %v3081
        %4462 = vmatpush1.bf16.msra.mxu0 %v3080
        %4463 = vmatprep.subr.bf16.mxu0 %v3089
        %4464 = vmatpush1.bf16.msra.mxu0 %v3088
        %4465 = vmatprep.subr.bf16.mxu0 %v3097
        %4466 = vmatpush1.bf16.msra.mxu0 %v3096
        %4467 = vmatprep.subr.bf16.mxu0 %v3105
        %4468 = vmatpush1.bf16.msra.mxu0 %v3104
        %4469 = vmatprep.subr.bf16.mxu0 %v3113
        %4470 = vmatpush1.bf16.msra.mxu0 %v3112
        %4471 = vmatprep.subr.bf16.mxu0 %v3121
        %4472 = vmatpush1.bf16.msra.mxu0 %v3120
        %4473 = vmatprep.subr.bf16.mxu0 %v3129
        %4474 = vmatpush1.bf16.msra.mxu0 %v3128
        %4475 = vmatprep.subr.bf16.mxu0 %v3137
        %4476 = vmatpush1.bf16.msra.mxu0 %v3136
        %4477 = vmatprep.subr.bf16.mxu0 %v3145
        %4478 = vmatpush1.bf16.msra.mxu0 %v3144
        %4479 = vmatprep.mubr.bf16.mxu0 %v837
        %4480 = vmatmul.mubr.bf16.gmra.mrb[0].mxu0 %v836
        %v4481 = vpop.f32.mrb[0].mxu0
        %v4482 = vadd.f32 %v4441, %v4481
        %v4483 = vpop.f32.mrb[0].mxu0
        %v4484 = vadd.f32 %v4443, %v4483
        %v4485 = vpop.f32.mrb[0].mxu0
        %v4486 = vpop.f32.mrb[0].mxu0
        %4487 = vdwg.mxu0
        %4488 = vmatprep.subr.bf16.mxu0 %v3153
        %4489 = vmatpush1.bf16.msra.mxu0 %v3152
        %4490 = vmatprep.subr.bf16.mxu0 %v3161
        %4491 = vmatpush1.bf16.msra.mxu0 %v3160
        %4492 = vmatprep.subr.bf16.mxu0 %v3169
        %4493 = vmatpush1.bf16.msra.mxu0 %v3168
        %4494 = vmatprep.subr.bf16.mxu0 %v3177
        %4495 = vmatpush1.bf16.msra.mxu0 %v3176
        %4496 = vmatprep.subr.bf16.mxu0 %v3185
        %4497 = vmatpush1.bf16.msra.mxu0 %v3184
        %4498 = vmatprep.subr.bf16.mxu0 %v3193
        %4499 = vmatpush1.bf16.msra.mxu0 %v3192
        %4500 = vmatprep.subr.bf16.mxu0 %v3201
        %4501 = vmatpush1.bf16.msra.mxu0 %v3200
        %4502 = vmatprep.subr.bf16.mxu0 %v3209
        %4503 = vmatpush1.bf16.msra.mxu0 %v3208
        %4504 = vmatprep.subr.bf16.mxu0 %v3217
        %4505 = vmatpush1.bf16.msra.mxu0 %v3216
        %4506 = vmatprep.subr.bf16.mxu0 %v3225
        %4507 = vmatpush1.bf16.msra.mxu0 %v3224
        %4508 = vmatprep.subr.bf16.mxu0 %v3233
        %4509 = vmatpush1.bf16.msra.mxu0 %v3232
        %4510 = vmatprep.subr.bf16.mxu0 %v3241
        %4511 = vmatpush1.bf16.msra.mxu0 %v3240
        %4512 = vmatprep.subr.bf16.mxu0 %v3249
        %4513 = vmatpush1.bf16.msra.mxu0 %v3248
        %4514 = vmatprep.subr.bf16.mxu0 %v3257
        %4515 = vmatpush1.bf16.msra.mxu0 %v3256
        %4516 = vmatprep.subr.bf16.mxu0 %v3265
        %4517 = vmatpush1.bf16.msra.mxu0 %v3264
        %4518 = vmatprep.subr.bf16.mxu0 %v3273
        %4519 = vmatpush1.bf16.msra.mxu0 %v3272
        %4520 = vmatprep.mubr.bf16.mxu0 %v839
        %4521 = vmatmul.mubr.bf16.gmra.mrb[0].mxu0 %v838
        %v4522 = vpop.f32.mrb[0].mxu0
        %v4523 = vadd.f32 %v4482, %v4522
        %v4524 = vpop.f32.mrb[0].mxu0
        %v4525 = vadd.f32 %v4484, %v4524
        %v4526 = vpop.f32.mrb[0].mxu0
        %v4527 = vpop.f32.mrb[0].mxu0
        %4528 = vdwg.mxu0
        %4529 = vmatprep.subr.bf16.mxu0 %v3281
        %4530 = vmatpush1.bf16.msra.mxu0 %v3280
        %4531 = vmatprep.subr.bf16.mxu0 %v3289
        %4532 = vmatpush1.bf16.msra.mxu0 %v3288
        %4533 = vmatprep.subr.bf16.mxu0 %v3297
        %4534 = vmatpush1.bf16.msra.mxu0 %v3296
        %4535 = vmatprep.subr.bf16.mxu0 %v3305
        %4536 = vmatpush1.bf16.msra.mxu0 %v3304
        %4537 = vmatprep.subr.bf16.mxu0 %v3313
        %4538 = vmatpush1.bf16.msra.mxu0 %v3312
        %4539 = vmatprep.subr.bf16.mxu0 %v3321
        %4540 = vmatpush1.bf16.msra.mxu0 %v3320
        %4541 = vmatprep.subr.bf16.mxu0 %v3329
        %4542 = vmatpush1.bf16.msra.mxu0 %v3328
        %4543 = vmatprep.subr.bf16.mxu0 %v3337
        %4544 = vmatpush1.bf16.msra.mxu0 %v3336
        %4545 = vmatprep.subr.bf16.mxu0 %v3345
        %4546 = vmatpush1.bf16.msra.mxu0 %v3344
        %4547 = vmatprep.subr.bf16.mxu0 %v3353
        %4548 = vmatpush1.bf16.msra.mxu0 %v3352
        %4549 = vmatprep.subr.bf16.mxu0 %v3361
        %4550 = vmatpush1.bf16.msra.mxu0 %v3360
        %4551 = vmatprep.subr.bf16.mxu0 %v3369
        %4552 = vmatpush1.bf16.msra.mxu0 %v3368
        %4553 = vmatprep.subr.bf16.mxu0 %v3377
        %4554 = vmatpush1.bf16.msra.mxu0 %v3376
        %4555 = vmatprep.subr.bf16.mxu0 %v3385
        %4556 = vmatpush1.bf16.msra.mxu0 %v3384
        %4557 = vmatprep.subr.bf16.mxu0 %v3393
        %4558 = vmatpush1.bf16.msra.mxu0 %v3392
        %4559 = vmatprep.subr.bf16.mxu0 %v3401
        %4560 = vmatpush1.bf16.msra.mxu0 %v3400
        %4561 = vmatprep.mubr.bf16.mxu0 %v841
        %4562 = vmatmul.mubr.bf16.gmra.mrb[0].mxu0 %v840
        %v4563 = vpop.f32.mrb[0].mxu0
        %v4564 = vadd.f32 %v4523, %v4563
        %v4565 = vpop.f32.mrb[0].mxu0
        %v4566 = vadd.f32 %v4525, %v4565
        %v4567 = vpop.f32.mrb[0].mxu0
        %v4568 = vpop.f32.mrb[0].mxu0
        %4569 = vdwg.mxu0
        %v4570 = vadd.f32 %v826, %v4072
        %v4571 = vadd.f32 %v827, %v4074
        %v4572 = vadd.f32 %v828, %v4236
        %v4573 = vadd.f32 %v829, %v4238
        %v4574 = vadd.f32 %v830, %v4400
        %v4575 = vadd.f32 %v831, %v4402
        %v4576 = vadd.f32 %v832, %v4564
        %v4577 = vadd.f32 %v833, %v4566
        %4578 = vst [vmem:[#allocation2] sm:$0xff] %v4570
        %4579 = vst [vmem:[#allocation2 + $0x8] sm:$0xff] %v4571
        %4580 = vst [vmem:[#allocation2 + $0x10] sm:$0xff] %v4572
        %4581 = vst [vmem:[#allocation2 + $0x18] sm:$0xff] %v4573
        %4582 = vst [vmem:[#allocation2 + $0x20] sm:$0xff] %v4574
        %4583 = vst [vmem:[#allocation2 + $0x28] sm:$0xff] %v4575
        %4584 = vst [vmem:[#allocation2 + $0x30] sm:$0xff] %v4576
        %4585 = vst [vmem:[#allocation2 + $0x38] sm:$0xff] %v4577
        %p4586 = scmp.eq.s32.totalorder %s27, 3
        // Predicated region
        $region77: #{tpu_custom_call.1} parent=47 // pred_check
          %p4587 = pneg %p4586
        $region78: #{tpu_custom_call.1} parent=47 // pred_check_branch
          %4589 = sbr.rel (%p4587) target = $region80
        $region79: #{tpu_custom_call.1} parent=47 // pred_region
          %v4590 = vld [vmem:[#allocation2] sm:$0xff]
          %v4591 = vld [vmem:[#allocation2 + $0x8] sm:$0xff]
          %v4592 = vld [vmem:[#allocation2 + $0x10] sm:$0xff]
          %v4593 = vld [vmem:[#allocation2 + $0x18] sm:$0xff]
          %v4594 = vld [vmem:[#allocation2 + $0x20] sm:$0xff]
          %v4595 = vld [vmem:[#allocation2 + $0x28] sm:$0xff]
          %v4596 = vld [vmem:[#allocation2 + $0x30] sm:$0xff]
          %v4597 = vld [vmem:[#allocation2 + $0x38] sm:$0xff]
          %v4598 = vld [vmem:[#allocation11] sm:$0xff]
          %v4600 = vlaneseq
          %v4601 = vshrl.u32 %v4600, 7
          %v4602 = vsub.s32 0, %v4601
          %v4603 = vrot.slane %v4598, %v4602
          %v4604 = vlaneseq
          %v4605 = vshrl.u32 %v4604, 7
          %v4606 = vsub.s32 1, %v4605
          %v4607 = vrot.slane %v4598, %v4606
          %v4608 = vlaneseq
          %v4609 = vshrl.u32 %v4608, 7
          %v4610 = vsub.s32 2, %v4609
          %v4611 = vrot.slane %v4598, %v4610
          %v4612 = vlaneseq
          %v4613 = vshrl.u32 %v4612, 7
          %v4614 = vsub.s32 3, %v4613
          %v4615 = vrot.slane %v4598, %v4614
          %v4616 = vlaneseq
          %v4617 = vshrl.u32 %v4616, 7
          %v4618 = vsub.s32 4, %v4617
          %v4619 = vrot.slane %v4598, %v4618
          %v4620 = vlaneseq
          %v4621 = vshrl.u32 %v4620, 7
          %v4622 = vsub.s32 5, %v4621
          %v4623 = vrot.slane %v4598, %v4622
          %v4624 = vlaneseq
          %v4625 = vshrl.u32 %v4624, 7
          %v4626 = vsub.s32 6, %v4625
          %v4627 = vrot.slane %v4598, %v4626
          %v4628 = vlaneseq
          %v4629 = vshrl.u32 %v4628, 7
          %v4630 = vsub.s32 7, %v4629
          %v4631 = vrot.slane %v4598, %v4630
          %v4640 = vadd.f32 %v4590, %v4603
          %v4641 = vadd.f32 %v4591, %v4607
          %v4642 = vadd.f32 %v4592, %v4611
          %v4643 = vadd.f32 %v4593, %v4615
          %v4644 = vadd.f32 %v4594, %v4619
          %v4645 = vadd.f32 %v4595, %v4623
          %v4646 = vadd.f32 %v4596, %v4627
          %v4647 = vadd.f32 %v4597, %v4631
          %v4648 = vmax.f32 %v4640, 0.0
          %v4649 = vmax.f32 %v4641, 0.0
          %v4650 = vmax.f32 %v4642, 0.0
          %v4651 = vmax.f32 %v4643, 0.0
          %v4652 = vmax.f32 %v4644, 0.0
          %v4653 = vmax.f32 %v4645, 0.0
          %v4654 = vmax.f32 %v4646, 0.0
          %v4655 = vmax.f32 %v4647, 0.0
          %v4656 = vld [vmem:[#allocation12] sm:$0xff]
          %v4657 = vunpack.c.l.bf16 %v4656
          %v4658 = vunpack.c.h.bf16 %v4656
          %v4661 = vlaneseq
          %v4662 = vshrl.u32 %v4661, 7
          %v4663 = vsub.s32 0, %v4662
          %v4664 = vrot.slane %v4657, %v4663
          %v4665 = vlaneseq
          %v4666 = vshrl.u32 %v4665, 7
          %v4667 = vsub.s32 2, %v4666
          %v4668 = vrot.slane %v4657, %v4667
          %v4669 = vlaneseq
          %v4670 = vshrl.u32 %v4669, 7
          %v4671 = vsub.s32 4, %v4670
          %v4672 = vrot.slane %v4657, %v4671
          %v4673 = vlaneseq
          %v4674 = vshrl.u32 %v4673, 7
          %v4675 = vsub.s32 6, %v4674
          %v4676 = vrot.slane %v4657, %v4675
          %v4677 = vlaneseq
          %v4678 = vshrl.u32 %v4677, 7
          %v4679 = vsub.s32 0, %v4678
          %v4680 = vrot.slane %v4658, %v4679
          %v4681 = vlaneseq
          %v4682 = vshrl.u32 %v4681, 7
          %v4683 = vsub.s32 2, %v4682
          %v4684 = vrot.slane %v4658, %v4683
          %v4685 = vlaneseq
          %v4686 = vshrl.u32 %v4685, 7
          %v4687 = vsub.s32 4, %v4686
          %v4688 = vrot.slane %v4658, %v4687
          %v4689 = vlaneseq
          %v4690 = vshrl.u32 %v4689, 7
          %v4691 = vsub.s32 6, %v4690
          %v4692 = vrot.slane %v4658, %v4691
          %v4701 = vlaneseq
          %v4702 = vshrl.u32 %v4701, 7
          %v4703 = vsub.s32 0, %v4702
          %v4704 = vrot.slane %v4664, %v4703
          %v4705 = vlaneseq
          %v4706 = vshrl.u32 %v4705, 7
          %v4707 = vsub.s32 0, %v4706
          %v4708 = vrot.slane %v4668, %v4707
          %v4709 = vlaneseq
          %v4710 = vshrl.u32 %v4709, 7
          %v4711 = vsub.s32 0, %v4710
          %v4712 = vrot.slane %v4672, %v4711
          %v4713 = vlaneseq
          %v4714 = vshrl.u32 %v4713, 7
          %v4715 = vsub.s32 0, %v4714
          %v4716 = vrot.slane %v4676, %v4715
          %v4717 = vlaneseq
          %v4718 = vshrl.u32 %v4717, 7
          %v4719 = vsub.s32 0, %v4718
          %v4720 = vrot.slane %v4680, %v4719
          %v4721 = vlaneseq
          %v4722 = vshrl.u32 %v4721, 7
          %v4723 = vsub.s32 0, %v4722
          %v4724 = vrot.slane %v4684, %v4723
          %v4725 = vlaneseq
          %v4726 = vshrl.u32 %v4725, 7
          %v4727 = vsub.s32 0, %v4726
          %v4728 = vrot.slane %v4688, %v4727
          %v4729 = vlaneseq
          %v4730 = vshrl.u32 %v4729, 7
          %v4731 = vsub.s32 0, %v4730
          %v4732 = vrot.slane %v4692, %v4731
          %v4733 = vmul.f32 %v4648, %v4704
          %v4734 = vmul.f32 %v4649, %v4708
          %v4735 = vmul.f32 %v4650, %v4712
          %v4736 = vmul.f32 %v4651, %v4716
          %v4737 = vmul.f32 %v4652, %v4720
          %v4738 = vmul.f32 %v4653, %v4724
          %v4739 = vmul.f32 %v4654, %v4728
          %v4740 = vmul.f32 %v4655, %v4732
          %v4741 = vadd.f32 %v4733, %v4734
          %v4742 = vadd.f32 %v4741, %v4735
          %v4743 = vadd.f32 %v4742, %v4736
          %v4744 = vadd.f32 %v4743, %v4737
          %v4745 = vadd.f32 %v4744, %v4738
          %v4746 = vadd.f32 %v4745, %v4739
          %v4747 = vadd.f32 %v4746, %v4740
          %4748 = vadd.xlane.f32.xlu0 %v4747
          %v4749 = vpop.xlane.xlu0 %4748
          %s4750 = sld [smem:[#allocation3]]
          %v4751 = vstv %s4750
          %v4752 = vadd.f32 %v4749, %v4751
          %vm4753 = vcmask 7168
          %4754 = vst.msk [vmem:[%s7] sm:$0xff] %vm4753, %v4752
        $region80: #{tpu_custom_call.1} parent=47 // pred_fallthru
          _
        // Predicated region
        $region81: #{tpu_custom_call.1} parent=47 // pred_check
          %p4755 = pneg %p202
        $region82: #{tpu_custom_call.1} parent=47 // pred_check_branch
          %4757 = sbr.rel (%p4755) target = $region84
        $region83: #{tpu_custom_call.1} parent=47 // pred_region
          _
        $region84: #{tpu_custom_call.1} parent=47 // pred_fallthru
          _
        // Predicated region
        $region85: #{tpu_custom_call.1} parent=47 // pred_check
          %p4758 = pneg %p202
        $region86: #{tpu_custom_call.1} parent=47 // pred_check_branch
          %4760 = sbr.rel (%p4758) target = $region88
        $region87: #{tpu_custom_call.1} parent=47 // pred_region
          _
        $region88: #{tpu_custom_call.1} parent=47 // pred_fallthru
          _
      $region48: #{tpu_custom_call.1} parent=5 // pred_fallthru
        _
      %p4761 = scmp.le.s32.totalorder 2, %s22
      // Predicated region
      $region89: #{tpu_custom_call.1} parent=5 // pred_check
        %p4762 = pneg %p4761
      $region90: #{tpu_custom_call.1} parent=5 // pred_check_branch
        %4764 = sbr.rel (%p4762) target = $region92
      $region91: #{tpu_custom_call.1} parent=5 // pred_region
        %s4765 = ssub.s32 %s22, 2
      $region92: #{tpu_custom_call.1} parent=5 // pred_fallthru
        _
    $region6: #{tpu_custom_call.1} parent=1 // loop_footer
      %s26 = sadd.s32 1, %s22
    $region7: #{tpu_custom_call.1} parent=1 // loop_footer_branch
      %21 = sbr.rel target = $region3
    $region8: #{tpu_custom_call.1} parent=1 // loop_exit
      _
    %4766 = vsyncpa [#allocation5], 1
    %s4767 = scalar_lea.sflag [#allocation5], 1
    %4768 = vsyncpa %s4767, 1
    %4769 = vsyncpa [#allocation7], 1
    %s4770 = scalar_lea.sflag [#allocation7], 1
    %4771 = vsyncpa %s4770, 1
    %4772 = vsyncpa [#allocation10], 1
    %s4773 = scalar_lea.sflag [#allocation10], 1
    %4774 = vsyncpa %s4773, 1
    %4775 = vsyncpa [#allocation13], 1

</llo_original>
